<compile_context>
chip_gen: v5e
topology: v5e:2x2
jax: 0.10.0
libtpu: 0.0.40
codegen_flags: <defaults>
</compile_context>

<pallas_src>
import functools
import math

import jax
import jax.numpy as jnp
from jax.experimental import pallas as pl
from jax.experimental.pallas import tpu as pltpu


# ------------------------------ fused kernel --------------------------------

def _decoder_kernel(x_ref, enc_ref,
                    wq_s_ref, wk_s_ref, wv_s_ref, wo_s_ref,
                    wq_c_ref, wk_c_ref, wv_c_ref, wo_c_ref,
                    w1_ref, b1_ref, w2_ref, b2_ref,
                    ln_g_ref, ln_b_ref, fcw_ref, fcb_ref,
                    out_ref, *, num_layers, heads, head_dim, inv_scale, eps):
    """One batch element: full decoder stack + vocab projection, all in VMEM."""
    E = heads * head_dim
    x = x_ref[0].astype(jnp.float32)            # (S, E) activations, f32 carry
    S = x.shape[0]
    Sk = enc_ref.shape[1]

    # trg_mask = causal, built in-kernel (no HBM mask tensor); src_mask = ones.
    row = jax.lax.broadcasted_iota(jnp.int32, (S, S), 0)
    col = jax.lax.broadcasted_iota(jnp.int32, (S, S), 1)
    causal_keep = (row >= col)[None]             # (1, S, S) -> broadcasts over heads

    # Encoder K/V input broadcast to head-major once (hoisted out of the layer loop).
    enc_b = jnp.broadcast_to(enc_ref[0][None], (heads, Sk, E))     # bf16

    def layernorm(y, g, b):
        mu = jnp.mean(y, axis=-1, keepdims=True)
        var = jnp.mean((y - mu) ** 2, axis=-1, keepdims=True)
        return (y - mu) * jax.lax.rsqrt(var + eps) * g + b

    def mha(xq_b, xkv_b, wq, wk, wv, wo, keep):
        # Head-batched attention.  All contractions are leading-batch matmuls
        # with last-dim / penultimate-dim contraction (MXU-friendly); the head
        # split lives entirely in the zero-padded (H, E, D) weights.
        q = jnp.einsum('hse,hed->hsd', xq_b, wq,
                       preferred_element_type=jnp.float32)          # (H, Sq, D)
        k = jnp.einsum('hse,hed->hsd', xkv_b, wk,
                       preferred_element_type=jnp.float32)          # (H, Sk, D)
        v = jnp.einsum('hse,hed->hsd', xkv_b, wv,
                       preferred_element_type=jnp.float32)          # (H, Sk, D)
        e = jnp.einsum('hqd,hkd->hqk',
                       q.astype(jnp.bfloat16), k.astype(jnp.bfloat16),
                       preferred_element_type=jnp.float32)          # (H, Sq, Sk)
        if keep is not None:
            e = jnp.where(keep, e, jnp.float32(-1e20))
        # reference scales by 1/sqrt(embed_size) (not sqrt(head_dim))
        e = e * inv_scale
        e = e - jnp.max(e, axis=-1, keepdims=True)
        p = jnp.exp(e)
        # approx reciprocal (EUP slot): rows sum to 1 within ~1e-3; use
        # approx=False for tight-tolerance validation against a framework ref.
        attn = p * pl.reciprocal(jnp.sum(p, axis=-1, keepdims=True), approx=True)
        ctx = jnp.einsum('hqk,hkd->hqd',
                         attn.astype(jnp.bfloat16), v.astype(jnp.bfloat16),
                         preferred_element_type=jnp.float32)        # (H, Sq, D)
        o = jnp.einsum('hqd,hde->hqe', ctx.astype(jnp.bfloat16), wo,
                       preferred_element_type=jnp.float32)          # (H, Sq, E)
        return jnp.sum(o, axis=0)                                   # (Sq, E) f32

    for l in range(num_layers):                  # static unroll (num_layers small)
        # 1) causal self-attention + residual + LayerNorm
        xb = jnp.broadcast_to(x.astype(jnp.bfloat16)[None], (heads, S, E))
        a = mha(xb, xb, wq_s_ref[l], wk_s_ref[l], wv_s_ref[l], wo_s_ref[l],
                causal_keep)
        query = layernorm(a + x, ln_g_ref[l, 0], ln_b_ref[l, 0])
        # 2) cross-attention (K/V = encoder output, src_mask = ones) + res + LN
        qb = jnp.broadcast_to(query.astype(jnp.bfloat16)[None], (heads, S, E))
        c = mha(qb, enc_b, wq_c_ref[l], wk_c_ref[l], wv_c_ref[l], wo_c_ref[l],
                None)
        h = layernorm(c + query, ln_g_ref[l, 1], ln_b_ref[l, 1])
        # 3) FFN (Linear -> ReLU -> Linear) + residual + LayerNorm
        f = jnp.dot(h.astype(jnp.bfloat16), w1_ref[l],
                    preferred_element_type=jnp.float32) + b1_ref[l]
        f = jnp.maximum(f, 0.0)
        f = jnp.dot(f.astype(jnp.bfloat16), w2_ref[l],
                    preferred_element_type=jnp.float32) + b2_ref[l]
        x = layernorm(f + h, ln_g_ref[l, 2], ln_b_ref[l, 2])

    # Final vocab projection -> lane-dense (128-padded) logits store.
    out_ref[0] = (jnp.dot(x.astype(jnp.bfloat16), fcw_ref[...],
                          preferred_element_type=jnp.float32) + fcb_ref[...])


# ------------------------------- wrapper -------------------------------------

def _const_spec(arr):
    zeros = (0,) * arr.ndim
    return pl.BlockSpec(arr.shape, lambda n: zeros)


@functools.partial(jax.jit,
                   static_argnames=("embed_size", "heads", "vocab", "num_layers"))
def decoder_forward(params, tokens, enc_out, *, embed_size, heads, vocab,
                    num_layers):
    N, S = tokens.shape
    E = embed_size
    # Embedding gathers kept as XLA glue (tiny); dropout = identity (eval mode).
    x = (params["word_emb"][tokens] + params["pos_emb"][:S][None, :, :]
         ).astype(jnp.bfloat16)
    enc = enc_out.astype(jnp.bfloat16)
    Vp = params["fcW_pad"].shape[1]

    kern = functools.partial(_decoder_kernel, num_layers=num_layers, heads=heads,
                             head_dim=E // heads,
                             inv_scale=1.0 / math.sqrt(E), eps=1e-5)

    weights = (params["wq_s"], params["wk_s"], params["wv_s"], params["wo_s"],
               params["wq_c"], params["wk_c"], params["wv_c"], params["wo_c"],
               params["w1"], params["b1"], params["w2"], params["b2"],
               params["ln_g"], params["ln_b"],
               params["fcW_pad"], params["fcb_pad"])

    logits_pad = pl.pallas_call(
        kern,
        out_shape=jax.ShapeDtypeStruct((N, S, Vp), jnp.float32),
        grid=(N,),
        in_specs=[pl.BlockSpec((1, S, E), lambda n: (n, 0, 0)),
                  pl.BlockSpec((1, S, E), lambda n: (n, 0, 0))]
                 + [_const_spec(w) for w in weights],
        out_specs=pl.BlockSpec((1, S, Vp), lambda n: (n, 0, 0)),
        compiler_params=pltpu.CompilerParams(
            dimension_semantics=("parallel",)),   # 2 steps -> both TCs on v7x
    )(x, enc, *weights)
    return logits_pad[..., :vocab]


# ----------------------------- parameter init --------------------------------

def _head_proj(key, embed_size, heads, scale):
    """Shared per-head (D,D) projection -> zero-padded (H, E, D) per-head form."""
    D = embed_size // heads
    w = scale * jax.random.normal(key, (D, D), jnp.float32)
    bd = jnp.kron(jnp.eye(heads, dtype=jnp.float32), w)            # (E, E) block-diag
    return bd.reshape(embed_size, heads, D).transpose(1, 0, 2)     # (H, E, D)


def init_decoder_params(key, vocab, embed_size, num_layers, heads, fe, max_len):
    E, H, L = embed_size, heads, num_layers
    D = E // H
    Hff = E * fe
    s = 0.02
    k_emb, k_fc, k_layers = jax.random.split(key, 3)
    lkeys = jax.random.split(k_layers, L)

    wq_s, wk_s, wv_s, wo_s = [], [], [], []
    wq_c, wk_c, wv_c, wo_c = [], [], [], []
    w1s, w2s = [], []
    for lk in lkeys:
        ks = jax.random.split(lk, 10)
        wq_s.append(_head_proj(ks[0], E, H, s))
        wk_s.append(_head_proj(ks[1], E, H, s))
        wv_s.append(_head_proj(ks[2], E, H, s))
        wo_s.append((s * jax.random.normal(ks[3], (E, E), jnp.float32)
                     ).reshape(H, D, E))
        wq_c.append(_head_proj(ks[4], E, H, s))
        wk_c.append(_head_proj(ks[5], E, H, s))
        wv_c.append(_head_proj(ks[6], E, H, s))
        wo_c.append((s * jax.random.normal(ks[7], (E, E), jnp.float32)
                     ).reshape(H, D, E))
        w1s.append(s * jax.random.normal(ks[8], (E, Hff), jnp.float32))
        w2s.append(s * jax.random.normal(ks[9], (Hff, E), jnp.float32))

    stack = lambda xs: jnp.stack(xs).astype(jnp.bfloat16)

    # Vocab projection padded to a multiple of 128 lanes (sliced in the wrapper).
    Vp = 128 * ((vocab + 127) // 128)
    fcW = s * jax.random.normal(k_fc, (E, vocab), jnp.float32)
    fcW_pad = jnp.zeros((E, Vp), jnp.float32).at[:, :vocab].set(fcW)

    ke1, ke2 = jax.random.split(k_emb)
    return {
        "word_emb": s * jax.random.normal(ke1, (vocab, E), jnp.float32),
        "pos_emb": s * jax.random.normal(ke2, (max_len, E), jnp.float32),
        "wq_s": stack(wq_s), "wk_s": stack(wk_s),
        "wv_s": stack(wv_s), "wo_s": stack(wo_s),
        "wq_c": stack(wq_c), "wk_c": stack(wk_c),
        "wv_c": stack(wv_c), "wo_c": stack(wo_c),
        "w1": stack(w1s), "b1": jnp.zeros((L, 1, Hff), jnp.float32),
        "w2": stack(w2s), "b2": jnp.zeros((L, 1, E), jnp.float32),
        "ln_g": jnp.ones((L, 3, 1, E), jnp.float32),   # [post-self-attn, norm1, norm2]
        "ln_b": jnp.zeros((L, 3, 1, E), jnp.float32),
        "fcW_pad": fcW_pad.astype(jnp.bfloat16),
        "fcb_pad": jnp.zeros((1, Vp), jnp.float32),
    }


# ----------------------------------- main -------------------------------------

if __name__ == "__main__":
    vocab = 50
    embed_size = 32
    num_layers = 2
    heads = 4
    forward_expansion = 4
    max_length = 16
    N, S = 2, 8

    key = jax.random.PRNGKey(0)
    kp, kt, ke = jax.random.split(key, 3)

    params = init_decoder_params(kp, vocab, embed_size, num_layers, heads,
                                 forward_expansion, max_length)

    tokens = jax.random.randint(kt, (N, S), 0, vocab, dtype=jnp.int32)
    enc_out = jax.random.normal(ke, (N, S, embed_size), jnp.float32)

    out = decoder_forward(params, tokens, enc_out, embed_size=embed_size,
                          heads=heads, vocab=vocab, num_layers=num_layers)
    out = jax.block_until_ready(out)
    assert out.shape == (N, S, vocab)
    assert bool(jnp.all(jnp.isfinite(out)))
    print("KERNEL_OK")
</pallas_src>

<mosaic_0001>
module attributes {stable_mosaic.version = 11 : i64} {
  func.func @_decoder_kernel(%arg0: i32, %arg1: memref<1x8x32xbf16, #tpu.memory_space<vmem>>, %arg2: memref<1x8x32xbf16, #tpu.memory_space<vmem>>, %arg3: memref<2x4x32x8xbf16, #tpu.memory_space<vmem>>, %arg4: memref<2x4x32x8xbf16, #tpu.memory_space<vmem>>, %arg5: memref<2x4x32x8xbf16, #tpu.memory_space<vmem>>, %arg6: memref<2x4x8x32xbf16, #tpu.memory_space<vmem>>, %arg7: memref<2x4x32x8xbf16, #tpu.memory_space<vmem>>, %arg8: memref<2x4x32x8xbf16, #tpu.memory_space<vmem>>, %arg9: memref<2x4x32x8xbf16, #tpu.memory_space<vmem>>, %arg10: memref<2x4x8x32xbf16, #tpu.memory_space<vmem>>, %arg11: memref<2x32x128xbf16, #tpu.memory_space<vmem>>, %arg12: memref<2x1x128xf32, #tpu.memory_space<vmem>>, %arg13: memref<2x128x32xbf16, #tpu.memory_space<vmem>>, %arg14: memref<2x1x32xf32, #tpu.memory_space<vmem>>, %arg15: memref<2x3x1x32xf32, #tpu.memory_space<vmem>>, %arg16: memref<2x3x1x32xf32, #tpu.memory_space<vmem>>, %arg17: memref<32x128xbf16, #tpu.memory_space<vmem>>, %arg18: memref<1x128xf32, #tpu.memory_space<vmem>>, %arg19: memref<1x8x128xf32, #tpu.memory_space<vmem>>) attributes {dimension_semantics = [#tpu.dimension_semantics<parallel>], iteration_bounds = array<i64: 2>, scalar_prefetch = 0 : i64, scratch_operands = 0 : i64, tpu.core_type = #tpu.core_type<tc>, window_params = [{transform_indices = @transform_0, window_bounds = array<i64: 1, 8, 32>}, {transform_indices = @transform_1, window_bounds = array<i64: 1, 8, 32>}, {pipeline_mode = #tpu.pipeline_mode<synchronous>, transform_indices = @transform_2, window_bounds = array<i64: 2, 4, 32, 8>}, {pipeline_mode = #tpu.pipeline_mode<synchronous>, transform_indices = @transform_3, window_bounds = array<i64: 2, 4, 32, 8>}, {pipeline_mode = #tpu.pipeline_mode<synchronous>, transform_indices = @transform_4, window_bounds = array<i64: 2, 4, 32, 8>}, {pipeline_mode = #tpu.pipeline_mode<synchronous>, transform_indices = @transform_5, window_bounds = array<i64: 2, 4, 8, 32>}, {pipeline_mode = #tpu.pipeline_mode<synchronous>, transform_indices = @transform_6, window_bounds = array<i64: 2, 4, 32, 8>}, {pipeline_mode = #tpu.pipeline_mode<synchronous>, transform_indices = @transform_7, window_bounds = array<i64: 2, 4, 32, 8>}, {pipeline_mode = #tpu.pipeline_mode<synchronous>, transform_indices = @transform_8, window_bounds = array<i64: 2, 4, 32, 8>}, {pipeline_mode = #tpu.pipeline_mode<synchronous>, transform_indices = @transform_9, window_bounds = array<i64: 2, 4, 8, 32>}, {pipeline_mode = #tpu.pipeline_mode<synchronous>, transform_indices = @transform_10, window_bounds = array<i64: 2, 32, 128>}, {pipeline_mode = #tpu.pipeline_mode<synchronous>, transform_indices = @transform_11, window_bounds = array<i64: 2, 1, 128>}, {pipeline_mode = #tpu.pipeline_mode<synchronous>, transform_indices = @transform_12, window_bounds = array<i64: 2, 128, 32>}, {pipeline_mode = #tpu.pipeline_mode<synchronous>, transform_indices = @transform_13, window_bounds = array<i64: 2, 1, 32>}, {pipeline_mode = #tpu.pipeline_mode<synchronous>, transform_indices = @transform_14, window_bounds = array<i64: 2, 3, 1, 32>}, {pipeline_mode = #tpu.pipeline_mode<synchronous>, transform_indices = @transform_15, window_bounds = array<i64: 2, 3, 1, 32>}, {pipeline_mode = #tpu.pipeline_mode<synchronous>, transform_indices = @transform_16, window_bounds = array<i64: 32, 128>}, {pipeline_mode = #tpu.pipeline_mode<synchronous>, transform_indices = @transform_17, window_bounds = array<i64: 1, 128>}, {transform_indices = @transform_18, window_bounds = array<i64: 1, 8, 128>}]} {
    %c0 = arith.constant 0 : index
    %c0_0 = arith.constant 0 : index
    %c0_1 = arith.constant 0 : index
    %0 = vector.load %arg1[%c0, %c0_0, %c0_1] : memref<1x8x32xbf16, #tpu.memory_space<vmem>>, vector<1x8x32xbf16>
    %1 = vector.shape_cast %0 : vector<1x8x32xbf16> to vector<8x32xbf16>
    %2 = arith.extf %1 : vector<8x32xbf16> to vector<8x32xf32>
    %3 = tpu.iota {dimensions = array<i32: 0>} : vector<8x8xi32>
    %4 = tpu.iota {dimensions = array<i32: 1>} : vector<8x8xi32>
    %5 = arith.cmpi sge, %3, %4 : vector<8x8xi32>
    %6 = vector.shape_cast %5 : vector<8x8xi1> to vector<1x8x8xi1>
    %c0_2 = arith.constant 0 : index
    %c0_3 = arith.constant 0 : index
    %c0_4 = arith.constant 0 : index
    %7 = vector.load %arg2[%c0_2, %c0_3, %c0_4] : memref<1x8x32xbf16, #tpu.memory_space<vmem>>, vector<1x8x32xbf16>
    %8 = vector.shape_cast %7 : vector<1x8x32xbf16> to vector<8x32xbf16>
    %9 = vector.shape_cast %8 : vector<8x32xbf16> to vector<1x8x32xbf16>
    %10 = vector.shape_cast %9 : vector<1x8x32xbf16> to vector<1x8x32xbf16>
    %11 = vector.broadcast %10 : vector<1x8x32xbf16> to vector<4x8x32xbf16>
    %12 = arith.truncf %2 : vector<8x32xf32> to vector<8x32xbf16>
    %13 = vector.shape_cast %12 : vector<8x32xbf16> to vector<1x8x32xbf16>
    %14 = vector.shape_cast %13 : vector<1x8x32xbf16> to vector<1x8x32xbf16>
    %15 = vector.broadcast %14 : vector<1x8x32xbf16> to vector<4x8x32xbf16>
    %c0_5 = arith.constant 0 : index
    %c0_6 = arith.constant 0 : index
    %c0_7 = arith.constant 0 : index
    %c0_8 = arith.constant 0 : index
    %16 = vector.load %arg3[%c0_5, %c0_6, %c0_7, %c0_8] : memref<2x4x32x8xbf16, #tpu.memory_space<vmem>>, vector<1x4x32x8xbf16>
    %17 = vector.shape_cast %16 : vector<1x4x32x8xbf16> to vector<4x32x8xbf16>
    %c0_9 = arith.constant 0 : index
    %c0_10 = arith.constant 0 : index
    %c0_11 = arith.constant 0 : index
    %c0_12 = arith.constant 0 : index
    %18 = vector.load %arg4[%c0_9, %c0_10, %c0_11, %c0_12] : memref<2x4x32x8xbf16, #tpu.memory_space<vmem>>, vector<1x4x32x8xbf16>
    %19 = vector.shape_cast %18 : vector<1x4x32x8xbf16> to vector<4x32x8xbf16>
    %c0_13 = arith.constant 0 : index
    %c0_14 = arith.constant 0 : index
    %c0_15 = arith.constant 0 : index
    %c0_16 = arith.constant 0 : index
    %20 = vector.load %arg5[%c0_13, %c0_14, %c0_15, %c0_16] : memref<2x4x32x8xbf16, #tpu.memory_space<vmem>>, vector<1x4x32x8xbf16>
    %21 = vector.shape_cast %20 : vector<1x4x32x8xbf16> to vector<4x32x8xbf16>
    %c0_17 = arith.constant 0 : index
    %c0_18 = arith.constant 0 : index
    %c0_19 = arith.constant 0 : index
    %c0_20 = arith.constant 0 : index
    %22 = vector.load %arg6[%c0_17, %c0_18, %c0_19, %c0_20] : memref<2x4x8x32xbf16, #tpu.memory_space<vmem>>, vector<1x4x8x32xbf16>
    %23 = vector.shape_cast %22 : vector<1x4x8x32xbf16> to vector<4x8x32xbf16>
    "tpu.trace_start"() <{level = 10 : i32, message = "hse,hed->hsd"}> : () -> ()
    %cst = arith.constant dense<0.000000e+00> : vector<4x8x8xf32>
    %24 = tpu.matmul %15, %17, %cst {dimension_numbers = #tpu.dot_dimension_numbers<[2], [1], [1], [2], [0, 0, 0, 1, 1, 2], [0], [0]>} : vector<4x8x32xbf16>, vector<4x32x8xbf16>, vector<4x8x8xf32> -> vector<4x8x8xf32>
    %cst_21 = arith.constant dense<0.000000e+00> : vector<4x8x8xf32>
    %25 = tpu.matmul %15, %19, %cst_21 {dimension_numbers = #tpu.dot_dimension_numbers<[2], [1], [1], [2], [0, 0, 0, 1, 1, 2], [0], [0]>} : vector<4x8x32xbf16>, vector<4x32x8xbf16>, vector<4x8x8xf32> -> vector<4x8x8xf32>
    %cst_22 = arith.constant dense<0.000000e+00> : vector<4x8x8xf32>
    %26 = tpu.matmul %15, %21, %cst_22 {dimension_numbers = #tpu.dot_dimension_numbers<[2], [1], [1], [2], [0, 0, 0, 1, 1, 2], [0], [0]>} : vector<4x8x32xbf16>, vector<4x32x8xbf16>, vector<4x8x8xf32> -> vector<4x8x8xf32>
    "tpu.trace_stop"() : () -> ()
    %27 = arith.truncf %24 : vector<4x8x8xf32> to vector<4x8x8xbf16>
    %28 = arith.truncf %25 : vector<4x8x8xf32> to vector<4x8x8xbf16>
    "tpu.trace_start"() <{level = 10 : i32, message = "hqd,hkd->hqk"}> : () -> ()
    %cst_23 = arith.constant dense<0.000000e+00> : vector<4x8x8xf32>
    %29 = tpu.matmul %27, %28, %cst_23 {dimension_numbers = #tpu.dot_dimension_numbers<[2], [2], [1], [1], [0, 0, 0, 1, 1, 1], [0], [0]>} : vector<4x8x8xbf16>, vector<4x8x8xbf16>, vector<4x8x8xf32> -> vector<4x8x8xf32>
    %cst_24 = arith.constant -1.000000e+20 : f32
    "tpu.trace_stop"() : () -> ()
    %30 = vector.shape_cast %6 : vector<1x8x8xi1> to vector<1x8x8xi1>
    %31 = vector.broadcast %30 : vector<1x8x8xi1> to vector<4x8x8xi1>
    %32 = vector.broadcast %cst_24 : f32 to vector<4x8x8xf32>
    %33 = arith.select %31, %29, %32 : vector<4x8x8xi1>, vector<4x8x8xf32>
    %cst_25 = arith.constant 0.176776692 : f32
    %34 = vector.broadcast %cst_25 : f32 to vector<4x8x8xf32>
    %35 = arith.mulf %33, %34 : vector<4x8x8xf32>
    %cst_26 = arith.constant dense<0xFF800000> : vector<4x8xf32>
    %36 = vector.multi_reduction <maximumf>, %35, %cst_26 [2] : vector<4x8x8xf32> to vector<4x8xf32>
    %37 = vector.shape_cast %36 : vector<4x8xf32> to vector<4x8x1xf32>
    %38 = vector.broadcast %37 : vector<4x8x1xf32> to vector<4x8x8xf32>
    %39 = arith.subf %35, %38 : vector<4x8x8xf32>
    %40 = math.exp %39 : vector<4x8x8xf32>
    %cst_27 = arith.constant dense<0.000000e+00> : vector<4x8xf32>
    %41 = vector.multi_reduction <add>, %40, %cst_27 [2] : vector<4x8x8xf32> to vector<4x8xf32>
    %42 = vector.shape_cast %41 : vector<4x8xf32> to vector<4x8x1xf32>
    %43 = tpu.reciprocal %42 {approx = true} : vector<4x8x1xf32> -> vector<4x8x1xf32>
    %44 = vector.broadcast %43 : vector<4x8x1xf32> to vector<4x8x8xf32>
    %45 = arith.mulf %40, %44 : vector<4x8x8xf32>
    %46 = arith.truncf %45 : vector<4x8x8xf32> to vector<4x8x8xbf16>
    %47 = arith.truncf %26 : vector<4x8x8xf32> to vector<4x8x8xbf16>
    "tpu.trace_start"() <{level = 10 : i32, message = "hqk,hkd->hqd"}> : () -> ()
    %cst_28 = arith.constant dense<0.000000e+00> : vector<4x8x8xf32>
    %48 = tpu.matmul %46, %47, %cst_28 {dimension_numbers = #tpu.dot_dimension_numbers<[2], [1], [1], [2], [0, 0, 0, 1, 1, 2], [0], [0]>} : vector<4x8x8xbf16>, vector<4x8x8xbf16>, vector<4x8x8xf32> -> vector<4x8x8xf32>
    "tpu.trace_stop"() : () -> ()
    %49 = arith.truncf %48 : vector<4x8x8xf32> to vector<4x8x8xbf16>
    "tpu.trace_start"() <{level = 10 : i32, message = "hqd,hde->hqe"}> : () -> ()
    %cst_29 = arith.constant dense<0.000000e+00> : vector<4x8x32xf32>
    %50 = tpu.matmul %49, %23, %cst_29 {dimension_numbers = #tpu.dot_dimension_numbers<[2], [1], [1], [2], [0, 0, 0, 1, 1, 2], [0], [0]>} : vector<4x8x8xbf16>, vector<4x8x32xbf16>, vector<4x8x32xf32> -> vector<4x8x32xf32>
    "tpu.trace_stop"() : () -> ()
    %cst_30 = arith.constant dense<0.000000e+00> : vector<8x32xf32>
    %51 = vector.multi_reduction <add>, %50, %cst_30 [0] : vector<4x8x32xf32> to vector<8x32xf32>
    %52 = arith.addf %51, %2 : vector<8x32xf32>
    %c0_31 = arith.constant 0 : index
    %c0_32 = arith.constant 0 : index
    %c0_33 = arith.constant 0 : index
    %c0_34 = arith.constant 0 : index
    %53 = vector.load %arg15[%c0_31, %c0_32, %c0_33, %c0_34] : memref<2x3x1x32xf32, #tpu.memory_space<vmem>>, vector<1x1x1x32xf32>
    %54 = vector.shape_cast %53 : vector<1x1x1x32xf32> to vector<1x32xf32>
    %c0_35 = arith.constant 0 : index
    %c0_36 = arith.constant 0 : index
    %c0_37 = arith.constant 0 : index
    %c0_38 = arith.constant 0 : index
    %55 = vector.load %arg16[%c0_35, %c0_36, %c0_37, %c0_38] : memref<2x3x1x32xf32, #tpu.memory_space<vmem>>, vector<1x1x1x32xf32>
    %56 = vector.shape_cast %55 : vector<1x1x1x32xf32> to vector<1x32xf32>
    %cst_39 = arith.constant dense<0.000000e+00> : vector<8xf32>
    %57 = vector.multi_reduction <add>, %52, %cst_39 [1] : vector<8x32xf32> to vector<8xf32>
    %58 = vector.shape_cast %57 : vector<8xf32> to vector<8x1xf32>
    %cst_40 = arith.constant 3.200000e+01 : f32
    %59 = vector.broadcast %cst_40 : f32 to vector<8x1xf32>
    %60 = arith.divf %58, %59 : vector<8x1xf32>
    %61 = vector.broadcast %60 : vector<8x1xf32> to vector<8x32xf32>
    %62 = arith.subf %52, %61 : vector<8x32xf32>
    %63 = arith.mulf %62, %62 : vector<8x32xf32>
    %cst_41 = arith.constant dense<0.000000e+00> : vector<8xf32>
    %64 = vector.multi_reduction <add>, %63, %cst_41 [1] : vector<8x32xf32> to vector<8xf32>
    %65 = vector.shape_cast %64 : vector<8xf32> to vector<8x1xf32>
    %cst_42 = arith.constant 3.200000e+01 : f32
    %66 = vector.broadcast %cst_42 : f32 to vector<8x1xf32>
    %67 = arith.divf %65, %66 : vector<8x1xf32>
    %68 = vector.broadcast %60 : vector<8x1xf32> to vector<8x32xf32>
    %69 = arith.subf %52, %68 : vector<8x32xf32>
    %cst_43 = arith.constant 9.99999974E-6 : f32
    %70 = vector.broadcast %cst_43 : f32 to vector<8x1xf32>
    %71 = arith.addf %67, %70 : vector<8x1xf32>
    %72 = math.rsqrt %71 : vector<8x1xf32>
    %73 = vector.broadcast %72 : vector<8x1xf32> to vector<8x32xf32>
    %74 = arith.mulf %69, %73 : vector<8x32xf32>
    %75 = vector.broadcast %54 : vector<1x32xf32> to vector<8x32xf32>
    %76 = arith.mulf %74, %75 : vector<8x32xf32>
    %77 = vector.broadcast %56 : vector<1x32xf32> to vector<8x32xf32>
    %78 = arith.addf %76, %77 : vector<8x32xf32>
    %79 = arith.truncf %78 : vector<8x32xf32> to vector<8x32xbf16>
    %80 = vector.shape_cast %79 : vector<8x32xbf16> to vector<1x8x32xbf16>
    %81 = vector.shape_cast %80 : vector<1x8x32xbf16> to vector<1x8x32xbf16>
    %82 = vector.broadcast %81 : vector<1x8x32xbf16> to vector<4x8x32xbf16>
    %c0_44 = arith.constant 0 : index
    %c0_45 = arith.constant 0 : index
    %c0_46 = arith.constant 0 : index
    %c0_47 = arith.constant 0 : index
    %83 = vector.load %arg7[%c0_44, %c0_45, %c0_46, %c0_47] : memref<2x4x32x8xbf16, #tpu.memory_space<vmem>>, vector<1x4x32x8xbf16>
    %84 = vector.shape_cast %83 : vector<1x4x32x8xbf16> to vector<4x32x8xbf16>
    %c0_48 = arith.constant 0 : index
    %c0_49 = arith.constant 0 : index
    %c0_50 = arith.constant 0 : index
    %c0_51 = arith.constant 0 : index
    %85 = vector.load %arg8[%c0_48, %c0_49, %c0_50, %c0_51] : memref<2x4x32x8xbf16, #tpu.memory_space<vmem>>, vector<1x4x32x8xbf16>
    %86 = vector.shape_cast %85 : vector<1x4x32x8xbf16> to vector<4x32x8xbf16>
    %c0_52 = arith.constant 0 : index
    %c0_53 = arith.constant 0 : index
    %c0_54 = arith.constant 0 : index
    %c0_55 = arith.constant 0 : index
    %87 = vector.load %arg9[%c0_52, %c0_53, %c0_54, %c0_55] : memref<2x4x32x8xbf16, #tpu.memory_space<vmem>>, vector<1x4x32x8xbf16>
    %88 = vector.shape_cast %87 : vector<1x4x32x8xbf16> to vector<4x32x8xbf16>
    %c0_56 = arith.constant 0 : index
    %c0_57 = arith.constant 0 : index
    %c0_58 = arith.constant 0 : index
    %c0_59 = arith.constant 0 : index
    %89 = vector.load %arg10[%c0_56, %c0_57, %c0_58, %c0_59] : memref<2x4x8x32xbf16, #tpu.memory_space<vmem>>, vector<1x4x8x32xbf16>
    %90 = vector.shape_cast %89 : vector<1x4x8x32xbf16> to vector<4x8x32xbf16>
    "tpu.trace_start"() <{level = 10 : i32, message = "hse,hed->hsd"}> : () -> ()
    %cst_60 = arith.constant dense<0.000000e+00> : vector<4x8x8xf32>
    %91 = tpu.matmul %82, %84, %cst_60 {dimension_numbers = #tpu.dot_dimension_numbers<[2], [1], [1], [2], [0, 0, 0, 1, 1, 2], [0], [0]>} : vector<4x8x32xbf16>, vector<4x32x8xbf16>, vector<4x8x8xf32> -> vector<4x8x8xf32>
    %cst_61 = arith.constant dense<0.000000e+00> : vector<4x8x8xf32>
    %92 = tpu.matmul %11, %86, %cst_61 {dimension_numbers = #tpu.dot_dimension_numbers<[2], [1], [1], [2], [0, 0, 0, 1, 1, 2], [0], [0]>} : vector<4x8x32xbf16>, vector<4x32x8xbf16>, vector<4x8x8xf32> -> vector<4x8x8xf32>
    %cst_62 = arith.constant dense<0.000000e+00> : vector<4x8x8xf32>
    %93 = tpu.matmul %11, %88, %cst_62 {dimension_numbers = #tpu.dot_dimension_numbers<[2], [1], [1], [2], [0, 0, 0, 1, 1, 2], [0], [0]>} : vector<4x8x32xbf16>, vector<4x32x8xbf16>, vector<4x8x8xf32> -> vector<4x8x8xf32>
    "tpu.trace_stop"() : () -> ()
    %94 = arith.truncf %91 : vector<4x8x8xf32> to vector<4x8x8xbf16>
    %95 = arith.truncf %92 : vector<4x8x8xf32> to vector<4x8x8xbf16>
    "tpu.trace_start"() <{level = 10 : i32, message = "hqd,hkd->hqk"}> : () -> ()
    %cst_63 = arith.constant dense<0.000000e+00> : vector<4x8x8xf32>
    %96 = tpu.matmul %94, %95, %cst_63 {dimension_numbers = #tpu.dot_dimension_numbers<[2], [2], [1], [1], [0, 0, 0, 1, 1, 1], [0], [0]>} : vector<4x8x8xbf16>, vector<4x8x8xbf16>, vector<4x8x8xf32> -> vector<4x8x8xf32>
    "tpu.trace_stop"() : () -> ()
    %cst_64 = arith.constant 0.176776692 : f32
    %97 = vector.broadcast %cst_64 : f32 to vector<4x8x8xf32>
    %98 = arith.mulf %96, %97 : vector<4x8x8xf32>
    %cst_65 = arith.constant dense<0xFF800000> : vector<4x8xf32>
    %99 = vector.multi_reduction <maximumf>, %98, %cst_65 [2] : vector<4x8x8xf32> to vector<4x8xf32>
    %100 = vector.shape_cast %99 : vector<4x8xf32> to vector<4x8x1xf32>
    %101 = vector.broadcast %100 : vector<4x8x1xf32> to vector<4x8x8xf32>
    %102 = arith.subf %98, %101 : vector<4x8x8xf32>
    %103 = math.exp %102 : vector<4x8x8xf32>
    %cst_66 = arith.constant dense<0.000000e+00> : vector<4x8xf32>
    %104 = vector.multi_reduction <add>, %103, %cst_66 [2] : vector<4x8x8xf32> to vector<4x8xf32>
    %105 = vector.shape_cast %104 : vector<4x8xf32> to vector<4x8x1xf32>
    %106 = tpu.reciprocal %105 {approx = true} : vector<4x8x1xf32> -> vector<4x8x1xf32>
    %107 = vector.broadcast %106 : vector<4x8x1xf32> to vector<4x8x8xf32>
    %108 = arith.mulf %103, %107 : vector<4x8x8xf32>
    %109 = arith.truncf %108 : vector<4x8x8xf32> to vector<4x8x8xbf16>
    %110 = arith.truncf %93 : vector<4x8x8xf32> to vector<4x8x8xbf16>
    "tpu.trace_start"() <{level = 10 : i32, message = "hqk,hkd->hqd"}> : () -> ()
    %cst_67 = arith.constant dense<0.000000e+00> : vector<4x8x8xf32>
    %111 = tpu.matmul %109, %110, %cst_67 {dimension_numbers = #tpu.dot_dimension_numbers<[2], [1], [1], [2], [0, 0, 0, 1, 1, 2], [0], [0]>} : vector<4x8x8xbf16>, vector<4x8x8xbf16>, vector<4x8x8xf32> -> vector<4x8x8xf32>
    "tpu.trace_stop"() : () -> ()
    %112 = arith.truncf %111 : vector<4x8x8xf32> to vector<4x8x8xbf16>
    "tpu.trace_start"() <{level = 10 : i32, message = "hqd,hde->hqe"}> : () -> ()
    %cst_68 = arith.constant dense<0.000000e+00> : vector<4x8x32xf32>
    %113 = tpu.matmul %112, %90, %cst_68 {dimension_numbers = #tpu.dot_dimension_numbers<[2], [1], [1], [2], [0, 0, 0, 1, 1, 2], [0], [0]>} : vector<4x8x8xbf16>, vector<4x8x32xbf16>, vector<4x8x32xf32> -> vector<4x8x32xf32>
    "tpu.trace_stop"() : () -> ()
    %cst_69 = arith.constant dense<0.000000e+00> : vector<8x32xf32>
    %114 = vector.multi_reduction <add>, %113, %cst_69 [0] : vector<4x8x32xf32> to vector<8x32xf32>
    %115 = arith.addf %114, %78 : vector<8x32xf32>
    %c0_70 = arith.constant 0 : index
    %c1 = arith.constant 1 : index
    %c0_71 = arith.constant 0 : index
    %c0_72 = arith.constant 0 : index
    %116 = vector.load %arg15[%c0_70, %c1, %c0_71, %c0_72] : memref<2x3x1x32xf32, #tpu.memory_space<vmem>>, vector<1x1x1x32xf32>
    %117 = vector.shape_cast %116 : vector<1x1x1x32xf32> to vector<1x32xf32>
    %c0_73 = arith.constant 0 : index
    %c1_74 = arith.constant 1 : index
    %c0_75 = arith.constant 0 : index
    %c0_76 = arith.constant 0 : index
    %118 = vector.load %arg16[%c0_73, %c1_74, %c0_75, %c0_76] : memref<2x3x1x32xf32, #tpu.memory_space<vmem>>, vector<1x1x1x32xf32>
    %119 = vector.shape_cast %118 : vector<1x1x1x32xf32> to vector<1x32xf32>
    %cst_77 = arith.constant dense<0.000000e+00> : vector<8xf32>
    %120 = vector.multi_reduction <add>, %115, %cst_77 [1] : vector<8x32xf32> to vector<8xf32>
    %121 = vector.shape_cast %120 : vector<8xf32> to vector<8x1xf32>
    %cst_78 = arith.constant 3.200000e+01 : f32
    %122 = vector.broadcast %cst_78 : f32 to vector<8x1xf32>
    %123 = arith.divf %121, %122 : vector<8x1xf32>
    %124 = vector.broadcast %123 : vector<8x1xf32> to vector<8x32xf32>
    %125 = arith.subf %115, %124 : vector<8x32xf32>
    %126 = arith.mulf %125, %125 : vector<8x32xf32>
    %cst_79 = arith.constant dense<0.000000e+00> : vector<8xf32>
    %127 = vector.multi_reduction <add>, %126, %cst_79 [1] : vector<8x32xf32> to vector<8xf32>
    %128 = vector.shape_cast %127 : vector<8xf32> to vector<8x1xf32>
    %cst_80 = arith.constant 3.200000e+01 : f32
    %129 = vector.broadcast %cst_80 : f32 to vector<8x1xf32>
    %130 = arith.divf %128, %129 : vector<8x1xf32>
    %131 = vector.broadcast %123 : vector<8x1xf32> to vector<8x32xf32>
    %132 = arith.subf %115, %131 : vector<8x32xf32>
    %cst_81 = arith.constant 9.99999974E-6 : f32
    %133 = vector.broadcast %cst_81 : f32 to vector<8x1xf32>
    %134 = arith.addf %130, %133 : vector<8x1xf32>
    %135 = math.rsqrt %134 : vector<8x1xf32>
    %136 = vector.broadcast %135 : vector<8x1xf32> to vector<8x32xf32>
    %137 = arith.mulf %132, %136 : vector<8x32xf32>
    %138 = vector.broadcast %117 : vector<1x32xf32> to vector<8x32xf32>
    %139 = arith.mulf %137, %138 : vector<8x32xf32>
    %140 = vector.broadcast %119 : vector<1x32xf32> to vector<8x32xf32>
    %141 = arith.addf %139, %140 : vector<8x32xf32>
    %142 = arith.truncf %141 : vector<8x32xf32> to vector<8x32xbf16>
    %c0_82 = arith.constant 0 : index
    %c0_83 = arith.constant 0 : index
    %c0_84 = arith.constant 0 : index
    %143 = vector.load %arg11[%c0_82, %c0_83, %c0_84] : memref<2x32x128xbf16, #tpu.memory_space<vmem>>, vector<1x32x128xbf16>
    %144 = vector.shape_cast %143 : vector<1x32x128xbf16> to vector<32x128xbf16>
    %cst_85 = arith.constant dense<0.000000e+00> : vector<8x128xf32>
    %145 = tpu.matmul %142, %144, %cst_85 {dimension_numbers = #tpu.dot_dimension_numbers<[1], [0], [0], [1], [0, 0, 1, 1], [], []>} : vector<8x32xbf16>, vector<32x128xbf16>, vector<8x128xf32> -> vector<8x128xf32>
    %c0_86 = arith.constant 0 : index
    %c0_87 = arith.constant 0 : index
    %c0_88 = arith.constant 0 : index
    %146 = vector.load %arg12[%c0_86, %c0_87, %c0_88] : memref<2x1x128xf32, #tpu.memory_space<vmem>>, vector<1x1x128xf32>
    %147 = vector.shape_cast %146 : vector<1x1x128xf32> to vector<1x128xf32>
    %148 = vector.broadcast %147 : vector<1x128xf32> to vector<8x128xf32>
    %149 = arith.addf %145, %148 : vector<8x128xf32>
    %cst_89 = arith.constant 0.000000e+00 : f32
    %150 = vector.broadcast %cst_89 : f32 to vector<8x128xf32>
    %151 = arith.maximumf %149, %150 : vector<8x128xf32>
    %152 = arith.truncf %151 : vector<8x128xf32> to vector<8x128xbf16>
    %c0_90 = arith.constant 0 : index
    %c0_91 = arith.constant 0 : index
    %c0_92 = arith.constant 0 : index
    %153 = vector.load %arg13[%c0_90, %c0_91, %c0_92] : memref<2x128x32xbf16, #tpu.memory_space<vmem>>, vector<1x128x32xbf16>
    %154 = vector.shape_cast %153 : vector<1x128x32xbf16> to vector<128x32xbf16>
    %cst_93 = arith.constant dense<0.000000e+00> : vector<8x32xf32>
    %155 = tpu.matmul %152, %154, %cst_93 {dimension_numbers = #tpu.dot_dimension_numbers<[1], [0], [0], [1], [0, 0, 1, 1], [], []>} : vector<8x128xbf16>, vector<128x32xbf16>, vector<8x32xf32> -> vector<8x32xf32>
    %c0_94 = arith.constant 0 : index
    %c0_95 = arith.constant 0 : index
    %c0_96 = arith.constant 0 : index
    %156 = vector.load %arg14[%c0_94, %c0_95, %c0_96] : memref<2x1x32xf32, #tpu.memory_space<vmem>>, vector<1x1x32xf32>
    %157 = vector.shape_cast %156 : vector<1x1x32xf32> to vector<1x32xf32>
    %158 = vector.broadcast %157 : vector<1x32xf32> to vector<8x32xf32>
    %159 = arith.addf %155, %158 : vector<8x32xf32>
    %160 = arith.addf %159, %141 : vector<8x32xf32>
    %c0_97 = arith.constant 0 : index
    %c2 = arith.constant 2 : index
    %c0_98 = arith.constant 0 : index
    %c0_99 = arith.constant 0 : index
    %161 = vector.load %arg15[%c0_97, %c2, %c0_98, %c0_99] : memref<2x3x1x32xf32, #tpu.memory_space<vmem>>, vector<1x1x1x32xf32>
    %162 = vector.shape_cast %161 : vector<1x1x1x32xf32> to vector<1x32xf32>
    %c0_100 = arith.constant 0 : index
    %c2_101 = arith.constant 2 : index
    %c0_102 = arith.constant 0 : index
    %c0_103 = arith.constant 0 : index
    %163 = vector.load %arg16[%c0_100, %c2_101, %c0_102, %c0_103] : memref<2x3x1x32xf32, #tpu.memory_space<vmem>>, vector<1x1x1x32xf32>
    %164 = vector.shape_cast %163 : vector<1x1x1x32xf32> to vector<1x32xf32>
    %cst_104 = arith.constant dense<0.000000e+00> : vector<8xf32>
    %165 = vector.multi_reduction <add>, %160, %cst_104 [1] : vector<8x32xf32> to vector<8xf32>
    %166 = vector.shape_cast %165 : vector<8xf32> to vector<8x1xf32>
    %cst_105 = arith.constant 3.200000e+01 : f32
    %167 = vector.broadcast %cst_105 : f32 to vector<8x1xf32>
    %168 = arith.divf %166, %167 : vector<8x1xf32>
    %169 = vector.broadcast %168 : vector<8x1xf32> to vector<8x32xf32>
    %170 = arith.subf %160, %169 : vector<8x32xf32>
    %171 = arith.mulf %170, %170 : vector<8x32xf32>
    %cst_106 = arith.constant dense<0.000000e+00> : vector<8xf32>
    %172 = vector.multi_reduction <add>, %171, %cst_106 [1] : vector<8x32xf32> to vector<8xf32>
    %173 = vector.shape_cast %172 : vector<8xf32> to vector<8x1xf32>
    %cst_107 = arith.constant 3.200000e+01 : f32
    %174 = vector.broadcast %cst_107 : f32 to vector<8x1xf32>
    %175 = arith.divf %173, %174 : vector<8x1xf32>
    %176 = vector.broadcast %168 : vector<8x1xf32> to vector<8x32xf32>
    %177 = arith.subf %160, %176 : vector<8x32xf32>
    %cst_108 = arith.constant 9.99999974E-6 : f32
    %178 = vector.broadcast %cst_108 : f32 to vector<8x1xf32>
    %179 = arith.addf %175, %178 : vector<8x1xf32>
    %180 = math.rsqrt %179 : vector<8x1xf32>
    %181 = vector.broadcast %180 : vector<8x1xf32> to vector<8x32xf32>
    %182 = arith.mulf %177, %181 : vector<8x32xf32>
    %183 = vector.broadcast %162 : vector<1x32xf32> to vector<8x32xf32>
    %184 = arith.mulf %182, %183 : vector<8x32xf32>
    %185 = vector.broadcast %164 : vector<1x32xf32> to vector<8x32xf32>
    %186 = arith.addf %184, %185 : vector<8x32xf32>
    %187 = arith.truncf %186 : vector<8x32xf32> to vector<8x32xbf16>
    %188 = vector.shape_cast %187 : vector<8x32xbf16> to vector<1x8x32xbf16>
    %189 = vector.shape_cast %188 : vector<1x8x32xbf16> to vector<1x8x32xbf16>
    %190 = vector.broadcast %189 : vector<1x8x32xbf16> to vector<4x8x32xbf16>
    %c1_109 = arith.constant 1 : index
    %c0_110 = arith.constant 0 : index
    %c0_111 = arith.constant 0 : index
    %c0_112 = arith.constant 0 : index
    %191 = vector.load %arg3[%c1_109, %c0_110, %c0_111, %c0_112] : memref<2x4x32x8xbf16, #tpu.memory_space<vmem>>, vector<1x4x32x8xbf16>
    %192 = vector.shape_cast %191 : vector<1x4x32x8xbf16> to vector<4x32x8xbf16>
    %c1_113 = arith.constant 1 : index
    %c0_114 = arith.constant 0 : index
    %c0_115 = arith.constant 0 : index
    %c0_116 = arith.constant 0 : index
    %193 = vector.load %arg4[%c1_113, %c0_114, %c0_115, %c0_116] : memref<2x4x32x8xbf16, #tpu.memory_space<vmem>>, vector<1x4x32x8xbf16>
    %194 = vector.shape_cast %193 : vector<1x4x32x8xbf16> to vector<4x32x8xbf16>
    %c1_117 = arith.constant 1 : index
    %c0_118 = arith.constant 0 : index
    %c0_119 = arith.constant 0 : index
    %c0_120 = arith.constant 0 : index
    %195 = vector.load %arg5[%c1_117, %c0_118, %c0_119, %c0_120] : memref<2x4x32x8xbf16, #tpu.memory_space<vmem>>, vector<1x4x32x8xbf16>
    %196 = vector.shape_cast %195 : vector<1x4x32x8xbf16> to vector<4x32x8xbf16>
    %c1_121 = arith.constant 1 : index
    %c0_122 = arith.constant 0 : index
    %c0_123 = arith.constant 0 : index
    %c0_124 = arith.constant 0 : index
    %197 = vector.load %arg6[%c1_121, %c0_122, %c0_123, %c0_124] : memref<2x4x8x32xbf16, #tpu.memory_space<vmem>>, vector<1x4x8x32xbf16>
    %198 = vector.shape_cast %197 : vector<1x4x8x32xbf16> to vector<4x8x32xbf16>
    "tpu.trace_start"() <{level = 10 : i32, message = "hse,hed->hsd"}> : () -> ()
    %cst_125 = arith.constant dense<0.000000e+00> : vector<4x8x8xf32>
    %199 = tpu.matmul %190, %192, %cst_125 {dimension_numbers = #tpu.dot_dimension_numbers<[2], [1], [1], [2], [0, 0, 0, 1, 1, 2], [0], [0]>} : vector<4x8x32xbf16>, vector<4x32x8xbf16>, vector<4x8x8xf32> -> vector<4x8x8xf32>
    %cst_126 = arith.constant dense<0.000000e+00> : vector<4x8x8xf32>
    %200 = tpu.matmul %190, %194, %cst_126 {dimension_numbers = #tpu.dot_dimension_numbers<[2], [1], [1], [2], [0, 0, 0, 1, 1, 2], [0], [0]>} : vector<4x8x32xbf16>, vector<4x32x8xbf16>, vector<4x8x8xf32> -> vector<4x8x8xf32>
    %cst_127 = arith.constant dense<0.000000e+00> : vector<4x8x8xf32>
    %201 = tpu.matmul %190, %196, %cst_127 {dimension_numbers = #tpu.dot_dimension_numbers<[2], [1], [1], [2], [0, 0, 0, 1, 1, 2], [0], [0]>} : vector<4x8x32xbf16>, vector<4x32x8xbf16>, vector<4x8x8xf32> -> vector<4x8x8xf32>
    "tpu.trace_stop"() : () -> ()
    %202 = arith.truncf %199 : vector<4x8x8xf32> to vector<4x8x8xbf16>
    %203 = arith.truncf %200 : vector<4x8x8xf32> to vector<4x8x8xbf16>
    "tpu.trace_start"() <{level = 10 : i32, message = "hqd,hkd->hqk"}> : () -> ()
    %cst_128 = arith.constant dense<0.000000e+00> : vector<4x8x8xf32>
    %204 = tpu.matmul %202, %203, %cst_128 {dimension_numbers = #tpu.dot_dimension_numbers<[2], [2], [1], [1], [0, 0, 0, 1, 1, 1], [0], [0]>} : vector<4x8x8xbf16>, vector<4x8x8xbf16>, vector<4x8x8xf32> -> vector<4x8x8xf32>
    %cst_129 = arith.constant -1.000000e+20 : f32
    "tpu.trace_stop"() : () -> ()
    %205 = vector.shape_cast %6 : vector<1x8x8xi1> to vector<1x8x8xi1>
    %206 = vector.broadcast %205 : vector<1x8x8xi1> to vector<4x8x8xi1>
    %207 = vector.broadcast %cst_129 : f32 to vector<4x8x8xf32>
    %208 = arith.select %206, %204, %207 : vector<4x8x8xi1>, vector<4x8x8xf32>
    %cst_130 = arith.constant 0.176776692 : f32
    %209 = vector.broadcast %cst_130 : f32 to vector<4x8x8xf32>
    %210 = arith.mulf %208, %209 : vector<4x8x8xf32>
    %cst_131 = arith.constant dense<0xFF800000> : vector<4x8xf32>
    %211 = vector.multi_reduction <maximumf>, %210, %cst_131 [2] : vector<4x8x8xf32> to vector<4x8xf32>
    %212 = vector.shape_cast %211 : vector<4x8xf32> to vector<4x8x1xf32>
    %213 = vector.broadcast %212 : vector<4x8x1xf32> to vector<4x8x8xf32>
    %214 = arith.subf %210, %213 : vector<4x8x8xf32>
    %215 = math.exp %214 : vector<4x8x8xf32>
    %cst_132 = arith.constant dense<0.000000e+00> : vector<4x8xf32>
    %216 = vector.multi_reduction <add>, %215, %cst_132 [2] : vector<4x8x8xf32> to vector<4x8xf32>
    %217 = vector.shape_cast %216 : vector<4x8xf32> to vector<4x8x1xf32>
    %218 = tpu.reciprocal %217 {approx = true} : vector<4x8x1xf32> -> vector<4x8x1xf32>
    %219 = vector.broadcast %218 : vector<4x8x1xf32> to vector<4x8x8xf32>
    %220 = arith.mulf %215, %219 : vector<4x8x8xf32>
    %221 = arith.truncf %220 : vector<4x8x8xf32> to vector<4x8x8xbf16>
    %222 = arith.truncf %201 : vector<4x8x8xf32> to vector<4x8x8xbf16>
    "tpu.trace_start"() <{level = 10 : i32, message = "hqk,hkd->hqd"}> : () -> ()
    %cst_133 = arith.constant dense<0.000000e+00> : vector<4x8x8xf32>
    %223 = tpu.matmul %221, %222, %cst_133 {dimension_numbers = #tpu.dot_dimension_numbers<[2], [1], [1], [2], [0, 0, 0, 1, 1, 2], [0], [0]>} : vector<4x8x8xbf16>, vector<4x8x8xbf16>, vector<4x8x8xf32> -> vector<4x8x8xf32>
    "tpu.trace_stop"() : () -> ()
    %224 = arith.truncf %223 : vector<4x8x8xf32> to vector<4x8x8xbf16>
    "tpu.trace_start"() <{level = 10 : i32, message = "hqd,hde->hqe"}> : () -> ()
    %cst_134 = arith.constant dense<0.000000e+00> : vector<4x8x32xf32>
    %225 = tpu.matmul %224, %198, %cst_134 {dimension_numbers = #tpu.dot_dimension_numbers<[2], [1], [1], [2], [0, 0, 0, 1, 1, 2], [0], [0]>} : vector<4x8x8xbf16>, vector<4x8x32xbf16>, vector<4x8x32xf32> -> vector<4x8x32xf32>
    "tpu.trace_stop"() : () -> ()
    %cst_135 = arith.constant dense<0.000000e+00> : vector<8x32xf32>
    %226 = vector.multi_reduction <add>, %225, %cst_135 [0] : vector<4x8x32xf32> to vector<8x32xf32>
    %227 = arith.addf %226, %186 : vector<8x32xf32>
    %c1_136 = arith.constant 1 : index
    %c0_137 = arith.constant 0 : index
    %c0_138 = arith.constant 0 : index
    %c0_139 = arith.constant 0 : index
    %228 = vector.load %arg15[%c1_136, %c0_137, %c0_138, %c0_139] : memref<2x3x1x32xf32, #tpu.memory_space<vmem>>, vector<1x1x1x32xf32>
    %229 = vector.shape_cast %228 : vector<1x1x1x32xf32> to vector<1x32xf32>
    %c1_140 = arith.constant 1 : index
    %c0_141 = arith.constant 0 : index
    %c0_142 = arith.constant 0 : index
    %c0_143 = arith.constant 0 : index
    %230 = vector.load %arg16[%c1_140, %c0_141, %c0_142, %c0_143] : memref<2x3x1x32xf32, #tpu.memory_space<vmem>>, vector<1x1x1x32xf32>
    %231 = vector.shape_cast %230 : vector<1x1x1x32xf32> to vector<1x32xf32>
    %cst_144 = arith.constant dense<0.000000e+00> : vector<8xf32>
    %232 = vector.multi_reduction <add>, %227, %cst_144 [1] : vector<8x32xf32> to vector<8xf32>
    %233 = vector.shape_cast %232 : vector<8xf32> to vector<8x1xf32>
    %cst_145 = arith.constant 3.200000e+01 : f32
    %234 = vector.broadcast %cst_145 : f32 to vector<8x1xf32>
    %235 = arith.divf %233, %234 : vector<8x1xf32>
    %236 = vector.broadcast %235 : vector<8x1xf32> to vector<8x32xf32>
    %237 = arith.subf %227, %236 : vector<8x32xf32>
    %238 = arith.mulf %237, %237 : vector<8x32xf32>
    %cst_146 = arith.constant dense<0.000000e+00> : vector<8xf32>
    %239 = vector.multi_reduction <add>, %238, %cst_146 [1] : vector<8x32xf32> to vector<8xf32>
    %240 = vector.shape_cast %239 : vector<8xf32> to vector<8x1xf32>
    %cst_147 = arith.constant 3.200000e+01 : f32
    %241 = vector.broadcast %cst_147 : f32 to vector<8x1xf32>
    %242 = arith.divf %240, %241 : vector<8x1xf32>
    %243 = vector.broadcast %235 : vector<8x1xf32> to vector<8x32xf32>
    %244 = arith.subf %227, %243 : vector<8x32xf32>
    %cst_148 = arith.constant 9.99999974E-6 : f32
    %245 = vector.broadcast %cst_148 : f32 to vector<8x1xf32>
    %246 = arith.addf %242, %245 : vector<8x1xf32>
    %247 = math.rsqrt %246 : vector<8x1xf32>
    %248 = vector.broadcast %247 : vector<8x1xf32> to vector<8x32xf32>
    %249 = arith.mulf %244, %248 : vector<8x32xf32>
    %250 = vector.broadcast %229 : vector<1x32xf32> to vector<8x32xf32>
    %251 = arith.mulf %249, %250 : vector<8x32xf32>
    %252 = vector.broadcast %231 : vector<1x32xf32> to vector<8x32xf32>
    %253 = arith.addf %251, %252 : vector<8x32xf32>
    %254 = arith.truncf %253 : vector<8x32xf32> to vector<8x32xbf16>
    %255 = vector.shape_cast %254 : vector<8x32xbf16> to vector<1x8x32xbf16>
    %256 = vector.shape_cast %255 : vector<1x8x32xbf16> to vector<1x8x32xbf16>
    %257 = vector.broadcast %256 : vector<1x8x32xbf16> to vector<4x8x32xbf16>
    %c1_149 = arith.constant 1 : index
    %c0_150 = arith.constant 0 : index
    %c0_151 = arith.constant 0 : index
    %c0_152 = arith.constant 0 : index
    %258 = vector.load %arg7[%c1_149, %c0_150, %c0_151, %c0_152] : memref<2x4x32x8xbf16, #tpu.memory_space<vmem>>, vector<1x4x32x8xbf16>
    %259 = vector.shape_cast %258 : vector<1x4x32x8xbf16> to vector<4x32x8xbf16>
    %c1_153 = arith.constant 1 : index
    %c0_154 = arith.constant 0 : index
    %c0_155 = arith.constant 0 : index
    %c0_156 = arith.constant 0 : index
    %260 = vector.load %arg8[%c1_153, %c0_154, %c0_155, %c0_156] : memref<2x4x32x8xbf16, #tpu.memory_space<vmem>>, vector<1x4x32x8xbf16>
    %261 = vector.shape_cast %260 : vector<1x4x32x8xbf16> to vector<4x32x8xbf16>
    %c1_157 = arith.constant 1 : index
    %c0_158 = arith.constant 0 : index
    %c0_159 = arith.constant 0 : index
    %c0_160 = arith.constant 0 : index
    %262 = vector.load %arg9[%c1_157, %c0_158, %c0_159, %c0_160] : memref<2x4x32x8xbf16, #tpu.memory_space<vmem>>, vector<1x4x32x8xbf16>
    %263 = vector.shape_cast %262 : vector<1x4x32x8xbf16> to vector<4x32x8xbf16>
    %c1_161 = arith.constant 1 : index
    %c0_162 = arith.constant 0 : index
    %c0_163 = arith.constant 0 : index
    %c0_164 = arith.constant 0 : index
    %264 = vector.load %arg10[%c1_161, %c0_162, %c0_163, %c0_164] : memref<2x4x8x32xbf16, #tpu.memory_space<vmem>>, vector<1x4x8x32xbf16>
    %265 = vector.shape_cast %264 : vector<1x4x8x32xbf16> to vector<4x8x32xbf16>
    "tpu.trace_start"() <{level = 10 : i32, message = "hse,hed->hsd"}> : () -> ()
    %cst_165 = arith.constant dense<0.000000e+00> : vector<4x8x8xf32>
    %266 = tpu.matmul %257, %259, %cst_165 {dimension_numbers = #tpu.dot_dimension_numbers<[2], [1], [1], [2], [0, 0, 0, 1, 1, 2], [0], [0]>} : vector<4x8x32xbf16>, vector<4x32x8xbf16>, vector<4x8x8xf32> -> vector<4x8x8xf32>
    %cst_166 = arith.constant dense<0.000000e+00> : vector<4x8x8xf32>
    %267 = tpu.matmul %11, %261, %cst_166 {dimension_numbers = #tpu.dot_dimension_numbers<[2], [1], [1], [2], [0, 0, 0, 1, 1, 2], [0], [0]>} : vector<4x8x32xbf16>, vector<4x32x8xbf16>, vector<4x8x8xf32> -> vector<4x8x8xf32>
    %cst_167 = arith.constant dense<0.000000e+00> : vector<4x8x8xf32>
    %268 = tpu.matmul %11, %263, %cst_167 {dimension_numbers = #tpu.dot_dimension_numbers<[2], [1], [1], [2], [0, 0, 0, 1, 1, 2], [0], [0]>} : vector<4x8x32xbf16>, vector<4x32x8xbf16>, vector<4x8x8xf32> -> vector<4x8x8xf32>
    "tpu.trace_stop"() : () -> ()
    %269 = arith.truncf %266 : vector<4x8x8xf32> to vector<4x8x8xbf16>
    %270 = arith.truncf %267 : vector<4x8x8xf32> to vector<4x8x8xbf16>
    "tpu.trace_start"() <{level = 10 : i32, message = "hqd,hkd->hqk"}> : () -> ()
    %cst_168 = arith.constant dense<0.000000e+00> : vector<4x8x8xf32>
    %271 = tpu.matmul %269, %270, %cst_168 {dimension_numbers = #tpu.dot_dimension_numbers<[2], [2], [1], [1], [0, 0, 0, 1, 1, 1], [0], [0]>} : vector<4x8x8xbf16>, vector<4x8x8xbf16>, vector<4x8x8xf32> -> vector<4x8x8xf32>
    "tpu.trace_stop"() : () -> ()
    %cst_169 = arith.constant 0.176776692 : f32
    %272 = vector.broadcast %cst_169 : f32 to vector<4x8x8xf32>
    %273 = arith.mulf %271, %272 : vector<4x8x8xf32>
    %cst_170 = arith.constant dense<0xFF800000> : vector<4x8xf32>
    %274 = vector.multi_reduction <maximumf>, %273, %cst_170 [2] : vector<4x8x8xf32> to vector<4x8xf32>
    %275 = vector.shape_cast %274 : vector<4x8xf32> to vector<4x8x1xf32>
    %276 = vector.broadcast %275 : vector<4x8x1xf32> to vector<4x8x8xf32>
    %277 = arith.subf %273, %276 : vector<4x8x8xf32>
    %278 = math.exp %277 : vector<4x8x8xf32>
    %cst_171 = arith.constant dense<0.000000e+00> : vector<4x8xf32>
    %279 = vector.multi_reduction <add>, %278, %cst_171 [2] : vector<4x8x8xf32> to vector<4x8xf32>
    %280 = vector.shape_cast %279 : vector<4x8xf32> to vector<4x8x1xf32>
    %281 = tpu.reciprocal %280 {approx = true} : vector<4x8x1xf32> -> vector<4x8x1xf32>
    %282 = vector.broadcast %281 : vector<4x8x1xf32> to vector<4x8x8xf32>
    %283 = arith.mulf %278, %282 : vector<4x8x8xf32>
    %284 = arith.truncf %283 : vector<4x8x8xf32> to vector<4x8x8xbf16>
    %285 = arith.truncf %268 : vector<4x8x8xf32> to vector<4x8x8xbf16>
    "tpu.trace_start"() <{level = 10 : i32, message = "hqk,hkd->hqd"}> : () -> ()
    %cst_172 = arith.constant dense<0.000000e+00> : vector<4x8x8xf32>
    %286 = tpu.matmul %284, %285, %cst_172 {dimension_numbers = #tpu.dot_dimension_numbers<[2], [1], [1], [2], [0, 0, 0, 1, 1, 2], [0], [0]>} : vector<4x8x8xbf16>, vector<4x8x8xbf16>, vector<4x8x8xf32> -> vector<4x8x8xf32>
    "tpu.trace_stop"() : () -> ()
    %287 = arith.truncf %286 : vector<4x8x8xf32> to vector<4x8x8xbf16>
    "tpu.trace_start"() <{level = 10 : i32, message = "hqd,hde->hqe"}> : () -> ()
    %cst_173 = arith.constant dense<0.000000e+00> : vector<4x8x32xf32>
    %288 = tpu.matmul %287, %265, %cst_173 {dimension_numbers = #tpu.dot_dimension_numbers<[2], [1], [1], [2], [0, 0, 0, 1, 1, 2], [0], [0]>} : vector<4x8x8xbf16>, vector<4x8x32xbf16>, vector<4x8x32xf32> -> vector<4x8x32xf32>
    "tpu.trace_stop"() : () -> ()
    %cst_174 = arith.constant dense<0.000000e+00> : vector<8x32xf32>
    %289 = vector.multi_reduction <add>, %288, %cst_174 [0] : vector<4x8x32xf32> to vector<8x32xf32>
    %290 = arith.addf %289, %253 : vector<8x32xf32>
    %c1_175 = arith.constant 1 : index
    %c1_176 = arith.constant 1 : index
    %c0_177 = arith.constant 0 : index
    %c0_178 = arith.constant 0 : index
    %291 = vector.load %arg15[%c1_175, %c1_176, %c0_177, %c0_178] : memref<2x3x1x32xf32, #tpu.memory_space<vmem>>, vector<1x1x1x32xf32>
    %292 = vector.shape_cast %291 : vector<1x1x1x32xf32> to vector<1x32xf32>
    %c1_179 = arith.constant 1 : index
    %c1_180 = arith.constant 1 : index
    %c0_181 = arith.constant 0 : index
    %c0_182 = arith.constant 0 : index
    %293 = vector.load %arg16[%c1_179, %c1_180, %c0_181, %c0_182] : memref<2x3x1x32xf32, #tpu.memory_space<vmem>>, vector<1x1x1x32xf32>
    %294 = vector.shape_cast %293 : vector<1x1x1x32xf32> to vector<1x32xf32>
    %cst_183 = arith.constant dense<0.000000e+00> : vector<8xf32>
    %295 = vector.multi_reduction <add>, %290, %cst_183 [1] : vector<8x32xf32> to vector<8xf32>
    %296 = vector.shape_cast %295 : vector<8xf32> to vector<8x1xf32>
    %cst_184 = arith.constant 3.200000e+01 : f32
    %297 = vector.broadcast %cst_184 : f32 to vector<8x1xf32>
    %298 = arith.divf %296, %297 : vector<8x1xf32>
    %299 = vector.broadcast %298 : vector<8x1xf32> to vector<8x32xf32>
    %300 = arith.subf %290, %299 : vector<8x32xf32>
    %301 = arith.mulf %300, %300 : vector<8x32xf32>
    %cst_185 = arith.constant dense<0.000000e+00> : vector<8xf32>
    %302 = vector.multi_reduction <add>, %301, %cst_185 [1] : vector<8x32xf32> to vector<8xf32>
    %303 = vector.shape_cast %302 : vector<8xf32> to vector<8x1xf32>
    %cst_186 = arith.constant 3.200000e+01 : f32
    %304 = vector.broadcast %cst_186 : f32 to vector<8x1xf32>
    %305 = arith.divf %303, %304 : vector<8x1xf32>
    %306 = vector.broadcast %298 : vector<8x1xf32> to vector<8x32xf32>
    %307 = arith.subf %290, %306 : vector<8x32xf32>
    %cst_187 = arith.constant 9.99999974E-6 : f32
    %308 = vector.broadcast %cst_187 : f32 to vector<8x1xf32>
    %309 = arith.addf %305, %308 : vector<8x1xf32>
    %310 = math.rsqrt %309 : vector<8x1xf32>
    %311 = vector.broadcast %310 : vector<8x1xf32> to vector<8x32xf32>
    %312 = arith.mulf %307, %311 : vector<8x32xf32>
    %313 = vector.broadcast %292 : vector<1x32xf32> to vector<8x32xf32>
    %314 = arith.mulf %312, %313 : vector<8x32xf32>
    %315 = vector.broadcast %294 : vector<1x32xf32> to vector<8x32xf32>
    %316 = arith.addf %314, %315 : vector<8x32xf32>
    %317 = arith.truncf %316 : vector<8x32xf32> to vector<8x32xbf16>
    %c1_188 = arith.constant 1 : index
    %c0_189 = arith.constant 0 : index
    %c0_190 = arith.constant 0 : index
    %318 = vector.load %arg11[%c1_188, %c0_189, %c0_190] : memref<2x32x128xbf16, #tpu.memory_space<vmem>>, vector<1x32x128xbf16>
    %319 = vector.shape_cast %318 : vector<1x32x128xbf16> to vector<32x128xbf16>
    %cst_191 = arith.constant dense<0.000000e+00> : vector<8x128xf32>
    %320 = tpu.matmul %317, %319, %cst_191 {dimension_numbers = #tpu.dot_dimension_numbers<[1], [0], [0], [1], [0, 0, 1, 1], [], []>} : vector<8x32xbf16>, vector<32x128xbf16>, vector<8x128xf32> -> vector<8x128xf32>
    %c1_192 = arith.constant 1 : index
    %c0_193 = arith.constant 0 : index
    %c0_194 = arith.constant 0 : index
    %321 = vector.load %arg12[%c1_192, %c0_193, %c0_194] : memref<2x1x128xf32, #tpu.memory_space<vmem>>, vector<1x1x128xf32>
    %322 = vector.shape_cast %321 : vector<1x1x128xf32> to vector<1x128xf32>
    %323 = vector.broadcast %322 : vector<1x128xf32> to vector<8x128xf32>
    %324 = arith.addf %320, %323 : vector<8x128xf32>
    %cst_195 = arith.constant 0.000000e+00 : f32
    %325 = vector.broadcast %cst_195 : f32 to vector<8x128xf32>
    %326 = arith.maximumf %324, %325 : vector<8x128xf32>
    %327 = arith.truncf %326 : vector<8x128xf32> to vector<8x128xbf16>
    %c1_196 = arith.constant 1 : index
    %c0_197 = arith.constant 0 : index
    %c0_198 = arith.constant 0 : index
    %328 = vector.load %arg13[%c1_196, %c0_197, %c0_198] : memref<2x128x32xbf16, #tpu.memory_space<vmem>>, vector<1x128x32xbf16>
    %329 = vector.shape_cast %328 : vector<1x128x32xbf16> to vector<128x32xbf16>
    %cst_199 = arith.constant dense<0.000000e+00> : vector<8x32xf32>
    %330 = tpu.matmul %327, %329, %cst_199 {dimension_numbers = #tpu.dot_dimension_numbers<[1], [0], [0], [1], [0, 0, 1, 1], [], []>} : vector<8x128xbf16>, vector<128x32xbf16>, vector<8x32xf32> -> vector<8x32xf32>
    %c1_200 = arith.constant 1 : index
    %c0_201 = arith.constant 0 : index
    %c0_202 = arith.constant 0 : index
    %331 = vector.load %arg14[%c1_200, %c0_201, %c0_202] : memref<2x1x32xf32, #tpu.memory_space<vmem>>, vector<1x1x32xf32>
    %332 = vector.shape_cast %331 : vector<1x1x32xf32> to vector<1x32xf32>
    %333 = vector.broadcast %332 : vector<1x32xf32> to vector<8x32xf32>
    %334 = arith.addf %330, %333 : vector<8x32xf32>
    %335 = arith.addf %334, %316 : vector<8x32xf32>
    %c1_203 = arith.constant 1 : index
    %c2_204 = arith.constant 2 : index
    %c0_205 = arith.constant 0 : index
    %c0_206 = arith.constant 0 : index
    %336 = vector.load %arg15[%c1_203, %c2_204, %c0_205, %c0_206] : memref<2x3x1x32xf32, #tpu.memory_space<vmem>>, vector<1x1x1x32xf32>
    %337 = vector.shape_cast %336 : vector<1x1x1x32xf32> to vector<1x32xf32>
    %c1_207 = arith.constant 1 : index
    %c2_208 = arith.constant 2 : index
    %c0_209 = arith.constant 0 : index
    %c0_210 = arith.constant 0 : index
    %338 = vector.load %arg16[%c1_207, %c2_208, %c0_209, %c0_210] : memref<2x3x1x32xf32, #tpu.memory_space<vmem>>, vector<1x1x1x32xf32>
    %339 = vector.shape_cast %338 : vector<1x1x1x32xf32> to vector<1x32xf32>
    %cst_211 = arith.constant dense<0.000000e+00> : vector<8xf32>
    %340 = vector.multi_reduction <add>, %335, %cst_211 [1] : vector<8x32xf32> to vector<8xf32>
    %341 = vector.shape_cast %340 : vector<8xf32> to vector<8x1xf32>
    %cst_212 = arith.constant 3.200000e+01 : f32
    %342 = vector.broadcast %cst_212 : f32 to vector<8x1xf32>
    %343 = arith.divf %341, %342 : vector<8x1xf32>
    %344 = vector.broadcast %343 : vector<8x1xf32> to vector<8x32xf32>
    %345 = arith.subf %335, %344 : vector<8x32xf32>
    %346 = arith.mulf %345, %345 : vector<8x32xf32>
    %cst_213 = arith.constant dense<0.000000e+00> : vector<8xf32>
    %347 = vector.multi_reduction <add>, %346, %cst_213 [1] : vector<8x32xf32> to vector<8xf32>
    %348 = vector.shape_cast %347 : vector<8xf32> to vector<8x1xf32>
    %cst_214 = arith.constant 3.200000e+01 : f32
    %349 = vector.broadcast %cst_214 : f32 to vector<8x1xf32>
    %350 = arith.divf %348, %349 : vector<8x1xf32>
    %351 = vector.broadcast %343 : vector<8x1xf32> to vector<8x32xf32>
    %352 = arith.subf %335, %351 : vector<8x32xf32>
    %cst_215 = arith.constant 9.99999974E-6 : f32
    %353 = vector.broadcast %cst_215 : f32 to vector<8x1xf32>
    %354 = arith.addf %350, %353 : vector<8x1xf32>
    %355 = math.rsqrt %354 : vector<8x1xf32>
    %356 = vector.broadcast %355 : vector<8x1xf32> to vector<8x32xf32>
    %357 = arith.mulf %352, %356 : vector<8x32xf32>
    %358 = vector.broadcast %337 : vector<1x32xf32> to vector<8x32xf32>
    %359 = arith.mulf %357, %358 : vector<8x32xf32>
    %360 = vector.broadcast %339 : vector<1x32xf32> to vector<8x32xf32>
    %361 = arith.addf %359, %360 : vector<8x32xf32>
    %362 = arith.truncf %361 : vector<8x32xf32> to vector<8x32xbf16>
    %c0_216 = arith.constant 0 : index
    %c0_217 = arith.constant 0 : index
    %363 = vector.load %arg17[%c0_216, %c0_217] : memref<32x128xbf16, #tpu.memory_space<vmem>>, vector<32x128xbf16>
    %cst_218 = arith.constant dense<0.000000e+00> : vector<8x128xf32>
    %364 = tpu.matmul %362, %363, %cst_218 {dimension_numbers = #tpu.dot_dimension_numbers<[1], [0], [0], [1], [0, 0, 1, 1], [], []>} : vector<8x32xbf16>, vector<32x128xbf16>, vector<8x128xf32> -> vector<8x128xf32>
    %c0_219 = arith.constant 0 : index
    %c0_220 = arith.constant 0 : index
    %365 = vector.load %arg18[%c0_219, %c0_220] : memref<1x128xf32, #tpu.memory_space<vmem>>, vector<1x128xf32>
    %366 = vector.broadcast %365 : vector<1x128xf32> to vector<8x128xf32>
    %367 = arith.addf %364, %366 : vector<8x128xf32>
    %c0_221 = arith.constant 0 : index
    %c0_222 = arith.constant 0 : index
    %c0_223 = arith.constant 0 : index
    %368 = vector.load %arg19[%c0_221, %c0_222, %c0_223] : memref<1x8x128xf32, #tpu.memory_space<vmem>>, vector<1x8x128xf32>
    %369 = vector.shape_cast %368 : vector<1x8x128xf32> to vector<8x128xf32>
    %370 = vector.shape_cast %367 : vector<8x128xf32> to vector<1x8x128xf32>
    tpu.vector_store %arg19[%c0_221, %c0_222, %c0_223], %370 {strides = array<i32>} : memref<1x8x128xf32, #tpu.memory_space<vmem>>, vector<1x8x128xf32>,
    return
  }
  func.func @transform_0(%arg0: i32) -> (i32, i32, i32) {
    %c0_i32 = arith.constant 0 : i32
    %c0_i32_0 = arith.constant 0 : i32
    %c0_i32_1 = arith.constant 0 : i32
    return %arg0, %c0_i32, %c0_i32_0 : i32, i32, i32
  }
  func.func @transform_1(%arg0: i32) -> (i32, i32, i32) {
    %c0_i32 = arith.constant 0 : i32
    %c0_i32_0 = arith.constant 0 : i32
    %c0_i32_1 = arith.constant 0 : i32
    return %arg0, %c0_i32, %c0_i32_0 : i32, i32, i32
  }
  func.func @transform_2(%arg0: i32) -> (i32, i32, i32, i32) {
    %c0_i32 = arith.constant 0 : i32
    %c0_i32_0 = arith.constant 0 : i32
    %c0_i32_1 = arith.constant 0 : i32
    %c0_i32_2 = arith.constant 0 : i32
    %c0_i32_3 = arith.constant 0 : i32
    return %c0_i32, %c0_i32_0, %c0_i32_1, %c0_i32_2 : i32, i32, i32, i32
  }
  func.func @transform_3(%arg0: i32) -> (i32, i32, i32, i32) {
    %c0_i32 = arith.constant 0 : i32
    %c0_i32_0 = arith.constant 0 : i32
    %c0_i32_1 = arith.constant 0 : i32
    %c0_i32_2 = arith.constant 0 : i32
    %c0_i32_3 = arith.constant 0 : i32
    return %c0_i32, %c0_i32_0, %c0_i32_1, %c0_i32_2 : i32, i32, i32, i32
  }
  func.func @transform_4(%arg0: i32) -> (i32, i32, i32, i32) {
    %c0_i32 = arith.constant 0 : i32
    %c0_i32_0 = arith.constant 0 : i32
    %c0_i32_1 = arith.constant 0 : i32
    %c0_i32_2 = arith.constant 0 : i32
    %c0_i32_3 = arith.constant 0 : i32
    return %c0_i32, %c0_i32_0, %c0_i32_1, %c0_i32_2 : i32, i32, i32, i32
  }
  func.func @transform_5(%arg0: i32) -> (i32, i32, i32, i32) {
    %c0_i32 = arith.constant 0 : i32
    %c0_i32_0 = arith.constant 0 : i32
    %c0_i32_1 = arith.constant 0 : i32
    %c0_i32_2 = arith.constant 0 : i32
    %c0_i32_3 = arith.constant 0 : i32
    return %c0_i32, %c0_i32_0, %c0_i32_1, %c0_i32_2 : i32, i32, i32, i32
  }
  func.func @transform_6(%arg0: i32) -> (i32, i32, i32, i32) {
    %c0_i32 = arith.constant 0 : i32
    %c0_i32_0 = arith.constant 0 : i32
    %c0_i32_1 = arith.constant 0 : i32
    %c0_i32_2 = arith.constant 0 : i32
    %c0_i32_3 = arith.constant 0 : i32
    return %c0_i32, %c0_i32_0, %c0_i32_1, %c0_i32_2 : i32, i32, i32, i32
  }
  func.func @transform_7(%arg0: i32) -> (i32, i32, i32, i32) {
    %c0_i32 = arith.constant 0 : i32
    %c0_i32_0 = arith.constant 0 : i32
    %c0_i32_1 = arith.constant 0 : i32
    %c0_i32_2 = arith.constant 0 : i32
    %c0_i32_3 = arith.constant 0 : i32
    return %c0_i32, %c0_i32_0, %c0_i32_1, %c0_i32_2 : i32, i32, i32, i32
  }
  func.func @transform_8(%arg0: i32) -> (i32, i32, i32, i32) {
    %c0_i32 = arith.constant 0 : i32
    %c0_i32_0 = arith.constant 0 : i32
    %c0_i32_1 = arith.constant 0 : i32
    %c0_i32_2 = arith.constant 0 : i32
    %c0_i32_3 = arith.constant 0 : i32
    return %c0_i32, %c0_i32_0, %c0_i32_1, %c0_i32_2 : i32, i32, i32, i32
  }
  func.func @transform_9(%arg0: i32) -> (i32, i32, i32, i32) {
    %c0_i32 = arith.constant 0 : i32
    %c0_i32_0 = arith.constant 0 : i32
    %c0_i32_1 = arith.constant 0 : i32
    %c0_i32_2 = arith.constant 0 : i32
    %c0_i32_3 = arith.constant 0 : i32
    return %c0_i32, %c0_i32_0, %c0_i32_1, %c0_i32_2 : i32, i32, i32, i32
  }
  func.func @transform_10(%arg0: i32) -> (i32, i32, i32) {
    %c0_i32 = arith.constant 0 : i32
    %c0_i32_0 = arith.constant 0 : i32
    %c0_i32_1 = arith.constant 0 : i32
    %c0_i32_2 = arith.constant 0 : i32
    return %c0_i32, %c0_i32_0, %c0_i32_1 : i32, i32, i32
  }
  func.func @transform_11(%arg0: i32) -> (i32, i32, i32) {
    %c0_i32 = arith.constant 0 : i32
    %c0_i32_0 = arith.constant 0 : i32
    %c0_i32_1 = arith.constant 0 : i32
    %c0_i32_2 = arith.constant 0 : i32
    return %c0_i32, %c0_i32_0, %c0_i32_1 : i32, i32, i32
  }
  func.func @transform_12(%arg0: i32) -> (i32, i32, i32) {
    %c0_i32 = arith.constant 0 : i32
    %c0_i32_0 = arith.constant 0 : i32
    %c0_i32_1 = arith.constant 0 : i32
    %c0_i32_2 = arith.constant 0 : i32
    return %c0_i32, %c0_i32_0, %c0_i32_1 : i32, i32, i32
  }
  func.func @transform_13(%arg0: i32) -> (i32, i32, i32) {
    %c0_i32 = arith.constant 0 : i32
    %c0_i32_0 = arith.constant 0 : i32
    %c0_i32_1 = arith.constant 0 : i32
    %c0_i32_2 = arith.constant 0 : i32
    return %c0_i32, %c0_i32_0, %c0_i32_1 : i32, i32, i32
  }
  func.func @transform_14(%arg0: i32) -> (i32, i32, i32, i32) {
    %c0_i32 = arith.constant 0 : i32
    %c0_i32_0 = arith.constant 0 : i32
    %c0_i32_1 = arith.constant 0 : i32
    %c0_i32_2 = arith.constant 0 : i32
    %c0_i32_3 = arith.constant 0 : i32
    return %c0_i32, %c0_i32_0, %c0_i32_1, %c0_i32_2 : i32, i32, i32, i32
  }
  func.func @transform_15(%arg0: i32) -> (i32, i32, i32, i32) {
    %c0_i32 = arith.constant 0 : i32
    %c0_i32_0 = arith.constant 0 : i32
    %c0_i32_1 = arith.constant 0 : i32
    %c0_i32_2 = arith.constant 0 : i32
    %c0_i32_3 = arith.constant 0 : i32
    return %c0_i32, %c0_i32_0, %c0_i32_1, %c0_i32_2 : i32, i32, i32, i32
  }
  func.func @transform_16(%arg0: i32) -> (i32, i32) {
    %c0_i32 = arith.constant 0 : i32
    %c0_i32_0 = arith.constant 0 : i32
    %c0_i32_1 = arith.constant 0 : i32
    return %c0_i32, %c0_i32_0 : i32, i32
  }
  func.func @transform_17(%arg0: i32) -> (i32, i32) {
    %c0_i32 = arith.constant 0 : i32
    %c0_i32_0 = arith.constant 0 : i32
    %c0_i32_1 = arith.constant 0 : i32
    return %c0_i32, %c0_i32_0 : i32, i32
  }
  func.func @transform_18(%arg0: i32) -> (i32, i32, i32) {
    %c0_i32 = arith.constant 0 : i32
    %c0_i32_0 = arith.constant 0 : i32
    %c0_i32_1 = arith.constant 0 : i32
    return %arg0, %c0_i32, %c0_i32_0 : i32, i32, i32
  }
}

</mosaic_0001>

<llo_original>
// kernel: decoder_forward.1
$region0: #{decoder_forward.1}
  #allocation0 [shape = 'u32[]', space=smem, size = 0x4, offset = 0x4, fixed_abs, tag = 'smem constant byte address 0x4 - core index']
  #allocation1 [shape = 'u32[72,128]{1,0:T(1,128)}', space=vmem, size = 0x9000, scoped, tag = 'internal scratch']
  %s0 = inlined_call_operand.vmem [shape: bf16[2,8,32], index: 0, kind: input, shape index: {}]
  %s1 = inlined_call_operand.vmem [shape: bf16[2,8,32], index: 1, kind: input, shape index: {}]
  %s2 = inlined_call_operand.vmem [shape: bf16[2,4,32,8], index: 2, kind: input, shape index: {}]
  %s3 = inlined_call_operand.vmem [shape: bf16[2,4,32,8], index: 3, kind: input, shape index: {}]
  %s4 = inlined_call_operand.vmem [shape: bf16[2,4,32,8], index: 4, kind: input, shape index: {}]
  %s5 = inlined_call_operand.vmem [shape: bf16[2,4,8,32], index: 5, kind: input, shape index: {}]
  %s6 = inlined_call_operand.vmem [shape: bf16[2,4,32,8], index: 6, kind: input, shape index: {}]
  %s7 = inlined_call_operand.vmem [shape: bf16[2,4,32,8], index: 7, kind: input, shape index: {}]
  %s8 = inlined_call_operand.vmem [shape: bf16[2,4,32,8], index: 8, kind: input, shape index: {}]
  %s9 = inlined_call_operand.vmem [shape: bf16[2,4,8,32], index: 9, kind: input, shape index: {}]
  %s10 = inlined_call_operand.vmem [shape: bf16[2,32,128], index: 10, kind: input, shape index: {}]
  %s11 = inlined_call_operand.vmem [shape: f32[2,1,128], index: 11, kind: input, shape index: {}]
  %s12 = inlined_call_operand.vmem [shape: bf16[2,128,32], index: 12, kind: input, shape index: {}]
  %s13 = inlined_call_operand.vmem [shape: f32[2,1,32], index: 13, kind: input, shape index: {}]
  %s14 = inlined_call_operand.vmem [shape: f32[2,3,1,32], index: 14, kind: input, shape index: {}]
  %s15 = inlined_call_operand.vmem [shape: f32[2,3,1,32], index: 15, kind: input, shape index: {}]
  %s16 = inlined_call_operand.vmem [shape: bf16[32,128], index: 16, kind: input, shape index: {}]
  %s17 = inlined_call_operand.vmem [shape: f32[1,128], index: 17, kind: input, shape index: {}]
  %s18 = inlined_call_operand.hbm [shape: f32[2,8,128], index: 18, kind: output, shape index: {}]
  %s19 = sld [smem:[#allocation0]]
  $region105: #{decoder_forward.1} parent=0
    _
  %s21 = ssub.s32 1, %s19
  %s22 = scalar_select 0, %s21, %s19
  $region1: #{decoder_forward.1} parent=0
    #allocation2 [shape = 'u8[8192]{0}', space=vmem, size = 0x2000, scoped, tag = 'output window, operand 0']
    #allocation3 [shape = 's32[2]{0}', space=sflag, size = 0x8, scoped, tag = 'scoped memory for decoder_forward.1']
    %23 = vsyncpa [#allocation3], 0
    %s24 = scalar_lea.sflag [#allocation3], 1
    %25 = vsyncpa %s24, 0
    loop: start=0, step=1, limit=4
    $region2: #{decoder_forward.1} parent=1 // loop_pre_header
      _
    $region3: #{decoder_forward.1} parent=1 // loop_header
      %s27 = sphi 0, %s31
      %p28 = scmp.ge.s32.totalorder %s27, 4
      %s37 = sphi 0, %s39
      %s40 = sphi 0, %s37
      %s41 = sphi 0, %s40
      %s57 = sphi 0, %s41
      %s63 = sphi 0, %s65
      %s66 = sphi 0, %s63
      %s67 = sphi 0, %s66
      %s83 = sphi 0, %s67
      %s87 = sphi 0, %s87
      %s89 = sphi 0, %s87
      %s90 = sphi 0, %s89
      %s104 = sphi 0, %s90
      %s108 = sphi 0, %s108
      %s110 = sphi 0, %s108
      %s111 = sphi 0, %s110
      %s125 = sphi 0, %s111
      %s129 = sphi 0, %s129
      %s131 = sphi 0, %s129
      %s132 = sphi 0, %s131
      %s146 = sphi 0, %s132
      %s150 = sphi 0, %s150
      %s152 = sphi 0, %s150
      %s153 = sphi 0, %s152
      %s167 = sphi 0, %s153
      %s171 = sphi 0, %s171
      %s173 = sphi 0, %s171
      %s174 = sphi 0, %s173
      %s188 = sphi 0, %s174
      %s192 = sphi 0, %s192
      %s194 = sphi 0, %s192
      %s195 = sphi 0, %s194
      %s209 = sphi 0, %s195
      %s213 = sphi 0, %s213
      %s215 = sphi 0, %s213
      %s216 = sphi 0, %s215
      %s230 = sphi 0, %s216
      %s234 = sphi 0, %s234
      %s236 = sphi 0, %s234
      %s237 = sphi 0, %s236
      %s251 = sphi 0, %s237
      %s255 = sphi 0, %s255
      %s257 = sphi 0, %s255
      %s258 = sphi 0, %s257
      %s272 = sphi 0, %s258
      %s276 = sphi 0, %s276
      %s278 = sphi 0, %s276
      %s279 = sphi 0, %s278
      %s293 = sphi 0, %s279
      %s297 = sphi 0, %s297
      %s299 = sphi 0, %s297
      %s300 = sphi 0, %s299
      %s314 = sphi 0, %s300
      %s318 = sphi 0, %s318
      %s320 = sphi 0, %s318
      %s321 = sphi 0, %s320
      %s335 = sphi 0, %s321
      %s339 = sphi 0, %s339
      %s341 = sphi 0, %s339
      %s342 = sphi 0, %s341
      %s356 = sphi 0, %s342
      %s360 = sphi 0, %s360
      %s362 = sphi 0, %s360
      %s363 = sphi 0, %s362
      %s377 = sphi 0, %s363
      %s381 = sphi 0, %s381
      %s383 = sphi 0, %s381
      %s384 = sphi 0, %s383
      %s398 = sphi 0, %s384
      %s402 = sphi 0, %s402
      %s404 = sphi 0, %s402
      %s405 = sphi 0, %s404
      %s419 = sphi 0, %s405
      %s425 = sphi 0, %s427
      %s428 = sphi 0, %s425
      %s429 = sphi 0, %s428
      %s445 = sphi 0, %s429
    $region4: #{decoder_forward.1} parent=1 // loop_header_branch
      %30 = sbr.rel (%p28) target = $region8
    $region5: #{decoder_forward.1} parent=1 // loop_body
      %s32 = ssub.s32 %s27, 1
      %s33 = ssub.s32 %s27, 2
      %s34 = sadd.s32 %s27, 1
      %s35 = ssub.s32 %s27, %s34
      %p36 = scmp.eq.s32.totalorder %s35, 0
      %s38 = sadd.s32 %s37, 1
      %s39 = scalar_select %p36, %s37, %s38
      %p42 = pneg %p36
      %p43 = scmp.eq.s32.totalorder %s27, 1
      %p44 = por %p42, %p43
      %p45 = scmp.ne.s32.totalorder %s37, %s40
      %p46 = scmp.eq.s32.totalorder %s27, 0
      %p47 = por %p45, %p46
      %p48 = scmp.ne.s32.totalorder %s37, %s40
      %p49 = scmp.eq.s32.totalorder %s32, 1
      %p50 = por %p48, %p49
      %p51 = scmp.ne.s32.totalorder %s40, %s41
      %p52 = scmp.eq.s32.totalorder %s32, 0
      %p53 = por %p51, %p52
      %p54 = scmp.ne.s32.totalorder %s40, %s41
      %p55 = scmp.eq.s32.totalorder %s33, 1
      %p56 = por %p54, %p55
      %p58 = scmp.ne.s32.totalorder %s41, %s57
      %p59 = scmp.eq.s32.totalorder %s33, 0
      %p60 = por %p58, %p59
      %s61 = ssub.s32 %s27, %s34
      %p62 = scmp.eq.s32.totalorder %s61, 0
      %s64 = sadd.s32 %s63, 1
      %s65 = scalar_select %p62, %s63, %s64
      %p68 = pneg %p62
      %p69 = scmp.eq.s32.totalorder %s27, 1
      %p70 = por %p68, %p69
      %p71 = scmp.ne.s32.totalorder %s63, %s66
      %p72 = scmp.eq.s32.totalorder %s27, 0
      %p73 = por %p71, %p72
      %p74 = scmp.ne.s32.totalorder %s63, %s66
      %p75 = scmp.eq.s32.totalorder %s32, 1
      %p76 = por %p74, %p75
      %p77 = scmp.ne.s32.totalorder %s66, %s67
      %p78 = scmp.eq.s32.totalorder %s32, 0
      %p79 = por %p77, %p78
      %p80 = scmp.ne.s32.totalorder %s66, %s67
      %p81 = scmp.eq.s32.totalorder %s33, 1
      %p82 = por %p80, %p81
      %p84 = scmp.ne.s32.totalorder %s67, %s83
      %p85 = scmp.eq.s32.totalorder %s33, 0
      %p86 = por %p84, %p85
      %s88 = sadd.s32 %s87, 1
      %p91 = scmp.eq.s32.totalorder %s27, 1
      %p92 = scmp.ne.s32.totalorder %s87, %s89
      %p93 = scmp.eq.s32.totalorder %s27, 0
      %p94 = por %p92, %p93
      %p95 = scmp.ne.s32.totalorder %s87, %s89
      %p96 = scmp.eq.s32.totalorder %s32, 1
      %p97 = por %p95, %p96
      %p98 = scmp.ne.s32.totalorder %s89, %s90
      %p99 = scmp.eq.s32.totalorder %s32, 0
      %p100 = por %p98, %p99
      %p101 = scmp.ne.s32.totalorder %s89, %s90
      %p102 = scmp.eq.s32.totalorder %s33, 1
      %p103 = por %p101, %p102
      %p105 = scmp.ne.s32.totalorder %s90, %s104
      %p106 = scmp.eq.s32.totalorder %s33, 0
      %p107 = por %p105, %p106
      %s109 = sadd.s32 %s108, 1
      %p112 = scmp.eq.s32.totalorder %s27, 1
      %p113 = scmp.ne.s32.totalorder %s108, %s110
      %p114 = scmp.eq.s32.totalorder %s27, 0
      %p115 = por %p113, %p114
      %p116 = scmp.ne.s32.totalorder %s108, %s110
      %p117 = scmp.eq.s32.totalorder %s32, 1
      %p118 = por %p116, %p117
      %p119 = scmp.ne.s32.totalorder %s110, %s111
      %p120 = scmp.eq.s32.totalorder %s32, 0
      %p121 = por %p119, %p120
      %p122 = scmp.ne.s32.totalorder %s110, %s111
      %p123 = scmp.eq.s32.totalorder %s33, 1
      %p124 = por %p122, %p123
      %p126 = scmp.ne.s32.totalorder %s111, %s125
      %p127 = scmp.eq.s32.totalorder %s33, 0
      %p128 = por %p126, %p127
      %s130 = sadd.s32 %s129, 1
      %p133 = scmp.eq.s32.totalorder %s27, 1
      %p134 = scmp.ne.s32.totalorder %s129, %s131
      %p135 = scmp.eq.s32.totalorder %s27, 0
      %p136 = por %p134, %p135
      %p137 = scmp.ne.s32.totalorder %s129, %s131
      %p138 = scmp.eq.s32.totalorder %s32, 1
      %p139 = por %p137, %p138
      %p140 = scmp.ne.s32.totalorder %s131, %s132
      %p141 = scmp.eq.s32.totalorder %s32, 0
      %p142 = por %p140, %p141
      %p143 = scmp.ne.s32.totalorder %s131, %s132
      %p144 = scmp.eq.s32.totalorder %s33, 1
      %p145 = por %p143, %p144
      %p147 = scmp.ne.s32.totalorder %s132, %s146
      %p148 = scmp.eq.s32.totalorder %s33, 0
      %p149 = por %p147, %p148
      %s151 = sadd.s32 %s150, 1
      %p154 = scmp.eq.s32.totalorder %s27, 1
      %p155 = scmp.ne.s32.totalorder %s150, %s152
      %p156 = scmp.eq.s32.totalorder %s27, 0
      %p157 = por %p155, %p156
      %p158 = scmp.ne.s32.totalorder %s150, %s152
      %p159 = scmp.eq.s32.totalorder %s32, 1
      %p160 = por %p158, %p159
      %p161 = scmp.ne.s32.totalorder %s152, %s153
      %p162 = scmp.eq.s32.totalorder %s32, 0
      %p163 = por %p161, %p162
      %p164 = scmp.ne.s32.totalorder %s152, %s153
      %p165 = scmp.eq.s32.totalorder %s33, 1
      %p166 = por %p164, %p165
      %p168 = scmp.ne.s32.totalorder %s153, %s167
      %p169 = scmp.eq.s32.totalorder %s33, 0
      %p170 = por %p168, %p169
      %s172 = sadd.s32 %s171, 1
      %p175 = scmp.eq.s32.totalorder %s27, 1
      %p176 = scmp.ne.s32.totalorder %s171, %s173
      %p177 = scmp.eq.s32.totalorder %s27, 0
      %p178 = por %p176, %p177
      %p179 = scmp.ne.s32.totalorder %s171, %s173
      %p180 = scmp.eq.s32.totalorder %s32, 1
      %p181 = por %p179, %p180
      %p182 = scmp.ne.s32.totalorder %s173, %s174
      %p183 = scmp.eq.s32.totalorder %s32, 0
      %p184 = por %p182, %p183
      %p185 = scmp.ne.s32.totalorder %s173, %s174
      %p186 = scmp.eq.s32.totalorder %s33, 1
      %p187 = por %p185, %p186
      %p189 = scmp.ne.s32.totalorder %s174, %s188
      %p190 = scmp.eq.s32.totalorder %s33, 0
      %p191 = por %p189, %p190
      %s193 = sadd.s32 %s192, 1
      %p196 = scmp.eq.s32.totalorder %s27, 1
      %p197 = scmp.ne.s32.totalorder %s192, %s194
      %p198 = scmp.eq.s32.totalorder %s27, 0
      %p199 = por %p197, %p198
      %p200 = scmp.ne.s32.totalorder %s192, %s194
      %p201 = scmp.eq.s32.totalorder %s32, 1
      %p202 = por %p200, %p201
      %p203 = scmp.ne.s32.totalorder %s194, %s195
      %p204 = scmp.eq.s32.totalorder %s32, 0
      %p205 = por %p203, %p204
      %p206 = scmp.ne.s32.totalorder %s194, %s195
      %p207 = scmp.eq.s32.totalorder %s33, 1
      %p208 = por %p206, %p207
      %p210 = scmp.ne.s32.totalorder %s195, %s209
      %p211 = scmp.eq.s32.totalorder %s33, 0
      %p212 = por %p210, %p211
      %s214 = sadd.s32 %s213, 1
      %p217 = scmp.eq.s32.totalorder %s27, 1
      %p218 = scmp.ne.s32.totalorder %s213, %s215
      %p219 = scmp.eq.s32.totalorder %s27, 0
      %p220 = por %p218, %p219
      %p221 = scmp.ne.s32.totalorder %s213, %s215
      %p222 = scmp.eq.s32.totalorder %s32, 1
      %p223 = por %p221, %p222
      %p224 = scmp.ne.s32.totalorder %s215, %s216
      %p225 = scmp.eq.s32.totalorder %s32, 0
      %p226 = por %p224, %p225
      %p227 = scmp.ne.s32.totalorder %s215, %s216
      %p228 = scmp.eq.s32.totalorder %s33, 1
      %p229 = por %p227, %p228
      %p231 = scmp.ne.s32.totalorder %s216, %s230
      %p232 = scmp.eq.s32.totalorder %s33, 0
      %p233 = por %p231, %p232
      %s235 = sadd.s32 %s234, 1
      %p238 = scmp.eq.s32.totalorder %s27, 1
      %p239 = scmp.ne.s32.totalorder %s234, %s236
      %p240 = scmp.eq.s32.totalorder %s27, 0
      %p241 = por %p239, %p240
      %p242 = scmp.ne.s32.totalorder %s234, %s236
      %p243 = scmp.eq.s32.totalorder %s32, 1
      %p244 = por %p242, %p243
      %p245 = scmp.ne.s32.totalorder %s236, %s237
      %p246 = scmp.eq.s32.totalorder %s32, 0
      %p247 = por %p245, %p246
      %p248 = scmp.ne.s32.totalorder %s236, %s237
      %p249 = scmp.eq.s32.totalorder %s33, 1
      %p250 = por %p248, %p249
      %p252 = scmp.ne.s32.totalorder %s237, %s251
      %p253 = scmp.eq.s32.totalorder %s33, 0
      %p254 = por %p252, %p253
      %s256 = sadd.s32 %s255, 1
      %p259 = scmp.eq.s32.totalorder %s27, 1
      %p260 = scmp.ne.s32.totalorder %s255, %s257
      %p261 = scmp.eq.s32.totalorder %s27, 0
      %p262 = por %p260, %p261
      %p263 = scmp.ne.s32.totalorder %s255, %s257
      %p264 = scmp.eq.s32.totalorder %s32, 1
      %p265 = por %p263, %p264
      %p266 = scmp.ne.s32.totalorder %s257, %s258
      %p267 = scmp.eq.s32.totalorder %s32, 0
      %p268 = por %p266, %p267
      %p269 = scmp.ne.s32.totalorder %s257, %s258
      %p270 = scmp.eq.s32.totalorder %s33, 1
      %p271 = por %p269, %p270
      %p273 = scmp.ne.s32.totalorder %s258, %s272
      %p274 = scmp.eq.s32.totalorder %s33, 0
      %p275 = por %p273, %p274
      %s277 = sadd.s32 %s276, 1
      %p280 = scmp.eq.s32.totalorder %s27, 1
      %p281 = scmp.ne.s32.totalorder %s276, %s278
      %p282 = scmp.eq.s32.totalorder %s27, 0
      %p283 = por %p281, %p282
      %p284 = scmp.ne.s32.totalorder %s276, %s278
      %p285 = scmp.eq.s32.totalorder %s32, 1
      %p286 = por %p284, %p285
      %p287 = scmp.ne.s32.totalorder %s278, %s279
      %p288 = scmp.eq.s32.totalorder %s32, 0
      %p289 = por %p287, %p288
      %p290 = scmp.ne.s32.totalorder %s278, %s279
      %p291 = scmp.eq.s32.totalorder %s33, 1
      %p292 = por %p290, %p291
      %p294 = scmp.ne.s32.totalorder %s279, %s293
      %p295 = scmp.eq.s32.totalorder %s33, 0
      %p296 = por %p294, %p295
      %s298 = sadd.s32 %s297, 1
      %p301 = scmp.eq.s32.totalorder %s27, 1
      %p302 = scmp.ne.s32.totalorder %s297, %s299
      %p303 = scmp.eq.s32.totalorder %s27, 0
      %p304 = por %p302, %p303
      %p305 = scmp.ne.s32.totalorder %s297, %s299
      %p306 = scmp.eq.s32.totalorder %s32, 1
      %p307 = por %p305, %p306
      %p308 = scmp.ne.s32.totalorder %s299, %s300
      %p309 = scmp.eq.s32.totalorder %s32, 0
      %p310 = por %p308, %p309
      %p311 = scmp.ne.s32.totalorder %s299, %s300
      %p312 = scmp.eq.s32.totalorder %s33, 1
      %p313 = por %p311, %p312
      %p315 = scmp.ne.s32.totalorder %s300, %s314
      %p316 = scmp.eq.s32.totalorder %s33, 0
      %p317 = por %p315, %p316
      %s319 = sadd.s32 %s318, 1
      %p322 = scmp.eq.s32.totalorder %s27, 1
      %p323 = scmp.ne.s32.totalorder %s318, %s320
      %p324 = scmp.eq.s32.totalorder %s27, 0
      %p325 = por %p323, %p324
      %p326 = scmp.ne.s32.totalorder %s318, %s320
      %p327 = scmp.eq.s32.totalorder %s32, 1
      %p328 = por %p326, %p327
      %p329 = scmp.ne.s32.totalorder %s320, %s321
      %p330 = scmp.eq.s32.totalorder %s32, 0
      %p331 = por %p329, %p330
      %p332 = scmp.ne.s32.totalorder %s320, %s321
      %p333 = scmp.eq.s32.totalorder %s33, 1
      %p334 = por %p332, %p333
      %p336 = scmp.ne.s32.totalorder %s321, %s335
      %p337 = scmp.eq.s32.totalorder %s33, 0
      %p338 = por %p336, %p337
      %s340 = sadd.s32 %s339, 1
      %p343 = scmp.eq.s32.totalorder %s27, 1
      %p344 = scmp.ne.s32.totalorder %s339, %s341
      %p345 = scmp.eq.s32.totalorder %s27, 0
      %p346 = por %p344, %p345
      %p347 = scmp.ne.s32.totalorder %s339, %s341
      %p348 = scmp.eq.s32.totalorder %s32, 1
      %p349 = por %p347, %p348
      %p350 = scmp.ne.s32.totalorder %s341, %s342
      %p351 = scmp.eq.s32.totalorder %s32, 0
      %p352 = por %p350, %p351
      %p353 = scmp.ne.s32.totalorder %s341, %s342
      %p354 = scmp.eq.s32.totalorder %s33, 1
      %p355 = por %p353, %p354
      %p357 = scmp.ne.s32.totalorder %s342, %s356
      %p358 = scmp.eq.s32.totalorder %s33, 0
      %p359 = por %p357, %p358
      %s361 = sadd.s32 %s360, 1
      %p364 = scmp.eq.s32.totalorder %s27, 1
      %p365 = scmp.ne.s32.totalorder %s360, %s362
      %p366 = scmp.eq.s32.totalorder %s27, 0
      %p367 = por %p365, %p366
      %p368 = scmp.ne.s32.totalorder %s360, %s362
      %p369 = scmp.eq.s32.totalorder %s32, 1
      %p370 = por %p368, %p369
      %p371 = scmp.ne.s32.totalorder %s362, %s363
      %p372 = scmp.eq.s32.totalorder %s32, 0
      %p373 = por %p371, %p372
      %p374 = scmp.ne.s32.totalorder %s362, %s363
      %p375 = scmp.eq.s32.totalorder %s33, 1
      %p376 = por %p374, %p375
      %p378 = scmp.ne.s32.totalorder %s363, %s377
      %p379 = scmp.eq.s32.totalorder %s33, 0
      %p380 = por %p378, %p379
      %s382 = sadd.s32 %s381, 1
      %p385 = scmp.eq.s32.totalorder %s27, 1
      %p386 = scmp.ne.s32.totalorder %s381, %s383
      %p387 = scmp.eq.s32.totalorder %s27, 0
      %p388 = por %p386, %p387
      %p389 = scmp.ne.s32.totalorder %s381, %s383
      %p390 = scmp.eq.s32.totalorder %s32, 1
      %p391 = por %p389, %p390
      %p392 = scmp.ne.s32.totalorder %s383, %s384
      %p393 = scmp.eq.s32.totalorder %s32, 0
      %p394 = por %p392, %p393
      %p395 = scmp.ne.s32.totalorder %s383, %s384
      %p396 = scmp.eq.s32.totalorder %s33, 1
      %p397 = por %p395, %p396
      %p399 = scmp.ne.s32.totalorder %s384, %s398
      %p400 = scmp.eq.s32.totalorder %s33, 0
      %p401 = por %p399, %p400
      %s403 = sadd.s32 %s402, 1
      %p406 = scmp.eq.s32.totalorder %s27, 1
      %p407 = scmp.ne.s32.totalorder %s402, %s404
      %p408 = scmp.eq.s32.totalorder %s27, 0
      %p409 = por %p407, %p408
      %p410 = scmp.ne.s32.totalorder %s402, %s404
      %p411 = scmp.eq.s32.totalorder %s32, 1
      %p412 = por %p410, %p411
      %p413 = scmp.ne.s32.totalorder %s404, %s405
      %p414 = scmp.eq.s32.totalorder %s32, 0
      %p415 = por %p413, %p414
      %p416 = scmp.ne.s32.totalorder %s404, %s405
      %p417 = scmp.eq.s32.totalorder %s33, 1
      %p418 = por %p416, %p417
      %p420 = scmp.ne.s32.totalorder %s405, %s419
      %p421 = scmp.eq.s32.totalorder %s33, 0
      %p422 = por %p420, %p421
      %s423 = ssub.s32 %s27, %s34
      %p424 = scmp.eq.s32.totalorder %s423, 0
      %s426 = sadd.s32 %s425, 1
      %s427 = scalar_select %p424, %s425, %s426
      %p430 = pneg %p424
      %p431 = scmp.eq.s32.totalorder %s27, 1
      %p432 = por %p430, %p431
      %p433 = scmp.ne.s32.totalorder %s425, %s428
      %p434 = scmp.eq.s32.totalorder %s27, 0
      %p435 = por %p433, %p434
      %p436 = scmp.ne.s32.totalorder %s425, %s428
      %p437 = scmp.eq.s32.totalorder %s32, 1
      %p438 = por %p436, %p437
      %p439 = scmp.ne.s32.totalorder %s428, %s429
      %p440 = scmp.eq.s32.totalorder %s32, 0
      %p441 = por %p439, %p440
      %p442 = scmp.ne.s32.totalorder %s428, %s429
      %p443 = scmp.eq.s32.totalorder %s33, 1
      %p444 = por %p442, %p443
      %p446 = scmp.ne.s32.totalorder %s429, %s445
      %p447 = scmp.eq.s32.totalorder %s33, 0
      %p448 = por %p446, %p447
      %p449 = scmp.le.s32.totalorder 1, %s27
      %p450 = scmp.lt.s32.totalorder %s27, 3
      %p451 = pnand %p449, %p450
      %p452 = pneg %p451
      // Predicated region
      $region9: #{decoder_forward.1} parent=5 // pred_check
        _
      $region10: #{decoder_forward.1} parent=5 // pred_check_branch
        %454 = sbr.rel (%p451) target = $region12
      $region11: #{decoder_forward.1} parent=5 // pred_region
        %s455 = ssub.s32 %s27, 1
        // Predicated region
        $region13: #{decoder_forward.1} parent=11 // pred_check
          %p456 = pneg %p100
        $region14: #{decoder_forward.1} parent=11 // pred_check_branch
          %458 = sbr.rel (%p456) target = $region16
        $region15: #{decoder_forward.1} parent=11 // pred_region
          _
        $region16: #{decoder_forward.1} parent=11 // pred_fallthru
          _
        // Predicated region
        $region17: #{decoder_forward.1} parent=11 // pred_check
          %p459 = pneg %p121
        $region18: #{decoder_forward.1} parent=11 // pred_check_branch
          %461 = sbr.rel (%p459) target = $region20
        $region19: #{decoder_forward.1} parent=11 // pred_region
          _
        $region20: #{decoder_forward.1} parent=11 // pred_fallthru
          _
        // Predicated region
        $region21: #{decoder_forward.1} parent=11 // pred_check
          %p462 = pneg %p142
        $region22: #{decoder_forward.1} parent=11 // pred_check_branch
          %464 = sbr.rel (%p462) target = $region24
        $region23: #{decoder_forward.1} parent=11 // pred_region
          _
        $region24: #{decoder_forward.1} parent=11 // pred_fallthru
          _
        // Predicated region
        $region25: #{decoder_forward.1} parent=11 // pred_check
          %p465 = pneg %p163
        $region26: #{decoder_forward.1} parent=11 // pred_check_branch
          %467 = sbr.rel (%p465) target = $region28
        $region27: #{decoder_forward.1} parent=11 // pred_region
          _
        $region28: #{decoder_forward.1} parent=11 // pred_fallthru
          _
        // Predicated region
        $region29: #{decoder_forward.1} parent=11 // pred_check
          %p468 = pneg %p184
        $region30: #{decoder_forward.1} parent=11 // pred_check_branch
          %470 = sbr.rel (%p468) target = $region32
        $region31: #{decoder_forward.1} parent=11 // pred_region
          _
        $region32: #{decoder_forward.1} parent=11 // pred_fallthru
          _
        // Predicated region
        $region33: #{decoder_forward.1} parent=11 // pred_check
          %p471 = pneg %p205
        $region34: #{decoder_forward.1} parent=11 // pred_check_branch
          %473 = sbr.rel (%p471) target = $region36
        $region35: #{decoder_forward.1} parent=11 // pred_region
          _
        $region36: #{decoder_forward.1} parent=11 // pred_fallthru
          _
        // Predicated region
        $region37: #{decoder_forward.1} parent=11 // pred_check
          %p474 = pneg %p226
        $region38: #{decoder_forward.1} parent=11 // pred_check_branch
          %476 = sbr.rel (%p474) target = $region40
        $region39: #{decoder_forward.1} parent=11 // pred_region
          _
        $region40: #{decoder_forward.1} parent=11 // pred_fallthru
          _
        // Predicated region
        $region41: #{decoder_forward.1} parent=11 // pred_check
          %p477 = pneg %p247
        $region42: #{decoder_forward.1} parent=11 // pred_check_branch
          %479 = sbr.rel (%p477) target = $region44
        $region43: #{decoder_forward.1} parent=11 // pred_region
          _
        $region44: #{decoder_forward.1} parent=11 // pred_fallthru
          _
        // Predicated region
        $region45: #{decoder_forward.1} parent=11 // pred_check
          %p480 = pneg %p268
        $region46: #{decoder_forward.1} parent=11 // pred_check_branch
          %482 = sbr.rel (%p480) target = $region48
        $region47: #{decoder_forward.1} parent=11 // pred_region
          _
        $region48: #{decoder_forward.1} parent=11 // pred_fallthru
          _
        // Predicated region
        $region49: #{decoder_forward.1} parent=11 // pred_check
          %p483 = pneg %p289
        $region50: #{decoder_forward.1} parent=11 // pred_check_branch
          %485 = sbr.rel (%p483) target = $region52
        $region51: #{decoder_forward.1} parent=11 // pred_region
          _
        $region52: #{decoder_forward.1} parent=11 // pred_fallthru
          _
        // Predicated region
        $region53: #{decoder_forward.1} parent=11 // pred_check
          %p486 = pneg %p310
        $region54: #{decoder_forward.1} parent=11 // pred_check_branch
          %488 = sbr.rel (%p486) target = $region56
        $region55: #{decoder_forward.1} parent=11 // pred_region
          _
        $region56: #{decoder_forward.1} parent=11 // pred_fallthru
          _
        // Predicated region
        $region57: #{decoder_forward.1} parent=11 // pred_check
          %p489 = pneg %p331
        $region58: #{decoder_forward.1} parent=11 // pred_check_branch
          %491 = sbr.rel (%p489) target = $region60
        $region59: #{decoder_forward.1} parent=11 // pred_region
          _
        $region60: #{decoder_forward.1} parent=11 // pred_fallthru
          _
        // Predicated region
        $region61: #{decoder_forward.1} parent=11 // pred_check
          %p492 = pneg %p352
        $region62: #{decoder_forward.1} parent=11 // pred_check_branch
          %494 = sbr.rel (%p492) target = $region64
        $region63: #{decoder_forward.1} parent=11 // pred_region
          _
        $region64: #{decoder_forward.1} parent=11 // pred_fallthru
          _
        // Predicated region
        $region65: #{decoder_forward.1} parent=11 // pred_check
          %p495 = pneg %p373
        $region66: #{decoder_forward.1} parent=11 // pred_check_branch
          %497 = sbr.rel (%p495) target = $region68
        $region67: #{decoder_forward.1} parent=11 // pred_region
          _
        $region68: #{decoder_forward.1} parent=11 // pred_fallthru
          _
        // Predicated region
        $region69: #{decoder_forward.1} parent=11 // pred_check
          %p498 = pneg %p394
        $region70: #{decoder_forward.1} parent=11 // pred_check_branch
          %500 = sbr.rel (%p498) target = $region72
        $region71: #{decoder_forward.1} parent=11 // pred_region
          _
        $region72: #{decoder_forward.1} parent=11 // pred_fallthru
          _
        // Predicated region
        $region73: #{decoder_forward.1} parent=11 // pred_check
          %p501 = pneg %p415
        $region74: #{decoder_forward.1} parent=11 // pred_check_branch
          %503 = sbr.rel (%p501) target = $region76
        $region75: #{decoder_forward.1} parent=11 // pred_region
          _
        $region76: #{decoder_forward.1} parent=11 // pred_fallthru
          _
      $region12: #{decoder_forward.1} parent=5 // pred_fallthru
        _
      %p504 = scmp.lt.s32.totalorder %s27, 2
      // Predicated region
      $region77: #{decoder_forward.1} parent=5 // pred_check
        %p505 = pneg %p504
      $region78: #{decoder_forward.1} parent=5 // pred_check_branch
        %507 = sbr.rel (%p505) target = $region80
      $region79: #{decoder_forward.1} parent=5 // pred_region
        // Predicated region
        $region81: #{decoder_forward.1} parent=79 // pred_check
          %p508 = pneg %p47
        $region82: #{decoder_forward.1} parent=79 // pred_check_branch
          %510 = sbr.rel (%p508) target = $region84
        $region83: #{decoder_forward.1} parent=79 // pred_region
          %p511 = scmp.lt.s32.totalorder %s27, 1
          %s512 = scalar_select %p511, %s27, 1
          %s513 = smul.addr %s512, 4
          %s514 = scalar_lea.vmem %s0, %s513
        $region84: #{decoder_forward.1} parent=79 // pred_fallthru
          _
        // Predicated region
        $region85: #{decoder_forward.1} parent=79 // pred_check
          %p515 = pneg %p73
        $region86: #{decoder_forward.1} parent=79 // pred_check_branch
          %517 = sbr.rel (%p515) target = $region88
        $region87: #{decoder_forward.1} parent=79 // pred_region
          %p518 = scmp.lt.s32.totalorder %s27, 1
          %s519 = scalar_select %p518, %s27, 1
          %s520 = smul.addr %s519, 4
          %s521 = scalar_lea.vmem %s1, %s520
        $region88: #{decoder_forward.1} parent=79 // pred_fallthru
          _
      $region80: #{decoder_forward.1} parent=5 // pred_fallthru
        _
      %p522 = scmp.le.s32.totalorder 1, %s27
      %p523 = scmp.lt.s32.totalorder %s27, 3
      %p524 = pnand %p522, %p523
      %p525 = pneg %p524
      // Predicated region
      $region89: #{decoder_forward.1} parent=5 // pred_check
        _
      $region90: #{decoder_forward.1} parent=5 // pred_check_branch
        %527 = sbr.rel (%p524) target = $region92
      $region91: #{decoder_forward.1} parent=5 // pred_region
        %s528 = ssub.s32 %s27, 1
        %p529 = scmp.lt.s32.totalorder %s32, 1
        %s530 = scalar_select %p529, %s32, 1
        %s531 = smul.addr %s530, 4
        %s532 = scalar_lea.vmem %s0, %s531
        %p533 = pneg %p53
        %p534 = pneg %p50
        %p535 = scmp.lt.s32.totalorder %s32, 1
        %s536 = scalar_select %p535, %s32, 1
        %s537 = smul.addr %s536, 4
        %s538 = scalar_lea.vmem %s1, %s537
        %p539 = pneg %p79
        %p540 = pneg %p76
        %p541 = pneg %p100
        %p542 = pneg %p97
        %p543 = pneg %p121
        %p544 = pneg %p118
        %p545 = pneg %p142
        %p546 = pneg %p139
        %p547 = pneg %p163
        %p548 = pneg %p160
        %p549 = pneg %p184
        %p550 = pneg %p181
        %p551 = pneg %p205
        %p552 = pneg %p202
        %p553 = pneg %p226
        %p554 = pneg %p223
        %p555 = pneg %p247
        %p556 = pneg %p244
        %p557 = pneg %p268
        %p558 = pneg %p265
        %p559 = pneg %p289
        %p560 = pneg %p286
        %p561 = pneg %p310
        %p562 = pneg %p307
        %p563 = pneg %p331
        %p564 = pneg %p328
        %p565 = pneg %p352
        %p566 = pneg %p349
        %p567 = pneg %p373
        %p568 = pneg %p370
        %p569 = pneg %p394
        %p570 = pneg %p391
        %p571 = pneg %p415
        %p572 = pneg %p412
        %p573 = pneg %p441
        %p574 = pneg %p438
        %s575 = sand.u32 %s428, 1
        %s576 = scalar_lea.sflag [#allocation3], %s575
        %s577 = sand.u32 %s428, 1
        %s578 = smul.addr %s577, 8
        %s579 = scalar_lea.vmem [#allocation2], %s578
        %p580 = scmp.lt.s32.totalorder %s32, 1
        %s581 = scalar_select %p580, %s32, 1
        %s582 = smul.addr %s581, 4
        %s583 = scalar_lea.vmem %s0, %s582
        %p584 = scmp.lt.s32.totalorder %s32, 1
        %s585 = scalar_select %p584, %s32, 1
        %s586 = smul.addr %s585, 4
        %s587 = scalar_lea.vmem %s1, %s586
        %v589 = vld [vmem:[%s583] sm:$0xf]
        %v590 = vunpack.c.l.bf16 %v589
        %v591 = vlaneseq
        %v592 = vshrl.u32 %v591, 7
        %v593 = vlaneseq
        %v594 = vand.u32 %v593, 127
        %vm595 = vcmp.ge.s32.totalorder %v592, %v594
        %v596 = vld [vmem:[%s587] sm:$0xf]
        %v597 = vld [vmem:[%s2] sm:$0xf]
        %v598 = vld [vmem:[%s2 + $0x4] sm:$0xf]
        %v599 = vld [vmem:[%s2 + $0x8] sm:$0xf]
        %v600 = vld [vmem:[%s2 + $0xc] sm:$0xf]
        %v601 = vld [vmem:[%s2 + $0x10] sm:$0xf]
        %v602 = vld [vmem:[%s2 + $0x14] sm:$0xf]
        %v603 = vld [vmem:[%s2 + $0x18] sm:$0xf]
        %v604 = vld [vmem:[%s2 + $0x1c] sm:$0xf]
        %v605 = vld [vmem:[%s2 + $0x20] sm:$0xf]
        %v606 = vld [vmem:[%s2 + $0x24] sm:$0xf]
        %v607 = vld [vmem:[%s2 + $0x28] sm:$0xf]
        %v608 = vld [vmem:[%s2 + $0x2c] sm:$0xf]
        %v609 = vld [vmem:[%s2 + $0x30] sm:$0xf]
        %v610 = vld [vmem:[%s2 + $0x34] sm:$0xf]
        %v611 = vld [vmem:[%s2 + $0x38] sm:$0xf]
        %v612 = vld [vmem:[%s2 + $0x3c] sm:$0xf]
        %v613 = vld [vmem:[%s3] sm:$0xf]
        %v614 = vld [vmem:[%s3 + $0x4] sm:$0xf]
        %v615 = vld [vmem:[%s3 + $0x8] sm:$0xf]
        %v616 = vld [vmem:[%s3 + $0xc] sm:$0xf]
        %v617 = vld [vmem:[%s3 + $0x10] sm:$0xf]
        %v618 = vld [vmem:[%s3 + $0x14] sm:$0xf]
        %v619 = vld [vmem:[%s3 + $0x18] sm:$0xf]
        %v620 = vld [vmem:[%s3 + $0x1c] sm:$0xf]
        %v621 = vld [vmem:[%s3 + $0x20] sm:$0xf]
        %v622 = vld [vmem:[%s3 + $0x24] sm:$0xf]
        %v623 = vld [vmem:[%s3 + $0x28] sm:$0xf]
        %v624 = vld [vmem:[%s3 + $0x2c] sm:$0xf]
        %v625 = vld [vmem:[%s3 + $0x30] sm:$0xf]
        %v626 = vld [vmem:[%s3 + $0x34] sm:$0xf]
        %v627 = vld [vmem:[%s3 + $0x38] sm:$0xf]
        %v628 = vld [vmem:[%s3 + $0x3c] sm:$0xf]
        %v629 = vld [vmem:[%s4] sm:$0xf]
        %v630 = vld [vmem:[%s4 + $0x4] sm:$0xf]
        %v631 = vld [vmem:[%s4 + $0x8] sm:$0xf]
        %v632 = vld [vmem:[%s4 + $0xc] sm:$0xf]
        %v633 = vld [vmem:[%s4 + $0x10] sm:$0xf]
        %v634 = vld [vmem:[%s4 + $0x14] sm:$0xf]
        %v635 = vld [vmem:[%s4 + $0x18] sm:$0xf]
        %v636 = vld [vmem:[%s4 + $0x1c] sm:$0xf]
        %v637 = vld [vmem:[%s4 + $0x20] sm:$0xf]
        %v638 = vld [vmem:[%s4 + $0x24] sm:$0xf]
        %v639 = vld [vmem:[%s4 + $0x28] sm:$0xf]
        %v640 = vld [vmem:[%s4 + $0x2c] sm:$0xf]
        %v641 = vld [vmem:[%s4 + $0x30] sm:$0xf]
        %v642 = vld [vmem:[%s4 + $0x34] sm:$0xf]
        %v643 = vld [vmem:[%s4 + $0x38] sm:$0xf]
        %v644 = vld [vmem:[%s4 + $0x3c] sm:$0xf]
        %v645 = vld [vmem:[%s5] sm:$0xf]
        %v646 = vld [vmem:[%s5 + $0x4] sm:$0xf]
        %v647 = vld [vmem:[%s5 + $0x8] sm:$0xf]
        %v648 = vld [vmem:[%s5 + $0xc] sm:$0xf]
        %v653 = vunpack.c.l.b16 %v597
        %v654 = vunpack.c.l.b16 %v598
        %v655 = vunpack.c.l.b16 %v599
        %v656 = vunpack.c.l.b16 %v600
        %v657 = vpack.c.b16 %v654, %v653
        %v658 = vpack.c.b16 %v656, %v655
        %vm661 = vcmask 261120
        %v663 = vsel %vm661, %v589, 0
        %665 = vmatpush.bf16.msra.mxu0 0
        %666 = vmatpush.bf16.msra.mxu0 0
        %667 = vmatpush.bf16.msra.mxu0 0
        %668 = vmatpush.bf16.msra.mxu0 0
        %669 = vmatpush.bf16.msra.mxu0 0
        %670 = vmatpush.bf16.msra.mxu0 0
        %671 = vmatpush.bf16.msra.mxu0 %v658
        %672 = vmatpush.bf16.msra.mxu0 %v657
        %673 = vmatmul.bf16.gmra.mxu0 %v663
        %v674 = vpop.f32.mrf.mxu0
        %v675 = vadd.f32 0.0, %v674
        %v676 = vpop.f32.mrf.mxu0
        %677 = vdwg.mxu0
        %v682 = vunpack.c.l.b16 %v601
        %v683 = vunpack.c.l.b16 %v602
        %v684 = vunpack.c.l.b16 %v603
        %v685 = vunpack.c.l.b16 %v604
        %v686 = vpack.c.b16 %v683, %v682
        %v687 = vpack.c.b16 %v685, %v684
        %690 = vmatpush.bf16.msra.mxu0 0
        %691 = vmatpush.bf16.msra.mxu0 0
        %692 = vmatpush.bf16.msra.mxu0 0
        %693 = vmatpush.bf16.msra.mxu0 0
        %694 = vmatpush.bf16.msra.mxu0 0
        %695 = vmatpush.bf16.msra.mxu0 0
        %696 = vmatpush.bf16.msra.mxu0 %v687
        %697 = vmatpush.bf16.msra.mxu0 %v686
        %698 = vmatmul.bf16.gmra.mxu0 %v663
        %v699 = vpop.f32.mrf.mxu0
        %v700 = vadd.f32 0.0, %v699
        %v701 = vpop.f32.mrf.mxu0
        %702 = vdwg.mxu0
        %v707 = vunpack.c.l.b16 %v605
        %v708 = vunpack.c.l.b16 %v606
        %v709 = vunpack.c.l.b16 %v607
        %v710 = vunpack.c.l.b16 %v608
        %v711 = vpack.c.b16 %v708, %v707
        %v712 = vpack.c.b16 %v710, %v709
        %715 = vmatpush.bf16.msra.mxu0 0
        %716 = vmatpush.bf16.msra.mxu0 0
        %717 = vmatpush.bf16.msra.mxu0 0
        %718 = vmatpush.bf16.msra.mxu0 0
        %719 = vmatpush.bf16.msra.mxu0 0
        %720 = vmatpush.bf16.msra.mxu0 0
        %721 = vmatpush.bf16.msra.mxu0 %v712
        %722 = vmatpush.bf16.msra.mxu0 %v711
        %723 = vmatmul.bf16.gmra.mxu0 %v663
        %v724 = vpop.f32.mrf.mxu0
        %v725 = vadd.f32 0.0, %v724
        %v726 = vpop.f32.mrf.mxu0
        %727 = vdwg.mxu0
        %v732 = vunpack.c.l.b16 %v609
        %v733 = vunpack.c.l.b16 %v610
        %v734 = vunpack.c.l.b16 %v611
        %v735 = vunpack.c.l.b16 %v612
        %v736 = vpack.c.b16 %v733, %v732
        %v737 = vpack.c.b16 %v735, %v734
        %740 = vmatpush.bf16.msra.mxu0 0
        %741 = vmatpush.bf16.msra.mxu0 0
        %742 = vmatpush.bf16.msra.mxu0 0
        %743 = vmatpush.bf16.msra.mxu0 0
        %744 = vmatpush.bf16.msra.mxu0 0
        %745 = vmatpush.bf16.msra.mxu0 0
        %746 = vmatpush.bf16.msra.mxu0 %v737
        %747 = vmatpush.bf16.msra.mxu0 %v736
        %748 = vmatmul.bf16.gmra.mxu0 %v663
        %v749 = vpop.f32.mrf.mxu0
        %v750 = vadd.f32 0.0, %v749
        %v751 = vpop.f32.mrf.mxu0
        %752 = vdwg.mxu0
        %v757 = vunpack.c.l.b16 %v613
        %v758 = vunpack.c.l.b16 %v614
        %v759 = vunpack.c.l.b16 %v615
        %v760 = vunpack.c.l.b16 %v616
        %v761 = vpack.c.b16 %v758, %v757
        %v762 = vpack.c.b16 %v760, %v759
        %765 = vmatpush.bf16.msra.mxu0 0
        %766 = vmatpush.bf16.msra.mxu0 0
        %767 = vmatpush.bf16.msra.mxu0 0
        %768 = vmatpush.bf16.msra.mxu0 0
        %769 = vmatpush.bf16.msra.mxu0 0
        %770 = vmatpush.bf16.msra.mxu0 0
        %771 = vmatpush.bf16.msra.mxu0 %v762
        %772 = vmatpush.bf16.msra.mxu0 %v761
        %773 = vmatmul.bf16.gmra.mxu0 %v663
        %v774 = vpop.f32.mrf.mxu0
        %v775 = vadd.f32 0.0, %v774
        %v776 = vpop.f32.mrf.mxu0
        %777 = vdwg.mxu0
        %v782 = vunpack.c.l.b16 %v617
        %v783 = vunpack.c.l.b16 %v618
        %v784 = vunpack.c.l.b16 %v619
        %v785 = vunpack.c.l.b16 %v620
        %v786 = vpack.c.b16 %v783, %v782
        %v787 = vpack.c.b16 %v785, %v784
        %790 = vmatpush.bf16.msra.mxu0 0
        %791 = vmatpush.bf16.msra.mxu0 0
        %792 = vmatpush.bf16.msra.mxu0 0
        %793 = vmatpush.bf16.msra.mxu0 0
        %794 = vmatpush.bf16.msra.mxu0 0
        %795 = vmatpush.bf16.msra.mxu0 0
        %796 = vmatpush.bf16.msra.mxu0 %v787
        %797 = vmatpush.bf16.msra.mxu0 %v786
        %798 = vmatmul.bf16.gmra.mxu0 %v663
        %v799 = vpop.f32.mrf.mxu0
        %v800 = vadd.f32 0.0, %v799
        %v801 = vpop.f32.mrf.mxu0
        %802 = vdwg.mxu0
        %v807 = vunpack.c.l.b16 %v621
        %v808 = vunpack.c.l.b16 %v622
        %v809 = vunpack.c.l.b16 %v623
        %v810 = vunpack.c.l.b16 %v624
        %v811 = vpack.c.b16 %v808, %v807
        %v812 = vpack.c.b16 %v810, %v809
        %815 = vmatpush.bf16.msra.mxu0 0
        %816 = vmatpush.bf16.msra.mxu0 0
        %817 = vmatpush.bf16.msra.mxu0 0
        %818 = vmatpush.bf16.msra.mxu0 0
        %819 = vmatpush.bf16.msra.mxu0 0
        %820 = vmatpush.bf16.msra.mxu0 0
        %821 = vmatpush.bf16.msra.mxu0 %v812
        %822 = vmatpush.bf16.msra.mxu0 %v811
        %823 = vmatmul.bf16.gmra.mxu0 %v663
        %v824 = vpop.f32.mrf.mxu0
        %v825 = vadd.f32 0.0, %v824
        %v826 = vpop.f32.mrf.mxu0
        %827 = vdwg.mxu0
        %v832 = vunpack.c.l.b16 %v625
        %v833 = vunpack.c.l.b16 %v626
        %v834 = vunpack.c.l.b16 %v627
        %v835 = vunpack.c.l.b16 %v628
        %v836 = vpack.c.b16 %v833, %v832
        %v837 = vpack.c.b16 %v835, %v834
        %840 = vmatpush.bf16.msra.mxu0 0
        %841 = vmatpush.bf16.msra.mxu0 0
        %842 = vmatpush.bf16.msra.mxu0 0
        %843 = vmatpush.bf16.msra.mxu0 0
        %844 = vmatpush.bf16.msra.mxu0 0
        %845 = vmatpush.bf16.msra.mxu0 0
        %846 = vmatpush.bf16.msra.mxu0 %v837
        %847 = vmatpush.bf16.msra.mxu0 %v836
        %848 = vmatmul.bf16.gmra.mxu0 %v663
        %v849 = vpop.f32.mrf.mxu0
        %v850 = vadd.f32 0.0, %v849
        %v851 = vpop.f32.mrf.mxu0
        %852 = vdwg.mxu0
        %v857 = vunpack.c.l.b16 %v629
        %v858 = vunpack.c.l.b16 %v630
        %v859 = vunpack.c.l.b16 %v631
        %v860 = vunpack.c.l.b16 %v632
        %v861 = vpack.c.b16 %v858, %v857
        %v862 = vpack.c.b16 %v860, %v859
        %865 = vmatpush.bf16.msra.mxu0 0
        %866 = vmatpush.bf16.msra.mxu0 0
        %867 = vmatpush.bf16.msra.mxu0 0
        %868 = vmatpush.bf16.msra.mxu0 0
        %869 = vmatpush.bf16.msra.mxu0 0
        %870 = vmatpush.bf16.msra.mxu0 0
        %871 = vmatpush.bf16.msra.mxu0 %v862
        %872 = vmatpush.bf16.msra.mxu0 %v861
        %873 = vmatmul.bf16.gmra.mxu0 %v663
        %v874 = vpop.f32.mrf.mxu0
        %v875 = vadd.f32 0.0, %v874
        %v876 = vpop.f32.mrf.mxu0
        %877 = vdwg.mxu0
        %v882 = vunpack.c.l.b16 %v633
        %v883 = vunpack.c.l.b16 %v634
        %v884 = vunpack.c.l.b16 %v635
        %v885 = vunpack.c.l.b16 %v636
        %v886 = vpack.c.b16 %v883, %v882
        %v887 = vpack.c.b16 %v885, %v884
        %890 = vmatpush.bf16.msra.mxu0 0
        %891 = vmatpush.bf16.msra.mxu0 0
        %892 = vmatpush.bf16.msra.mxu0 0
        %893 = vmatpush.bf16.msra.mxu0 0
        %894 = vmatpush.bf16.msra.mxu0 0
        %895 = vmatpush.bf16.msra.mxu0 0
        %896 = vmatpush.bf16.msra.mxu0 %v887
        %897 = vmatpush.bf16.msra.mxu0 %v886
        %898 = vmatmul.bf16.gmra.mxu0 %v663
        %v899 = vpop.f32.mrf.mxu0
        %v900 = vadd.f32 0.0, %v899
        %v901 = vpop.f32.mrf.mxu0
        %902 = vdwg.mxu0
        %v907 = vunpack.c.l.b16 %v637
        %v908 = vunpack.c.l.b16 %v638
        %v909 = vunpack.c.l.b16 %v639
        %v910 = vunpack.c.l.b16 %v640
        %v911 = vpack.c.b16 %v908, %v907
        %v912 = vpack.c.b16 %v910, %v909
        %915 = vmatpush.bf16.msra.mxu0 0
        %916 = vmatpush.bf16.msra.mxu0 0
        %917 = vmatpush.bf16.msra.mxu0 0
        %918 = vmatpush.bf16.msra.mxu0 0
        %919 = vmatpush.bf16.msra.mxu0 0
        %920 = vmatpush.bf16.msra.mxu0 0
        %921 = vmatpush.bf16.msra.mxu0 %v912
        %922 = vmatpush.bf16.msra.mxu0 %v911
        %923 = vmatmul.bf16.gmra.mxu0 %v663
        %v924 = vpop.f32.mrf.mxu0
        %v925 = vadd.f32 0.0, %v924
        %v926 = vpop.f32.mrf.mxu0
        %927 = vdwg.mxu0
        %v932 = vunpack.c.l.b16 %v641
        %v933 = vunpack.c.l.b16 %v642
        %v934 = vunpack.c.l.b16 %v643
        %v935 = vunpack.c.l.b16 %v644
        %v936 = vpack.c.b16 %v933, %v932
        %v937 = vpack.c.b16 %v935, %v934
        %940 = vmatpush.bf16.msra.mxu0 0
        %941 = vmatpush.bf16.msra.mxu0 0
        %942 = vmatpush.bf16.msra.mxu0 0
        %943 = vmatpush.bf16.msra.mxu0 0
        %944 = vmatpush.bf16.msra.mxu0 0
        %945 = vmatpush.bf16.msra.mxu0 0
        %946 = vmatpush.bf16.msra.mxu0 %v937
        %947 = vmatpush.bf16.msra.mxu0 %v936
        %948 = vmatmul.bf16.gmra.mxu0 %v663
        %v949 = vpop.f32.mrf.mxu0
        %v950 = vadd.f32 0.0, %v949
        %v951 = vpop.f32.mrf.mxu0
        %952 = vdwg.mxu0
        %v953 = vpack.c.bf16 %v675, %v675
        %v954 = vpack.c.bf16 %v700, %v700
        %v955 = vpack.c.bf16 %v725, %v725
        %v956 = vpack.c.bf16 %v750, %v750
        %v957 = vpack.c.bf16 %v775, %v775
        %v958 = vpack.c.bf16 %v800, %v800
        %v959 = vpack.c.bf16 %v825, %v825
        %v960 = vpack.c.bf16 %v850, %v850
        %vm961 = vcmask 64512
        %v963 = vsel %vm961, %v953, 0
        %v966 = vsel %vm961, %v957, 0
        %968 = vmatpush.bf16.xpose.msra.mxu0 0
        %969 = vmatpush.bf16.xpose.msra.mxu0 0
        %970 = vmatpush.bf16.xpose.msra.mxu0 0
        %971 = vmatpush.bf16.xpose.msra.mxu0 0
        %972 = vmatpush.bf16.xpose.msra.mxu0 0
        %973 = vmatpush.bf16.xpose.msra.mxu0 0
        %974 = vmatpush.bf16.xpose.msra.mxu0 0
        %975 = vmatpush.bf16.xpose.msra.mxu0 %v966
        %976 = vmatmul.bf16.gmra.mxu0 %v963
        %v977 = vpop.f32.mrf.mxu0
        %v978 = vadd.f32 0.0, %v977
        %v979 = vpop.f32.mrf.mxu0
        %980 = vdwg.mxu0
        %v982 = vsel %vm961, %v954, 0
        %v985 = vsel %vm961, %v958, 0
        %987 = vmatpush.bf16.xpose.msra.mxu0 0
        %988 = vmatpush.bf16.xpose.msra.mxu0 0
        %989 = vmatpush.bf16.xpose.msra.mxu0 0
        %990 = vmatpush.bf16.xpose.msra.mxu0 0
        %991 = vmatpush.bf16.xpose.msra.mxu0 0
        %992 = vmatpush.bf16.xpose.msra.mxu0 0
        %993 = vmatpush.bf16.xpose.msra.mxu0 0
        %994 = vmatpush.bf16.xpose.msra.mxu0 %v985
        %995 = vmatmul.bf16.gmra.mxu0 %v982
        %v996 = vpop.f32.mrf.mxu0
        %v997 = vadd.f32 0.0, %v996
        %v998 = vpop.f32.mrf.mxu0
        %999 = vdwg.mxu0
        %v1001 = vsel %vm961, %v955, 0
        %v1004 = vsel %vm961, %v959, 0
        %1006 = vmatpush.bf16.xpose.msra.mxu0 0
        %1007 = vmatpush.bf16.xpose.msra.mxu0 0
        %1008 = vmatpush.bf16.xpose.msra.mxu0 0
        %1009 = vmatpush.bf16.xpose.msra.mxu0 0
        %1010 = vmatpush.bf16.xpose.msra.mxu0 0
        %1011 = vmatpush.bf16.xpose.msra.mxu0 0
        %1012 = vmatpush.bf16.xpose.msra.mxu0 0
        %1013 = vmatpush.bf16.xpose.msra.mxu0 %v1004
        %1014 = vmatmul.bf16.gmra.mxu0 %v1001
        %v1015 = vpop.f32.mrf.mxu0
        %v1016 = vadd.f32 0.0, %v1015
        %v1017 = vpop.f32.mrf.mxu0
        %1018 = vdwg.mxu0
        %v1020 = vsel %vm961, %v956, 0
        %v1023 = vsel %vm961, %v960, 0
        %1025 = vmatpush.bf16.xpose.msra.mxu0 0
        %1026 = vmatpush.bf16.xpose.msra.mxu0 0
        %1027 = vmatpush.bf16.xpose.msra.mxu0 0
        %1028 = vmatpush.bf16.xpose.msra.mxu0 0
        %1029 = vmatpush.bf16.xpose.msra.mxu0 0
        %1030 = vmatpush.bf16.xpose.msra.mxu0 0
        %1031 = vmatpush.bf16.xpose.msra.mxu0 0
        %1032 = vmatpush.bf16.xpose.msra.mxu0 %v1023
        %1033 = vmatmul.bf16.gmra.mxu0 %v1020
        %v1034 = vpop.f32.mrf.mxu0
        %v1035 = vadd.f32 0.0, %v1034
        %v1036 = vpop.f32.mrf.mxu0
        %1037 = vdwg.mxu0
        %v1038 = vsel %vm595, 1, 0
        %vm1039 = vcmp.eq.s32.totalorder %v1038, 1
        %v1040 = vsel %vm1039, %v978, -1e+20
        %v1041 = vsel %vm1039, %v997, -1e+20
        %v1042 = vsel %vm1039, %v1016, -1e+20
        %v1043 = vsel %vm1039, %v1035, -1e+20
        %v1044 = vmul.f32 %v1040, 0.17677669
        %v1045 = vmul.f32 %v1041, 0.17677669
        %v1046 = vmul.f32 %v1042, 0.17677669
        %v1047 = vmul.f32 %v1043, 0.17677669
        %v1048 = vsel %vm961, %v1044, -inf
        %1049 = vmax.xlane.f32.xlu0 %v1048
        %v1050 = vpop.xlane.xlu0 %1049
        %v1051 = vsel %vm961, %v1045, -inf
        %1052 = vmax.xlane.f32.xlu0 %v1051
        %v1053 = vpop.xlane.xlu0 %1052
        %v1054 = vsel %vm961, %v1046, -inf
        %1055 = vmax.xlane.f32.xlu0 %v1054
        %v1056 = vpop.xlane.xlu0 %1055
        %v1057 = vsel %vm961, %v1047, -inf
        %1058 = vmax.xlane.f32.xlu0 %v1057
        %v1059 = vpop.xlane.xlu0 %1058
        %v1060 = vsub.f32 %v1044, %v1050
        %v1061 = vsub.f32 %v1045, %v1053
        %v1062 = vsub.f32 %v1046, %v1056
        %v1063 = vsub.f32 %v1047, %v1059
        %v1064 = vmul.f32 %v1060, 1.442695
        %v1065 = vpow.pop %v1064
        %v1066 = vmul.f32 %v1061, 1.442695
        %v1067 = vpow.pop %v1066
        %v1068 = vmul.f32 %v1062, 1.442695
        %v1069 = vpow.pop %v1068
        %v1070 = vmul.f32 %v1063, 1.442695
        %v1071 = vpow.pop %v1070
        %v1072 = vsel %vm961, %v1065, 0.0
        %1073 = vadd.xlane.f32.xlu0 %v1072
        %v1074 = vpop.xlane.xlu0 %1073
        %v1075 = vsel %vm961, %v1067, 0.0
        %1076 = vadd.xlane.f32.xlu0 %v1075
        %v1077 = vpop.xlane.xlu0 %1076
        %v1078 = vsel %vm961, %v1069, 0.0
        %1079 = vadd.xlane.f32.xlu0 %v1078
        %v1080 = vpop.xlane.xlu0 %1079
        %v1081 = vsel %vm961, %v1071, 0.0
        %1082 = vadd.xlane.f32.xlu0 %v1081
        %v1083 = vpop.xlane.xlu0 %1082
        %v1084 = vrcp.pop %v1074
        %v1085 = vrcp.pop %v1077
        %v1086 = vrcp.pop %v1080
        %v1087 = vrcp.pop %v1083
        %v1088 = vmul.f32 %v1065, %v1084
        %v1089 = vmul.f32 %v1067, %v1085
        %v1090 = vmul.f32 %v1069, %v1086
        %v1091 = vmul.f32 %v1071, %v1087
        %v1092 = vpack.c.bf16 %v1088, %v1088
        %v1093 = vpack.c.bf16 %v1089, %v1089
        %v1094 = vpack.c.bf16 %v1090, %v1090
        %v1095 = vpack.c.bf16 %v1091, %v1091
        %v1096 = vpack.c.bf16 %v875, %v875
        %v1097 = vpack.c.bf16 %v900, %v900
        %v1098 = vpack.c.bf16 %v925, %v925
        %v1099 = vpack.c.bf16 %v950, %v950
        %v1101 = vsel %vm961, %v1092, 0
        %vm1103 = vcmask 1043456
        %v1105 = vsel %vm1103, %v1096, 0
        %1107 = vmatpush.bf16.msra.mxu0 0
        %1108 = vmatpush.bf16.msra.mxu0 0
        %1109 = vmatpush.bf16.msra.mxu0 0
        %1110 = vmatpush.bf16.msra.mxu0 0
        %1111 = vmatpush.bf16.msra.mxu0 0
        %1112 = vmatpush.bf16.msra.mxu0 0
        %1113 = vmatpush.bf16.msra.mxu0 0
        %1114 = vmatpush.bf16.msra.mxu0 %v1105
        %1115 = vmatmul.bf16.gmra.mxu0 %v1101
        %v1116 = vpop.f32.mrf.mxu0
        %v1117 = vadd.f32 0.0, %v1116
        %v1118 = vpop.f32.mrf.mxu0
        %1119 = vdwg.mxu0
        %v1121 = vsel %vm961, %v1093, 0
        %v1124 = vsel %vm1103, %v1097, 0
        %1126 = vmatpush.bf16.msra.mxu0 0
        %1127 = vmatpush.bf16.msra.mxu0 0
        %1128 = vmatpush.bf16.msra.mxu0 0
        %1129 = vmatpush.bf16.msra.mxu0 0
        %1130 = vmatpush.bf16.msra.mxu0 0
        %1131 = vmatpush.bf16.msra.mxu0 0
        %1132 = vmatpush.bf16.msra.mxu0 0
        %1133 = vmatpush.bf16.msra.mxu0 %v1124
        %1134 = vmatmul.bf16.gmra.mxu0 %v1121
        %v1135 = vpop.f32.mrf.mxu0
        %v1136 = vadd.f32 0.0, %v1135
        %v1137 = vpop.f32.mrf.mxu0
        %1138 = vdwg.mxu0
        %v1140 = vsel %vm961, %v1094, 0
        %v1143 = vsel %vm1103, %v1098, 0
        %1145 = vmatpush.bf16.msra.mxu0 0
        %1146 = vmatpush.bf16.msra.mxu0 0
        %1147 = vmatpush.bf16.msra.mxu0 0
        %1148 = vmatpush.bf16.msra.mxu0 0
        %1149 = vmatpush.bf16.msra.mxu0 0
        %1150 = vmatpush.bf16.msra.mxu0 0
        %1151 = vmatpush.bf16.msra.mxu0 0
        %1152 = vmatpush.bf16.msra.mxu0 %v1143
        %1153 = vmatmul.bf16.gmra.mxu0 %v1140
        %v1154 = vpop.f32.mrf.mxu0
        %v1155 = vadd.f32 0.0, %v1154
        %v1156 = vpop.f32.mrf.mxu0
        %1157 = vdwg.mxu0
        %v1159 = vsel %vm961, %v1095, 0
        %v1162 = vsel %vm1103, %v1099, 0
        %1164 = vmatpush.bf16.msra.mxu0 0
        %1165 = vmatpush.bf16.msra.mxu0 0
        %1166 = vmatpush.bf16.msra.mxu0 0
        %1167 = vmatpush.bf16.msra.mxu0 0
        %1168 = vmatpush.bf16.msra.mxu0 0
        %1169 = vmatpush.bf16.msra.mxu0 0
        %1170 = vmatpush.bf16.msra.mxu0 0
        %1171 = vmatpush.bf16.msra.mxu0 %v1162
        %1172 = vmatmul.bf16.gmra.mxu0 %v1159
        %v1173 = vpop.f32.mrf.mxu0
        %v1174 = vadd.f32 0.0, %v1173
        %v1175 = vpop.f32.mrf.mxu0
        %1176 = vdwg.mxu0
        %v1177 = vpack.c.bf16 %v1117, %v1117
        %v1178 = vpack.c.bf16 %v1136, %v1136
        %v1179 = vpack.c.bf16 %v1155, %v1155
        %v1180 = vpack.c.bf16 %v1174, %v1174
        %v1182 = vsel %vm961, %v1177, 0
        %v1185 = vsel %vm1103, %v645, 0
        %1187 = vmatpush.bf16.msra.mxu0 0
        %1188 = vmatpush.bf16.msra.mxu0 0
        %1189 = vmatpush.bf16.msra.mxu0 0
        %1190 = vmatpush.bf16.msra.mxu0 0
        %1191 = vmatpush.bf16.msra.mxu0 0
        %1192 = vmatpush.bf16.msra.mxu0 0
        %1193 = vmatpush.bf16.msra.mxu0 0
        %1194 = vmatpush.bf16.msra.mxu0 %v1185
        %1195 = vmatmul.bf16.gmra.mxu0 %v1182
        %v1196 = vpop.f32.mrf.mxu0
        %v1197 = vadd.f32 0.0, %v1196
        %v1198 = vpop.f32.mrf.mxu0
        %1199 = vdwg.mxu0
        %v1201 = vsel %vm961, %v1178, 0
        %v1204 = vsel %vm1103, %v646, 0
        %1206 = vmatpush.bf16.msra.mxu0 0
        %1207 = vmatpush.bf16.msra.mxu0 0
        %1208 = vmatpush.bf16.msra.mxu0 0
        %1209 = vmatpush.bf16.msra.mxu0 0
        %1210 = vmatpush.bf16.msra.mxu0 0
        %1211 = vmatpush.bf16.msra.mxu0 0
        %1212 = vmatpush.bf16.msra.mxu0 0
        %1213 = vmatpush.bf16.msra.mxu0 %v1204
        %1214 = vmatmul.bf16.gmra.mxu0 %v1201
        %v1215 = vpop.f32.mrf.mxu0
        %v1216 = vadd.f32 0.0, %v1215
        %v1217 = vpop.f32.mrf.mxu0
        %1218 = vdwg.mxu0
        %v1220 = vsel %vm961, %v1179, 0
        %v1223 = vsel %vm1103, %v647, 0
        %1225 = vmatpush.bf16.msra.mxu0 0
        %1226 = vmatpush.bf16.msra.mxu0 0
        %1227 = vmatpush.bf16.msra.mxu0 0
        %1228 = vmatpush.bf16.msra.mxu0 0
        %1229 = vmatpush.bf16.msra.mxu0 0
        %1230 = vmatpush.bf16.msra.mxu0 0
        %1231 = vmatpush.bf16.msra.mxu0 0
        %1232 = vmatpush.bf16.msra.mxu0 %v1223
        %1233 = vmatmul.bf16.gmra.mxu0 %v1220
        %v1234 = vpop.f32.mrf.mxu0
        %v1235 = vadd.f32 0.0, %v1234
        %v1236 = vpop.f32.mrf.mxu0
        %1237 = vdwg.mxu0
        %v1239 = vsel %vm961, %v1180, 0
        %v1242 = vsel %vm1103, %v648, 0
        %1244 = vmatpush.bf16.msra.mxu0 0
        %1245 = vmatpush.bf16.msra.mxu0 0
        %1246 = vmatpush.bf16.msra.mxu0 0
        %1247 = vmatpush.bf16.msra.mxu0 0
        %1248 = vmatpush.bf16.msra.mxu0 0
        %1249 = vmatpush.bf16.msra.mxu0 0
        %1250 = vmatpush.bf16.msra.mxu0 0
        %1251 = vmatpush.bf16.msra.mxu0 %v1242
        %1252 = vmatmul.bf16.gmra.mxu0 %v1239
        %v1253 = vpop.f32.mrf.mxu0
        %v1254 = vadd.f32 0.0, %v1253
        %v1255 = vpop.f32.mrf.mxu0
        %1256 = vdwg.mxu0
        %v1257 = vsel %vm661, %v1197, 0.0
        %v1258 = vsel %vm661, %v1216, 0.0
        %v1259 = vadd.f32 %v1257, %v1258
        %v1260 = vsel %vm661, %v1235, 0.0
        %v1261 = vadd.f32 %v1259, %v1260
        %v1262 = vsel %vm661, %v1254, 0.0
        %v1263 = vadd.f32 %v1261, %v1262
        %v1264 = vadd.f32 %v1263, %v590
        %v1265 = vld [vmem:[%s14] sm:$0x1]
        %v1266 = vld [vmem:[%s15] sm:$0x1]
        %v1267 = vsel %vm661, %v1264, 0.0
        %1268 = vadd.xlane.f32.xlu0 %v1267
        %v1269 = vpop.xlane.xlu0 %1268
        %v1270 = vrcp.pop 32.0
        %v1271 = vmul.f32 32.0, %v1270
        %v1272 = vsub.f32 1.0, %v1271
        %v1273 = vmul.f32 %v1270, %v1272
        %v1274 = vadd.f32 %v1270, %v1273
        %vm1275 = vweird.f32 %v1270
        %v1276 = vsel %vm1275, %v1270, %v1274
        %v1277 = vmul.f32 %v1269, %v1276
        %v1278 = vsub.f32 %v1264, %v1277
        %v1279 = vmul.f32 %v1278, %v1278
        %v1280 = vsel %vm661, %v1279, 0.0
        %1281 = vadd.xlane.f32.xlu0 %v1280
        %v1282 = vpop.xlane.xlu0 %1281
        %v1283 = vmul.f32 %v1282, %v1276
        %v1284 = vadd.f32 %v1283, 1e-05
        %v1285 = vrsqrt.pop %v1284
        %v1286 = vmul.f32 %v1285, %v1284
        %v1287 = vmul.f32 %v1286, %v1285
        %v1288 = vmul.f32 0.5, %v1287
        %v1289 = vsub.f32 1.5, %v1288
        %v1290 = vmul.f32 %v1285, %v1289
        %vm1291 = vweird.f32 %v1284
        %vm1292 = vweird.f32 %v1285
        %vm1293 = vmor %vm1291, %vm1292
        %v1294 = vsel %vm1293, %v1285, %v1290
        %v1295 = vmul.f32 %v1278, %v1294
        %v1297 = vperm.slane %v1265, 0
        %v1299 = vmul.f32 %v1295, %v1297
        %v1301 = vperm.slane %v1266, 0
        %v1303 = vadd.f32 %v1299, %v1301
        %v1304 = vpack.c.bf16 %v1303, %v1303
        %v1305 = vld [vmem:[%s6] sm:$0xf]
        %v1306 = vld [vmem:[%s6 + $0x4] sm:$0xf]
        %v1307 = vld [vmem:[%s6 + $0x8] sm:$0xf]
        %v1308 = vld [vmem:[%s6 + $0xc] sm:$0xf]
        %v1309 = vld [vmem:[%s6 + $0x10] sm:$0xf]
        %v1310 = vld [vmem:[%s6 + $0x14] sm:$0xf]
        %v1311 = vld [vmem:[%s6 + $0x18] sm:$0xf]
        %v1312 = vld [vmem:[%s6 + $0x1c] sm:$0xf]
        %v1313 = vld [vmem:[%s6 + $0x20] sm:$0xf]
        %v1314 = vld [vmem:[%s6 + $0x24] sm:$0xf]
        %v1315 = vld [vmem:[%s6 + $0x28] sm:$0xf]
        %v1316 = vld [vmem:[%s6 + $0x2c] sm:$0xf]
        %v1317 = vld [vmem:[%s6 + $0x30] sm:$0xf]
        %v1318 = vld [vmem:[%s6 + $0x34] sm:$0xf]
        %v1319 = vld [vmem:[%s6 + $0x38] sm:$0xf]
        %v1320 = vld [vmem:[%s6 + $0x3c] sm:$0xf]
        %v1321 = vld [vmem:[%s7] sm:$0xf]
        %v1322 = vld [vmem:[%s7 + $0x4] sm:$0xf]
        %v1323 = vld [vmem:[%s7 + $0x8] sm:$0xf]
        %v1324 = vld [vmem:[%s7 + $0xc] sm:$0xf]
        %v1325 = vld [vmem:[%s7 + $0x10] sm:$0xf]
        %v1326 = vld [vmem:[%s7 + $0x14] sm:$0xf]
        %v1327 = vld [vmem:[%s7 + $0x18] sm:$0xf]
        %v1328 = vld [vmem:[%s7 + $0x1c] sm:$0xf]
        %v1329 = vld [vmem:[%s7 + $0x20] sm:$0xf]
        %v1330 = vld [vmem:[%s7 + $0x24] sm:$0xf]
        %v1331 = vld [vmem:[%s7 + $0x28] sm:$0xf]
        %v1332 = vld [vmem:[%s7 + $0x2c] sm:$0xf]
        %v1333 = vld [vmem:[%s7 + $0x30] sm:$0xf]
        %v1334 = vld [vmem:[%s7 + $0x34] sm:$0xf]
        %v1335 = vld [vmem:[%s7 + $0x38] sm:$0xf]
        %v1336 = vld [vmem:[%s7 + $0x3c] sm:$0xf]
        %v1337 = vld [vmem:[%s8] sm:$0xf]
        %v1338 = vld [vmem:[%s8 + $0x4] sm:$0xf]
        %v1339 = vld [vmem:[%s8 + $0x8] sm:$0xf]
        %v1340 = vld [vmem:[%s8 + $0xc] sm:$0xf]
        %v1341 = vld [vmem:[%s8 + $0x10] sm:$0xf]
        %v1342 = vld [vmem:[%s8 + $0x14] sm:$0xf]
        %v1343 = vld [vmem:[%s8 + $0x18] sm:$0xf]
        %v1344 = vld [vmem:[%s8 + $0x1c] sm:$0xf]
        %v1345 = vld [vmem:[%s8 + $0x20] sm:$0xf]
        %v1346 = vld [vmem:[%s8 + $0x24] sm:$0xf]
        %v1347 = vld [vmem:[%s8 + $0x28] sm:$0xf]
        %v1348 = vld [vmem:[%s8 + $0x2c] sm:$0xf]
        %v1349 = vld [vmem:[%s8 + $0x30] sm:$0xf]
        %v1350 = vld [vmem:[%s8 + $0x34] sm:$0xf]
        %v1351 = vld [vmem:[%s8 + $0x38] sm:$0xf]
        %v1352 = vld [vmem:[%s8 + $0x3c] sm:$0xf]
        %v1353 = vld [vmem:[%s9] sm:$0xf]
        %v1354 = vld [vmem:[%s9 + $0x4] sm:$0xf]
        %v1355 = vld [vmem:[%s9 + $0x8] sm:$0xf]
        %v1356 = vld [vmem:[%s9 + $0xc] sm:$0xf]
        %v1361 = vunpack.c.l.b16 %v1305
        %v1362 = vunpack.c.l.b16 %v1306
        %v1363 = vunpack.c.l.b16 %v1307
        %v1364 = vunpack.c.l.b16 %v1308
        %v1365 = vpack.c.b16 %v1362, %v1361
        %v1366 = vpack.c.b16 %v1364, %v1363
        %v1370 = vsel %vm661, %v1304, 0
        %1372 = vmatpush.bf16.msra.mxu0 0
        %1373 = vmatpush.bf16.msra.mxu0 0
        %1374 = vmatpush.bf16.msra.mxu0 0
        %1375 = vmatpush.bf16.msra.mxu0 0
        %1376 = vmatpush.bf16.msra.mxu0 0
        %1377 = vmatpush.bf16.msra.mxu0 0
        %1378 = vmatpush.bf16.msra.mxu0 %v1366
        %1379 = vmatpush.bf16.msra.mxu0 %v1365
        %1380 = vmatmul.bf16.gmra.mxu0 %v1370
        %v1381 = vpop.f32.mrf.mxu0
        %v1382 = vadd.f32 0.0, %v1381
        %v1383 = vpop.f32.mrf.mxu0
        %1384 = vdwg.mxu0
        %v1389 = vunpack.c.l.b16 %v1309
        %v1390 = vunpack.c.l.b16 %v1310
        %v1391 = vunpack.c.l.b16 %v1311
        %v1392 = vunpack.c.l.b16 %v1312
        %v1393 = vpack.c.b16 %v1390, %v1389
        %v1394 = vpack.c.b16 %v1392, %v1391
        %1397 = vmatpush.bf16.msra.mxu0 0
        %1398 = vmatpush.bf16.msra.mxu0 0
        %1399 = vmatpush.bf16.msra.mxu0 0
        %1400 = vmatpush.bf16.msra.mxu0 0
        %1401 = vmatpush.bf16.msra.mxu0 0
        %1402 = vmatpush.bf16.msra.mxu0 0
        %1403 = vmatpush.bf16.msra.mxu0 %v1394
        %1404 = vmatpush.bf16.msra.mxu0 %v1393
        %1405 = vmatmul.bf16.gmra.mxu0 %v1370
        %v1406 = vpop.f32.mrf.mxu0
        %v1407 = vadd.f32 0.0, %v1406
        %v1408 = vpop.f32.mrf.mxu0
        %1409 = vdwg.mxu0
        %v1414 = vunpack.c.l.b16 %v1313
        %v1415 = vunpack.c.l.b16 %v1314
        %v1416 = vunpack.c.l.b16 %v1315
        %v1417 = vunpack.c.l.b16 %v1316
        %v1418 = vpack.c.b16 %v1415, %v1414
        %v1419 = vpack.c.b16 %v1417, %v1416
        %1422 = vmatpush.bf16.msra.mxu0 0
        %1423 = vmatpush.bf16.msra.mxu0 0
        %1424 = vmatpush.bf16.msra.mxu0 0
        %1425 = vmatpush.bf16.msra.mxu0 0
        %1426 = vmatpush.bf16.msra.mxu0 0
        %1427 = vmatpush.bf16.msra.mxu0 0
        %1428 = vmatpush.bf16.msra.mxu0 %v1419
        %1429 = vmatpush.bf16.msra.mxu0 %v1418
        %1430 = vmatmul.bf16.gmra.mxu0 %v1370
        %v1431 = vpop.f32.mrf.mxu0
        %v1432 = vadd.f32 0.0, %v1431
        %v1433 = vpop.f32.mrf.mxu0
        %1434 = vdwg.mxu0
        %v1439 = vunpack.c.l.b16 %v1317
        %v1440 = vunpack.c.l.b16 %v1318
        %v1441 = vunpack.c.l.b16 %v1319
        %v1442 = vunpack.c.l.b16 %v1320
        %v1443 = vpack.c.b16 %v1440, %v1439
        %v1444 = vpack.c.b16 %v1442, %v1441
        %1447 = vmatpush.bf16.msra.mxu0 0
        %1448 = vmatpush.bf16.msra.mxu0 0
        %1449 = vmatpush.bf16.msra.mxu0 0
        %1450 = vmatpush.bf16.msra.mxu0 0
        %1451 = vmatpush.bf16.msra.mxu0 0
        %1452 = vmatpush.bf16.msra.mxu0 0
        %1453 = vmatpush.bf16.msra.mxu0 %v1444
        %1454 = vmatpush.bf16.msra.mxu0 %v1443
        %1455 = vmatmul.bf16.gmra.mxu0 %v1370
        %v1456 = vpop.f32.mrf.mxu0
        %v1457 = vadd.f32 0.0, %v1456
        %v1458 = vpop.f32.mrf.mxu0
        %1459 = vdwg.mxu0
        %v1464 = vunpack.c.l.b16 %v1321
        %v1465 = vunpack.c.l.b16 %v1322
        %v1466 = vunpack.c.l.b16 %v1323
        %v1467 = vunpack.c.l.b16 %v1324
        %v1468 = vpack.c.b16 %v1465, %v1464
        %v1469 = vpack.c.b16 %v1467, %v1466
        %v1473 = vsel %vm661, %v596, 0
        %1475 = vmatpush.bf16.msra.mxu0 0
        %1476 = vmatpush.bf16.msra.mxu0 0
        %1477 = vmatpush.bf16.msra.mxu0 0
        %1478 = vmatpush.bf16.msra.mxu0 0
        %1479 = vmatpush.bf16.msra.mxu0 0
        %1480 = vmatpush.bf16.msra.mxu0 0
        %1481 = vmatpush.bf16.msra.mxu0 %v1469
        %1482 = vmatpush.bf16.msra.mxu0 %v1468
        %1483 = vmatmul.bf16.gmra.mxu0 %v1473
        %v1484 = vpop.f32.mrf.mxu0
        %v1485 = vadd.f32 0.0, %v1484
        %v1486 = vpop.f32.mrf.mxu0
        %1487 = vdwg.mxu0
        %v1492 = vunpack.c.l.b16 %v1325
        %v1493 = vunpack.c.l.b16 %v1326
        %v1494 = vunpack.c.l.b16 %v1327
        %v1495 = vunpack.c.l.b16 %v1328
        %v1496 = vpack.c.b16 %v1493, %v1492
        %v1497 = vpack.c.b16 %v1495, %v1494
        %1500 = vmatpush.bf16.msra.mxu0 0
        %1501 = vmatpush.bf16.msra.mxu0 0
        %1502 = vmatpush.bf16.msra.mxu0 0
        %1503 = vmatpush.bf16.msra.mxu0 0
        %1504 = vmatpush.bf16.msra.mxu0 0
        %1505 = vmatpush.bf16.msra.mxu0 0
        %1506 = vmatpush.bf16.msra.mxu0 %v1497
        %1507 = vmatpush.bf16.msra.mxu0 %v1496
        %1508 = vmatmul.bf16.gmra.mxu0 %v1473
        %v1509 = vpop.f32.mrf.mxu0
        %v1510 = vadd.f32 0.0, %v1509
        %v1511 = vpop.f32.mrf.mxu0
        %1512 = vdwg.mxu0
        %v1517 = vunpack.c.l.b16 %v1329
        %v1518 = vunpack.c.l.b16 %v1330
        %v1519 = vunpack.c.l.b16 %v1331
        %v1520 = vunpack.c.l.b16 %v1332
        %v1521 = vpack.c.b16 %v1518, %v1517
        %v1522 = vpack.c.b16 %v1520, %v1519
        %1525 = vmatpush.bf16.msra.mxu0 0
        %1526 = vmatpush.bf16.msra.mxu0 0
        %1527 = vmatpush.bf16.msra.mxu0 0
        %1528 = vmatpush.bf16.msra.mxu0 0
        %1529 = vmatpush.bf16.msra.mxu0 0
        %1530 = vmatpush.bf16.msra.mxu0 0
        %1531 = vmatpush.bf16.msra.mxu0 %v1522
        %1532 = vmatpush.bf16.msra.mxu0 %v1521
        %1533 = vmatmul.bf16.gmra.mxu0 %v1473
        %v1534 = vpop.f32.mrf.mxu0
        %v1535 = vadd.f32 0.0, %v1534
        %v1536 = vpop.f32.mrf.mxu0
        %1537 = vdwg.mxu0
        %v1542 = vunpack.c.l.b16 %v1333
        %v1543 = vunpack.c.l.b16 %v1334
        %v1544 = vunpack.c.l.b16 %v1335
        %v1545 = vunpack.c.l.b16 %v1336
        %v1546 = vpack.c.b16 %v1543, %v1542
        %v1547 = vpack.c.b16 %v1545, %v1544
        %1550 = vmatpush.bf16.msra.mxu0 0
        %1551 = vmatpush.bf16.msra.mxu0 0
        %1552 = vmatpush.bf16.msra.mxu0 0
        %1553 = vmatpush.bf16.msra.mxu0 0
        %1554 = vmatpush.bf16.msra.mxu0 0
        %1555 = vmatpush.bf16.msra.mxu0 0
        %1556 = vmatpush.bf16.msra.mxu0 %v1547
        %1557 = vmatpush.bf16.msra.mxu0 %v1546
        %1558 = vmatmul.bf16.gmra.mxu0 %v1473
        %v1559 = vpop.f32.mrf.mxu0
        %v1560 = vadd.f32 0.0, %v1559
        %v1561 = vpop.f32.mrf.mxu0
        %1562 = vdwg.mxu0
        %v1567 = vunpack.c.l.b16 %v1337
        %v1568 = vunpack.c.l.b16 %v1338
        %v1569 = vunpack.c.l.b16 %v1339
        %v1570 = vunpack.c.l.b16 %v1340
        %v1571 = vpack.c.b16 %v1568, %v1567
        %v1572 = vpack.c.b16 %v1570, %v1569
        %1575 = vmatpush.bf16.msra.mxu0 0
        %1576 = vmatpush.bf16.msra.mxu0 0
        %1577 = vmatpush.bf16.msra.mxu0 0
        %1578 = vmatpush.bf16.msra.mxu0 0
        %1579 = vmatpush.bf16.msra.mxu0 0
        %1580 = vmatpush.bf16.msra.mxu0 0
        %1581 = vmatpush.bf16.msra.mxu0 %v1572
        %1582 = vmatpush.bf16.msra.mxu0 %v1571
        %1583 = vmatmul.bf16.gmra.mxu0 %v1473
        %v1584 = vpop.f32.mrf.mxu0
        %v1585 = vadd.f32 0.0, %v1584
        %v1586 = vpop.f32.mrf.mxu0
        %1587 = vdwg.mxu0
        %v1592 = vunpack.c.l.b16 %v1341
        %v1593 = vunpack.c.l.b16 %v1342
        %v1594 = vunpack.c.l.b16 %v1343
        %v1595 = vunpack.c.l.b16 %v1344
        %v1596 = vpack.c.b16 %v1593, %v1592
        %v1597 = vpack.c.b16 %v1595, %v1594
        %1600 = vmatpush.bf16.msra.mxu0 0
        %1601 = vmatpush.bf16.msra.mxu0 0
        %1602 = vmatpush.bf16.msra.mxu0 0
        %1603 = vmatpush.bf16.msra.mxu0 0
        %1604 = vmatpush.bf16.msra.mxu0 0
        %1605 = vmatpush.bf16.msra.mxu0 0
        %1606 = vmatpush.bf16.msra.mxu0 %v1597
        %1607 = vmatpush.bf16.msra.mxu0 %v1596
        %1608 = vmatmul.bf16.gmra.mxu0 %v1473
        %v1609 = vpop.f32.mrf.mxu0
        %v1610 = vadd.f32 0.0, %v1609
        %v1611 = vpop.f32.mrf.mxu0
        %1612 = vdwg.mxu0
        %v1617 = vunpack.c.l.b16 %v1345
        %v1618 = vunpack.c.l.b16 %v1346
        %v1619 = vunpack.c.l.b16 %v1347
        %v1620 = vunpack.c.l.b16 %v1348
        %v1621 = vpack.c.b16 %v1618, %v1617
        %v1622 = vpack.c.b16 %v1620, %v1619
        %1625 = vmatpush.bf16.msra.mxu0 0
        %1626 = vmatpush.bf16.msra.mxu0 0
        %1627 = vmatpush.bf16.msra.mxu0 0
        %1628 = vmatpush.bf16.msra.mxu0 0
        %1629 = vmatpush.bf16.msra.mxu0 0
        %1630 = vmatpush.bf16.msra.mxu0 0
        %1631 = vmatpush.bf16.msra.mxu0 %v1622
        %1632 = vmatpush.bf16.msra.mxu0 %v1621
        %1633 = vmatmul.bf16.gmra.mxu0 %v1473
        %v1634 = vpop.f32.mrf.mxu0
        %v1635 = vadd.f32 0.0, %v1634
        %v1636 = vpop.f32.mrf.mxu0
        %1637 = vdwg.mxu0
        %v1642 = vunpack.c.l.b16 %v1349
        %v1643 = vunpack.c.l.b16 %v1350
        %v1644 = vunpack.c.l.b16 %v1351
        %v1645 = vunpack.c.l.b16 %v1352
        %v1646 = vpack.c.b16 %v1643, %v1642
        %v1647 = vpack.c.b16 %v1645, %v1644
        %1650 = vmatpush.bf16.msra.mxu0 0
        %1651 = vmatpush.bf16.msra.mxu0 0
        %1652 = vmatpush.bf16.msra.mxu0 0
        %1653 = vmatpush.bf16.msra.mxu0 0
        %1654 = vmatpush.bf16.msra.mxu0 0
        %1655 = vmatpush.bf16.msra.mxu0 0
        %1656 = vmatpush.bf16.msra.mxu0 %v1647
        %1657 = vmatpush.bf16.msra.mxu0 %v1646
        %1658 = vmatmul.bf16.gmra.mxu0 %v1473
        %v1659 = vpop.f32.mrf.mxu0
        %v1660 = vadd.f32 0.0, %v1659
        %v1661 = vpop.f32.mrf.mxu0
        %1662 = vdwg.mxu0
        %v1663 = vpack.c.bf16 %v1382, %v1382
        %v1664 = vpack.c.bf16 %v1407, %v1407
        %v1665 = vpack.c.bf16 %v1432, %v1432
        %v1666 = vpack.c.bf16 %v1457, %v1457
        %v1667 = vpack.c.bf16 %v1485, %v1485
        %v1668 = vpack.c.bf16 %v1510, %v1510
        %v1669 = vpack.c.bf16 %v1535, %v1535
        %v1670 = vpack.c.bf16 %v1560, %v1560
        %v1672 = vsel %vm961, %v1663, 0
        %v1675 = vsel %vm961, %v1667, 0
        %1677 = vmatpush.bf16.xpose.msra.mxu0 0
        %1678 = vmatpush.bf16.xpose.msra.mxu0 0
        %1679 = vmatpush.bf16.xpose.msra.mxu0 0
        %1680 = vmatpush.bf16.xpose.msra.mxu0 0
        %1681 = vmatpush.bf16.xpose.msra.mxu0 0
        %1682 = vmatpush.bf16.xpose.msra.mxu0 0
        %1683 = vmatpush.bf16.xpose.msra.mxu0 0
        %1684 = vmatpush.bf16.xpose.msra.mxu0 %v1675
        %1685 = vmatmul.bf16.gmra.mxu0 %v1672
        %v1686 = vpop.f32.mrf.mxu0
        %v1687 = vadd.f32 0.0, %v1686
        %v1688 = vpop.f32.mrf.mxu0
        %1689 = vdwg.mxu0
        %v1691 = vsel %vm961, %v1664, 0
        %v1694 = vsel %vm961, %v1668, 0
        %1696 = vmatpush.bf16.xpose.msra.mxu0 0
        %1697 = vmatpush.bf16.xpose.msra.mxu0 0
        %1698 = vmatpush.bf16.xpose.msra.mxu0 0
        %1699 = vmatpush.bf16.xpose.msra.mxu0 0
        %1700 = vmatpush.bf16.xpose.msra.mxu0 0
        %1701 = vmatpush.bf16.xpose.msra.mxu0 0
        %1702 = vmatpush.bf16.xpose.msra.mxu0 0
        %1703 = vmatpush.bf16.xpose.msra.mxu0 %v1694
        %1704 = vmatmul.bf16.gmra.mxu0 %v1691
        %v1705 = vpop.f32.mrf.mxu0
        %v1706 = vadd.f32 0.0, %v1705
        %v1707 = vpop.f32.mrf.mxu0
        %1708 = vdwg.mxu0
        %v1710 = vsel %vm961, %v1665, 0
        %v1713 = vsel %vm961, %v1669, 0
        %1715 = vmatpush.bf16.xpose.msra.mxu0 0
        %1716 = vmatpush.bf16.xpose.msra.mxu0 0
        %1717 = vmatpush.bf16.xpose.msra.mxu0 0
        %1718 = vmatpush.bf16.xpose.msra.mxu0 0
        %1719 = vmatpush.bf16.xpose.msra.mxu0 0
        %1720 = vmatpush.bf16.xpose.msra.mxu0 0
        %1721 = vmatpush.bf16.xpose.msra.mxu0 0
        %1722 = vmatpush.bf16.xpose.msra.mxu0 %v1713
        %1723 = vmatmul.bf16.gmra.mxu0 %v1710
        %v1724 = vpop.f32.mrf.mxu0
        %v1725 = vadd.f32 0.0, %v1724
        %v1726 = vpop.f32.mrf.mxu0
        %1727 = vdwg.mxu0
        %v1729 = vsel %vm961, %v1666, 0
        %v1732 = vsel %vm961, %v1670, 0
        %1734 = vmatpush.bf16.xpose.msra.mxu0 0
        %1735 = vmatpush.bf16.xpose.msra.mxu0 0
        %1736 = vmatpush.bf16.xpose.msra.mxu0 0
        %1737 = vmatpush.bf16.xpose.msra.mxu0 0
        %1738 = vmatpush.bf16.xpose.msra.mxu0 0
        %1739 = vmatpush.bf16.xpose.msra.mxu0 0
        %1740 = vmatpush.bf16.xpose.msra.mxu0 0
        %1741 = vmatpush.bf16.xpose.msra.mxu0 %v1732
        %1742 = vmatmul.bf16.gmra.mxu0 %v1729
        %v1743 = vpop.f32.mrf.mxu0
        %v1744 = vadd.f32 0.0, %v1743
        %v1745 = vpop.f32.mrf.mxu0
        %1746 = vdwg.mxu0
        %v1747 = vmul.f32 %v1687, 0.17677669
        %v1748 = vmul.f32 %v1706, 0.17677669
        %v1749 = vmul.f32 %v1725, 0.17677669
        %v1750 = vmul.f32 %v1744, 0.17677669
        %v1751 = vsel %vm961, %v1747, -inf
        %1752 = vmax.xlane.f32.xlu0 %v1751
        %v1753 = vpop.xlane.xlu0 %1752
        %v1754 = vsel %vm961, %v1748, -inf
        %1755 = vmax.xlane.f32.xlu0 %v1754
        %v1756 = vpop.xlane.xlu0 %1755
        %v1757 = vsel %vm961, %v1749, -inf
        %1758 = vmax.xlane.f32.xlu0 %v1757
        %v1759 = vpop.xlane.xlu0 %1758
        %v1760 = vsel %vm961, %v1750, -inf
        %1761 = vmax.xlane.f32.xlu0 %v1760
        %v1762 = vpop.xlane.xlu0 %1761
        %v1763 = vsub.f32 %v1747, %v1753
        %v1764 = vsub.f32 %v1748, %v1756
        %v1765 = vsub.f32 %v1749, %v1759
        %v1766 = vsub.f32 %v1750, %v1762
        %v1767 = vmul.f32 %v1763, 1.442695
        %v1768 = vpow.pop %v1767
        %v1769 = vmul.f32 %v1764, 1.442695
        %v1770 = vpow.pop %v1769
        %v1771 = vmul.f32 %v1765, 1.442695
        %v1772 = vpow.pop %v1771
        %v1773 = vmul.f32 %v1766, 1.442695
        %v1774 = vpow.pop %v1773
        %v1775 = vsel %vm961, %v1768, 0.0
        %1776 = vadd.xlane.f32.xlu0 %v1775
        %v1777 = vpop.xlane.xlu0 %1776
        %v1778 = vsel %vm961, %v1770, 0.0
        %1779 = vadd.xlane.f32.xlu0 %v1778
        %v1780 = vpop.xlane.xlu0 %1779
        %v1781 = vsel %vm961, %v1772, 0.0
        %1782 = vadd.xlane.f32.xlu0 %v1781
        %v1783 = vpop.xlane.xlu0 %1782
        %v1784 = vsel %vm961, %v1774, 0.0
        %1785 = vadd.xlane.f32.xlu0 %v1784
        %v1786 = vpop.xlane.xlu0 %1785
        %v1787 = vrcp.pop %v1777
        %v1788 = vrcp.pop %v1780
        %v1789 = vrcp.pop %v1783
        %v1790 = vrcp.pop %v1786
        %v1791 = vmul.f32 %v1768, %v1787
        %v1792 = vmul.f32 %v1770, %v1788
        %v1793 = vmul.f32 %v1772, %v1789
        %v1794 = vmul.f32 %v1774, %v1790
        %v1795 = vpack.c.bf16 %v1791, %v1791
        %v1796 = vpack.c.bf16 %v1792, %v1792
        %v1797 = vpack.c.bf16 %v1793, %v1793
        %v1798 = vpack.c.bf16 %v1794, %v1794
        %v1799 = vpack.c.bf16 %v1585, %v1585
        %v1800 = vpack.c.bf16 %v1610, %v1610
        %v1801 = vpack.c.bf16 %v1635, %v1635
        %v1802 = vpack.c.bf16 %v1660, %v1660
        %v1804 = vsel %vm961, %v1795, 0
        %v1807 = vsel %vm1103, %v1799, 0
        %1809 = vmatpush.bf16.msra.mxu0 0
        %1810 = vmatpush.bf16.msra.mxu0 0
        %1811 = vmatpush.bf16.msra.mxu0 0
        %1812 = vmatpush.bf16.msra.mxu0 0
        %1813 = vmatpush.bf16.msra.mxu0 0
        %1814 = vmatpush.bf16.msra.mxu0 0
        %1815 = vmatpush.bf16.msra.mxu0 0
        %1816 = vmatpush.bf16.msra.mxu0 %v1807
        %1817 = vmatmul.bf16.gmra.mxu0 %v1804
        %v1818 = vpop.f32.mrf.mxu0
        %v1819 = vadd.f32 0.0, %v1818
        %v1820 = vpop.f32.mrf.mxu0
        %1821 = vdwg.mxu0
        %v1823 = vsel %vm961, %v1796, 0
        %v1826 = vsel %vm1103, %v1800, 0
        %1828 = vmatpush.bf16.msra.mxu0 0
        %1829 = vmatpush.bf16.msra.mxu0 0
        %1830 = vmatpush.bf16.msra.mxu0 0
        %1831 = vmatpush.bf16.msra.mxu0 0
        %1832 = vmatpush.bf16.msra.mxu0 0
        %1833 = vmatpush.bf16.msra.mxu0 0
        %1834 = vmatpush.bf16.msra.mxu0 0
        %1835 = vmatpush.bf16.msra.mxu0 %v1826
        %1836 = vmatmul.bf16.gmra.mxu0 %v1823
        %v1837 = vpop.f32.mrf.mxu0
        %v1838 = vadd.f32 0.0, %v1837
        %v1839 = vpop.f32.mrf.mxu0
        %1840 = vdwg.mxu0
        %v1842 = vsel %vm961, %v1797, 0
        %v1845 = vsel %vm1103, %v1801, 0
        %1847 = vmatpush.bf16.msra.mxu0 0
        %1848 = vmatpush.bf16.msra.mxu0 0
        %1849 = vmatpush.bf16.msra.mxu0 0
        %1850 = vmatpush.bf16.msra.mxu0 0
        %1851 = vmatpush.bf16.msra.mxu0 0
        %1852 = vmatpush.bf16.msra.mxu0 0
        %1853 = vmatpush.bf16.msra.mxu0 0
        %1854 = vmatpush.bf16.msra.mxu0 %v1845
        %1855 = vmatmul.bf16.gmra.mxu0 %v1842
        %v1856 = vpop.f32.mrf.mxu0
        %v1857 = vadd.f32 0.0, %v1856
        %v1858 = vpop.f32.mrf.mxu0
        %1859 = vdwg.mxu0
        %v1861 = vsel %vm961, %v1798, 0
        %v1864 = vsel %vm1103, %v1802, 0
        %1866 = vmatpush.bf16.msra.mxu0 0
        %1867 = vmatpush.bf16.msra.mxu0 0
        %1868 = vmatpush.bf16.msra.mxu0 0
        %1869 = vmatpush.bf16.msra.mxu0 0
        %1870 = vmatpush.bf16.msra.mxu0 0
        %1871 = vmatpush.bf16.msra.mxu0 0
        %1872 = vmatpush.bf16.msra.mxu0 0
        %1873 = vmatpush.bf16.msra.mxu0 %v1864
        %1874 = vmatmul.bf16.gmra.mxu0 %v1861
        %v1875 = vpop.f32.mrf.mxu0
        %v1876 = vadd.f32 0.0, %v1875
        %v1877 = vpop.f32.mrf.mxu0
        %1878 = vdwg.mxu0
        %v1879 = vpack.c.bf16 %v1819, %v1819
        %v1880 = vpack.c.bf16 %v1838, %v1838
        %v1881 = vpack.c.bf16 %v1857, %v1857
        %v1882 = vpack.c.bf16 %v1876, %v1876
        %v1884 = vsel %vm961, %v1879, 0
        %v1887 = vsel %vm1103, %v1353, 0
        %1889 = vmatpush.bf16.msra.mxu0 0
        %1890 = vmatpush.bf16.msra.mxu0 0
        %1891 = vmatpush.bf16.msra.mxu0 0
        %1892 = vmatpush.bf16.msra.mxu0 0
        %1893 = vmatpush.bf16.msra.mxu0 0
        %1894 = vmatpush.bf16.msra.mxu0 0
        %1895 = vmatpush.bf16.msra.mxu0 0
        %1896 = vmatpush.bf16.msra.mxu0 %v1887
        %1897 = vmatmul.bf16.gmra.mxu0 %v1884
        %v1898 = vpop.f32.mrf.mxu0
        %v1899 = vadd.f32 0.0, %v1898
        %v1900 = vpop.f32.mrf.mxu0
        %1901 = vdwg.mxu0
        %v1903 = vsel %vm961, %v1880, 0
        %v1906 = vsel %vm1103, %v1354, 0
        %1908 = vmatpush.bf16.msra.mxu0 0
        %1909 = vmatpush.bf16.msra.mxu0 0
        %1910 = vmatpush.bf16.msra.mxu0 0
        %1911 = vmatpush.bf16.msra.mxu0 0
        %1912 = vmatpush.bf16.msra.mxu0 0
        %1913 = vmatpush.bf16.msra.mxu0 0
        %1914 = vmatpush.bf16.msra.mxu0 0
        %1915 = vmatpush.bf16.msra.mxu0 %v1906
        %1916 = vmatmul.bf16.gmra.mxu0 %v1903
        %v1917 = vpop.f32.mrf.mxu0
        %v1918 = vadd.f32 0.0, %v1917
        %v1919 = vpop.f32.mrf.mxu0
        %1920 = vdwg.mxu0
        %v1922 = vsel %vm961, %v1881, 0
        %v1925 = vsel %vm1103, %v1355, 0
        %1927 = vmatpush.bf16.msra.mxu0 0
        %1928 = vmatpush.bf16.msra.mxu0 0
        %1929 = vmatpush.bf16.msra.mxu0 0
        %1930 = vmatpush.bf16.msra.mxu0 0
        %1931 = vmatpush.bf16.msra.mxu0 0
        %1932 = vmatpush.bf16.msra.mxu0 0
        %1933 = vmatpush.bf16.msra.mxu0 0
        %1934 = vmatpush.bf16.msra.mxu0 %v1925
        %1935 = vmatmul.bf16.gmra.mxu0 %v1922
        %v1936 = vpop.f32.mrf.mxu0
        %v1937 = vadd.f32 0.0, %v1936
        %v1938 = vpop.f32.mrf.mxu0
        %1939 = vdwg.mxu0
        %v1941 = vsel %vm961, %v1882, 0
        %v1944 = vsel %vm1103, %v1356, 0
        %1946 = vmatpush.bf16.msra.mxu0 0
        %1947 = vmatpush.bf16.msra.mxu0 0
        %1948 = vmatpush.bf16.msra.mxu0 0
        %1949 = vmatpush.bf16.msra.mxu0 0
        %1950 = vmatpush.bf16.msra.mxu0 0
        %1951 = vmatpush.bf16.msra.mxu0 0
        %1952 = vmatpush.bf16.msra.mxu0 0
        %1953 = vmatpush.bf16.msra.mxu0 %v1944
        %1954 = vmatmul.bf16.gmra.mxu0 %v1941
        %v1955 = vpop.f32.mrf.mxu0
        %v1956 = vadd.f32 0.0, %v1955
        %v1957 = vpop.f32.mrf.mxu0
        %1958 = vdwg.mxu0
        %v1959 = vsel %vm661, %v1899, 0.0
        %v1960 = vsel %vm661, %v1918, 0.0
        %v1961 = vadd.f32 %v1959, %v1960
        %v1962 = vsel %vm661, %v1937, 0.0
        %v1963 = vadd.f32 %v1961, %v1962
        %v1964 = vsel %vm661, %v1956, 0.0
        %v1965 = vadd.f32 %v1963, %v1964
        %v1966 = vadd.f32 %v1965, %v1303
        %s1967 = scalar_lea.vmem %s14, 1
        %v1968 = vld [vmem:[%s1967] sm:$0x1]
        %s1969 = scalar_lea.vmem %s15, 1
        %v1970 = vld [vmem:[%s1969] sm:$0x1]
        %v1971 = vsel %vm661, %v1966, 0.0
        %1972 = vadd.xlane.f32.xlu0 %v1971
        %v1973 = vpop.xlane.xlu0 %1972
        %v1974 = vmul.f32 %v1973, %v1276
        %v1975 = vsub.f32 %v1966, %v1974
        %v1976 = vmul.f32 %v1975, %v1975
        %v1977 = vsel %vm661, %v1976, 0.0
        %1978 = vadd.xlane.f32.xlu0 %v1977
        %v1979 = vpop.xlane.xlu0 %1978
        %v1980 = vmul.f32 %v1979, %v1276
        %v1981 = vadd.f32 %v1980, 1e-05
        %v1982 = vrsqrt.pop %v1981
        %v1983 = vmul.f32 %v1982, %v1981
        %v1984 = vmul.f32 %v1983, %v1982
        %v1985 = vmul.f32 0.5, %v1984
        %v1986 = vsub.f32 1.5, %v1985
        %v1987 = vmul.f32 %v1982, %v1986
        %vm1988 = vweird.f32 %v1981
        %vm1989 = vweird.f32 %v1982
        %vm1990 = vmor %vm1988, %vm1989
        %v1991 = vsel %vm1990, %v1982, %v1987
        %v1992 = vmul.f32 %v1975, %v1991
        %v1994 = vperm.slane %v1968, 0
        %v1996 = vmul.f32 %v1992, %v1994
        %v1998 = vperm.slane %v1970, 0
        %v2000 = vadd.f32 %v1996, %v1998
        %v2001 = vpack.c.bf16 %v2000, %v2000
        %v2002 = vld [vmem:[%s10] sm:$0xf]
        %v2003 = vld [vmem:[%s10 + $0x4] sm:$0xf]
        %v2004 = vld [vmem:[%s10 + $0x8] sm:$0xf]
        %v2005 = vld [vmem:[%s10 + $0xc] sm:$0xf]
        %v2006 = vld [vmem:[%s11] sm:$0x1]
        %v2008 = vperm.slane %v2006, 0
        %v2014 = vunpack.c.l.b16 %v2002
        %v2015 = vunpack.c.l.b16 %v2003
        %v2016 = vunpack.c.l.b16 %v2004
        %v2017 = vunpack.c.l.b16 %v2005
        %v2018 = vpack.c.b16 %v2015, %v2014
        %v2019 = vpack.c.b16 %v2017, %v2016
        %v2023 = vsel %vm661, %v2001, 0
        %2025 = vmatpush.bf16.msra.mxu0 0
        %2026 = vmatpush.bf16.msra.mxu0 0
        %2027 = vmatpush.bf16.msra.mxu0 0
        %2028 = vmatpush.bf16.msra.mxu0 0
        %2029 = vmatpush.bf16.msra.mxu0 0
        %2030 = vmatpush.bf16.msra.mxu0 0
        %2031 = vmatpush.bf16.msra.mxu0 %v2019
        %2032 = vmatpush.bf16.msra.mxu0 %v2018
        %2033 = vmatmul.bf16.gmra.mxu0 %v2023
        %v2034 = vpop.f32.mrf.mxu0
        %v2035 = vadd.f32 %v2008, %v2034
        %v2036 = vpop.f32.mrf.mxu0
        %2037 = vdwg.mxu0
        %v2038 = vmax.f32 %v2035, 0.0
        %v2039 = vpack.c.bf16 %v2038, %v2038
        %v2040 = vld [vmem:[%s12] sm:$0xf]
        %v2041 = vld [vmem:[%s12 + $0x4] sm:$0xf]
        %v2042 = vld [vmem:[%s12 + $0x8] sm:$0xf]
        %v2043 = vld [vmem:[%s12 + $0xc] sm:$0xf]
        %v2044 = vld [vmem:[%s12 + $0x10] sm:$0xf]
        %v2045 = vld [vmem:[%s12 + $0x14] sm:$0xf]
        %v2046 = vld [vmem:[%s12 + $0x18] sm:$0xf]
        %v2047 = vld [vmem:[%s12 + $0x1c] sm:$0xf]
        %v2048 = vld [vmem:[%s12 + $0x20] sm:$0xf]
        %v2049 = vld [vmem:[%s12 + $0x24] sm:$0xf]
        %v2050 = vld [vmem:[%s12 + $0x28] sm:$0xf]
        %v2051 = vld [vmem:[%s12 + $0x2c] sm:$0xf]
        %v2052 = vld [vmem:[%s12 + $0x30] sm:$0xf]
        %v2053 = vld [vmem:[%s12 + $0x34] sm:$0xf]
        %v2054 = vld [vmem:[%s12 + $0x38] sm:$0xf]
        %v2055 = vld [vmem:[%s12 + $0x3c] sm:$0xf]
        %v2056 = vld [vmem:[%s13] sm:$0x1]
        %v2058 = vperm.slane %v2056, 0
        %v2076 = vunpack.c.l.b16 %v2040
        %v2077 = vunpack.c.l.b16 %v2041
        %v2078 = vunpack.c.l.b16 %v2042
        %v2079 = vunpack.c.l.b16 %v2043
        %v2080 = vunpack.c.l.b16 %v2044
        %v2081 = vunpack.c.l.b16 %v2045
        %v2082 = vunpack.c.l.b16 %v2046
        %v2083 = vunpack.c.l.b16 %v2047
        %v2084 = vunpack.c.l.b16 %v2048
        %v2085 = vunpack.c.l.b16 %v2049
        %v2086 = vunpack.c.l.b16 %v2050
        %v2087 = vunpack.c.l.b16 %v2051
        %v2088 = vunpack.c.l.b16 %v2052
        %v2089 = vunpack.c.l.b16 %v2053
        %v2090 = vunpack.c.l.b16 %v2054
        %v2091 = vunpack.c.l.b16 %v2055
        %v2092 = vpack.c.b16 %v2077, %v2076
        %v2093 = vpack.c.b16 %v2079, %v2078
        %v2094 = vpack.c.b16 %v2081, %v2080
        %v2095 = vpack.c.b16 %v2083, %v2082
        %v2096 = vpack.c.b16 %v2085, %v2084
        %v2097 = vpack.c.b16 %v2087, %v2086
        %v2098 = vpack.c.b16 %v2089, %v2088
        %v2099 = vpack.c.b16 %v2091, %v2090
        %2108 = vmatpush.bf16.msra.mxu0 %v2099
        %2109 = vmatpush.bf16.msra.mxu0 %v2098
        %2110 = vmatpush.bf16.msra.mxu0 %v2097
        %2111 = vmatpush.bf16.msra.mxu0 %v2096
        %2112 = vmatpush.bf16.msra.mxu0 %v2095
        %2113 = vmatpush.bf16.msra.mxu0 %v2094
        %2114 = vmatpush.bf16.msra.mxu0 %v2093
        %2115 = vmatpush.bf16.msra.mxu0 %v2092
        %2116 = vmatmul.bf16.gmra.mxu0 %v2039
        %v2117 = vpop.f32.mrf.mxu0
        %v2118 = vadd.f32 %v2058, %v2117
        %v2119 = vpop.f32.mrf.mxu0
        %2120 = vdwg.mxu0
        %v2121 = vadd.f32 %v2118, %v2000
        %s2122 = scalar_lea.vmem %s14, 2
        %v2123 = vld [vmem:[%s2122] sm:$0x1]
        %s2124 = scalar_lea.vmem %s15, 2
        %v2125 = vld [vmem:[%s2124] sm:$0x1]
        %v2126 = vsel %vm661, %v2121, 0.0
        %2127 = vadd.xlane.f32.xlu0 %v2126
        %v2128 = vpop.xlane.xlu0 %2127
        %v2129 = vmul.f32 %v2128, %v1276
        %v2130 = vsub.f32 %v2121, %v2129
        %v2131 = vmul.f32 %v2130, %v2130
        %v2132 = vsel %vm661, %v2131, 0.0
        %2133 = vadd.xlane.f32.xlu0 %v2132
        %v2134 = vpop.xlane.xlu0 %2133
        %v2135 = vmul.f32 %v2134, %v1276
        %v2136 = vadd.f32 %v2135, 1e-05
        %v2137 = vrsqrt.pop %v2136
        %v2138 = vmul.f32 %v2137, %v2136
        %v2139 = vmul.f32 %v2138, %v2137
        %v2140 = vmul.f32 0.5, %v2139
        %v2141 = vsub.f32 1.5, %v2140
        %v2142 = vmul.f32 %v2137, %v2141
        %vm2143 = vweird.f32 %v2136
        %vm2144 = vweird.f32 %v2137
        %vm2145 = vmor %vm2143, %vm2144
        %v2146 = vsel %vm2145, %v2137, %v2142
        %v2147 = vmul.f32 %v2130, %v2146
        %v2149 = vperm.slane %v2123, 0
        %v2151 = vmul.f32 %v2147, %v2149
        %v2153 = vperm.slane %v2125, 0
        %v2155 = vadd.f32 %v2151, %v2153
        %v2156 = vpack.c.bf16 %v2155, %v2155
        %s2157 = scalar_lea.vmem %s2, 64
        %v2158 = vld [vmem:[%s2157] sm:$0xf]
        %v2159 = vld [vmem:[%s2157 + $0x4] sm:$0xf]
        %v2160 = vld [vmem:[%s2157 + $0x8] sm:$0xf]
        %v2161 = vld [vmem:[%s2157 + $0xc] sm:$0xf]
        %v2162 = vld [vmem:[%s2157 + $0x10] sm:$0xf]
        %v2163 = vld [vmem:[%s2157 + $0x14] sm:$0xf]
        %v2164 = vld [vmem:[%s2157 + $0x18] sm:$0xf]
        %v2165 = vld [vmem:[%s2157 + $0x1c] sm:$0xf]
        %v2166 = vld [vmem:[%s2157 + $0x20] sm:$0xf]
        %v2167 = vld [vmem:[%s2157 + $0x24] sm:$0xf]
        %v2168 = vld [vmem:[%s2157 + $0x28] sm:$0xf]
        %v2169 = vld [vmem:[%s2157 + $0x2c] sm:$0xf]
        %v2170 = vld [vmem:[%s2157 + $0x30] sm:$0xf]
        %v2171 = vld [vmem:[%s2157 + $0x34] sm:$0xf]
        %v2172 = vld [vmem:[%s2157 + $0x38] sm:$0xf]
        %v2173 = vld [vmem:[%s2157 + $0x3c] sm:$0xf]
        %s2174 = scalar_lea.vmem %s3, 64
        %v2175 = vld [vmem:[%s2174] sm:$0xf]
        %v2176 = vld [vmem:[%s2174 + $0x4] sm:$0xf]
        %v2177 = vld [vmem:[%s2174 + $0x8] sm:$0xf]
        %v2178 = vld [vmem:[%s2174 + $0xc] sm:$0xf]
        %v2179 = vld [vmem:[%s2174 + $0x10] sm:$0xf]
        %v2180 = vld [vmem:[%s2174 + $0x14] sm:$0xf]
        %v2181 = vld [vmem:[%s2174 + $0x18] sm:$0xf]
        %v2182 = vld [vmem:[%s2174 + $0x1c] sm:$0xf]
        %v2183 = vld [vmem:[%s2174 + $0x20] sm:$0xf]
        %v2184 = vld [vmem:[%s2174 + $0x24] sm:$0xf]
        %v2185 = vld [vmem:[%s2174 + $0x28] sm:$0xf]
        %v2186 = vld [vmem:[%s2174 + $0x2c] sm:$0xf]
        %v2187 = vld [vmem:[%s2174 + $0x30] sm:$0xf]
        %v2188 = vld [vmem:[%s2174 + $0x34] sm:$0xf]
        %v2189 = vld [vmem:[%s2174 + $0x38] sm:$0xf]
        %v2190 = vld [vmem:[%s2174 + $0x3c] sm:$0xf]
        %s2191 = scalar_lea.vmem %s4, 64
        %v2192 = vld [vmem:[%s2191] sm:$0xf]
        %v2193 = vld [vmem:[%s2191 + $0x4] sm:$0xf]
        %v2194 = vld [vmem:[%s2191 + $0x8] sm:$0xf]
        %v2195 = vld [vmem:[%s2191 + $0xc] sm:$0xf]
        %v2196 = vld [vmem:[%s2191 + $0x10] sm:$0xf]
        %v2197 = vld [vmem:[%s2191 + $0x14] sm:$0xf]
        %v2198 = vld [vmem:[%s2191 + $0x18] sm:$0xf]
        %v2199 = vld [vmem:[%s2191 + $0x1c] sm:$0xf]
        %v2200 = vld [vmem:[%s2191 + $0x20] sm:$0xf]
        %v2201 = vld [vmem:[%s2191 + $0x24] sm:$0xf]
        %v2202 = vld [vmem:[%s2191 + $0x28] sm:$0xf]
        %v2203 = vld [vmem:[%s2191 + $0x2c] sm:$0xf]
        %v2204 = vld [vmem:[%s2191 + $0x30] sm:$0xf]
        %v2205 = vld [vmem:[%s2191 + $0x34] sm:$0xf]
        %v2206 = vld [vmem:[%s2191 + $0x38] sm:$0xf]
        %v2207 = vld [vmem:[%s2191 + $0x3c] sm:$0xf]
        %s2208 = scalar_lea.vmem %s5, 16
        %v2209 = vld [vmem:[%s2208] sm:$0xf]
        %v2210 = vld [vmem:[%s2208 + $0x4] sm:$0xf]
        %v2211 = vld [vmem:[%s2208 + $0x8] sm:$0xf]
        %v2212 = vld [vmem:[%s2208 + $0xc] sm:$0xf]
        %v2217 = vunpack.c.l.b16 %v2158
        %v2218 = vunpack.c.l.b16 %v2159
        %v2219 = vunpack.c.l.b16 %v2160
        %v2220 = vunpack.c.l.b16 %v2161
        %v2221 = vpack.c.b16 %v2218, %v2217
        %v2222 = vpack.c.b16 %v2220, %v2219
        %v2226 = vsel %vm661, %v2156, 0
        %2228 = vmatpush.bf16.msra.mxu0 0
        %2229 = vmatpush.bf16.msra.mxu0 0
        %2230 = vmatpush.bf16.msra.mxu0 0
        %2231 = vmatpush.bf16.msra.mxu0 0
        %2232 = vmatpush.bf16.msra.mxu0 0
        %2233 = vmatpush.bf16.msra.mxu0 0
        %2234 = vmatpush.bf16.msra.mxu0 %v2222
        %2235 = vmatpush.bf16.msra.mxu0 %v2221
        %2236 = vmatmul.bf16.gmra.mxu0 %v2226
        %v2237 = vpop.f32.mrf.mxu0
        %v2238 = vadd.f32 0.0, %v2237
        %v2239 = vpop.f32.mrf.mxu0
        %2240 = vdwg.mxu0
        %v2245 = vunpack.c.l.b16 %v2162
        %v2246 = vunpack.c.l.b16 %v2163
        %v2247 = vunpack.c.l.b16 %v2164
        %v2248 = vunpack.c.l.b16 %v2165
        %v2249 = vpack.c.b16 %v2246, %v2245
        %v2250 = vpack.c.b16 %v2248, %v2247
        %2253 = vmatpush.bf16.msra.mxu0 0
        %2254 = vmatpush.bf16.msra.mxu0 0
        %2255 = vmatpush.bf16.msra.mxu0 0
        %2256 = vmatpush.bf16.msra.mxu0 0
        %2257 = vmatpush.bf16.msra.mxu0 0
        %2258 = vmatpush.bf16.msra.mxu0 0
        %2259 = vmatpush.bf16.msra.mxu0 %v2250
        %2260 = vmatpush.bf16.msra.mxu0 %v2249
        %2261 = vmatmul.bf16.gmra.mxu0 %v2226
        %v2262 = vpop.f32.mrf.mxu0
        %v2263 = vadd.f32 0.0, %v2262
        %v2264 = vpop.f32.mrf.mxu0
        %2265 = vdwg.mxu0
        %v2270 = vunpack.c.l.b16 %v2166
        %v2271 = vunpack.c.l.b16 %v2167
        %v2272 = vunpack.c.l.b16 %v2168
        %v2273 = vunpack.c.l.b16 %v2169
        %v2274 = vpack.c.b16 %v2271, %v2270
        %v2275 = vpack.c.b16 %v2273, %v2272
        %2278 = vmatpush.bf16.msra.mxu0 0
        %2279 = vmatpush.bf16.msra.mxu0 0
        %2280 = vmatpush.bf16.msra.mxu0 0
        %2281 = vmatpush.bf16.msra.mxu0 0
        %2282 = vmatpush.bf16.msra.mxu0 0
        %2283 = vmatpush.bf16.msra.mxu0 0
        %2284 = vmatpush.bf16.msra.mxu0 %v2275
        %2285 = vmatpush.bf16.msra.mxu0 %v2274
        %2286 = vmatmul.bf16.gmra.mxu0 %v2226
        %v2287 = vpop.f32.mrf.mxu0
        %v2288 = vadd.f32 0.0, %v2287
        %v2289 = vpop.f32.mrf.mxu0
        %2290 = vdwg.mxu0
        %v2295 = vunpack.c.l.b16 %v2170
        %v2296 = vunpack.c.l.b16 %v2171
        %v2297 = vunpack.c.l.b16 %v2172
        %v2298 = vunpack.c.l.b16 %v2173
        %v2299 = vpack.c.b16 %v2296, %v2295
        %v2300 = vpack.c.b16 %v2298, %v2297
        %2303 = vmatpush.bf16.msra.mxu0 0
        %2304 = vmatpush.bf16.msra.mxu0 0
        %2305 = vmatpush.bf16.msra.mxu0 0
        %2306 = vmatpush.bf16.msra.mxu0 0
        %2307 = vmatpush.bf16.msra.mxu0 0
        %2308 = vmatpush.bf16.msra.mxu0 0
        %2309 = vmatpush.bf16.msra.mxu0 %v2300
        %2310 = vmatpush.bf16.msra.mxu0 %v2299
        %2311 = vmatmul.bf16.gmra.mxu0 %v2226
        %v2312 = vpop.f32.mrf.mxu0
        %v2313 = vadd.f32 0.0, %v2312
        %v2314 = vpop.f32.mrf.mxu0
        %2315 = vdwg.mxu0
        %v2320 = vunpack.c.l.b16 %v2175
        %v2321 = vunpack.c.l.b16 %v2176
        %v2322 = vunpack.c.l.b16 %v2177
        %v2323 = vunpack.c.l.b16 %v2178
        %v2324 = vpack.c.b16 %v2321, %v2320
        %v2325 = vpack.c.b16 %v2323, %v2322
        %2328 = vmatpush.bf16.msra.mxu0 0
        %2329 = vmatpush.bf16.msra.mxu0 0
        %2330 = vmatpush.bf16.msra.mxu0 0
        %2331 = vmatpush.bf16.msra.mxu0 0
        %2332 = vmatpush.bf16.msra.mxu0 0
        %2333 = vmatpush.bf16.msra.mxu0 0
        %2334 = vmatpush.bf16.msra.mxu0 %v2325
        %2335 = vmatpush.bf16.msra.mxu0 %v2324
        %2336 = vmatmul.bf16.gmra.mxu0 %v2226
        %v2337 = vpop.f32.mrf.mxu0
        %v2338 = vadd.f32 0.0, %v2337
        %v2339 = vpop.f32.mrf.mxu0
        %2340 = vdwg.mxu0
        %v2345 = vunpack.c.l.b16 %v2179
        %v2346 = vunpack.c.l.b16 %v2180
        %v2347 = vunpack.c.l.b16 %v2181
        %v2348 = vunpack.c.l.b16 %v2182
        %v2349 = vpack.c.b16 %v2346, %v2345
        %v2350 = vpack.c.b16 %v2348, %v2347
        %2353 = vmatpush.bf16.msra.mxu0 0
        %2354 = vmatpush.bf16.msra.mxu0 0
        %2355 = vmatpush.bf16.msra.mxu0 0
        %2356 = vmatpush.bf16.msra.mxu0 0
        %2357 = vmatpush.bf16.msra.mxu0 0
        %2358 = vmatpush.bf16.msra.mxu0 0
        %2359 = vmatpush.bf16.msra.mxu0 %v2350
        %2360 = vmatpush.bf16.msra.mxu0 %v2349
        %2361 = vmatmul.bf16.gmra.mxu0 %v2226
        %v2362 = vpop.f32.mrf.mxu0
        %v2363 = vadd.f32 0.0, %v2362
        %v2364 = vpop.f32.mrf.mxu0
        %2365 = vdwg.mxu0
        %v2370 = vunpack.c.l.b16 %v2183
        %v2371 = vunpack.c.l.b16 %v2184
        %v2372 = vunpack.c.l.b16 %v2185
        %v2373 = vunpack.c.l.b16 %v2186
        %v2374 = vpack.c.b16 %v2371, %v2370
        %v2375 = vpack.c.b16 %v2373, %v2372
        %2378 = vmatpush.bf16.msra.mxu0 0
        %2379 = vmatpush.bf16.msra.mxu0 0
        %2380 = vmatpush.bf16.msra.mxu0 0
        %2381 = vmatpush.bf16.msra.mxu0 0
        %2382 = vmatpush.bf16.msra.mxu0 0
        %2383 = vmatpush.bf16.msra.mxu0 0
        %2384 = vmatpush.bf16.msra.mxu0 %v2375
        %2385 = vmatpush.bf16.msra.mxu0 %v2374
        %2386 = vmatmul.bf16.gmra.mxu0 %v2226
        %v2387 = vpop.f32.mrf.mxu0
        %v2388 = vadd.f32 0.0, %v2387
        %v2389 = vpop.f32.mrf.mxu0
        %2390 = vdwg.mxu0
        %v2395 = vunpack.c.l.b16 %v2187
        %v2396 = vunpack.c.l.b16 %v2188
        %v2397 = vunpack.c.l.b16 %v2189
        %v2398 = vunpack.c.l.b16 %v2190
        %v2399 = vpack.c.b16 %v2396, %v2395
        %v2400 = vpack.c.b16 %v2398, %v2397
        %2403 = vmatpush.bf16.msra.mxu0 0
        %2404 = vmatpush.bf16.msra.mxu0 0
        %2405 = vmatpush.bf16.msra.mxu0 0
        %2406 = vmatpush.bf16.msra.mxu0 0
        %2407 = vmatpush.bf16.msra.mxu0 0
        %2408 = vmatpush.bf16.msra.mxu0 0
        %2409 = vmatpush.bf16.msra.mxu0 %v2400
        %2410 = vmatpush.bf16.msra.mxu0 %v2399
        %2411 = vmatmul.bf16.gmra.mxu0 %v2226
        %v2412 = vpop.f32.mrf.mxu0
        %v2413 = vadd.f32 0.0, %v2412
        %v2414 = vpop.f32.mrf.mxu0
        %2415 = vdwg.mxu0
        %v2420 = vunpack.c.l.b16 %v2192
        %v2421 = vunpack.c.l.b16 %v2193
        %v2422 = vunpack.c.l.b16 %v2194
        %v2423 = vunpack.c.l.b16 %v2195
        %v2424 = vpack.c.b16 %v2421, %v2420
        %v2425 = vpack.c.b16 %v2423, %v2422
        %2428 = vmatpush.bf16.msra.mxu0 0
        %2429 = vmatpush.bf16.msra.mxu0 0
        %2430 = vmatpush.bf16.msra.mxu0 0
        %2431 = vmatpush.bf16.msra.mxu0 0
        %2432 = vmatpush.bf16.msra.mxu0 0
        %2433 = vmatpush.bf16.msra.mxu0 0
        %2434 = vmatpush.bf16.msra.mxu0 %v2425
        %2435 = vmatpush.bf16.msra.mxu0 %v2424
        %2436 = vmatmul.bf16.gmra.mxu0 %v2226
        %v2437 = vpop.f32.mrf.mxu0
        %v2438 = vadd.f32 0.0, %v2437
        %v2439 = vpop.f32.mrf.mxu0
        %2440 = vdwg.mxu0
        %v2445 = vunpack.c.l.b16 %v2196
        %v2446 = vunpack.c.l.b16 %v2197
        %v2447 = vunpack.c.l.b16 %v2198
        %v2448 = vunpack.c.l.b16 %v2199
        %v2449 = vpack.c.b16 %v2446, %v2445
        %v2450 = vpack.c.b16 %v2448, %v2447
        %2453 = vmatpush.bf16.msra.mxu0 0
        %2454 = vmatpush.bf16.msra.mxu0 0
        %2455 = vmatpush.bf16.msra.mxu0 0
        %2456 = vmatpush.bf16.msra.mxu0 0
        %2457 = vmatpush.bf16.msra.mxu0 0
        %2458 = vmatpush.bf16.msra.mxu0 0
        %2459 = vmatpush.bf16.msra.mxu0 %v2450
        %2460 = vmatpush.bf16.msra.mxu0 %v2449
        %2461 = vmatmul.bf16.gmra.mxu0 %v2226
        %v2462 = vpop.f32.mrf.mxu0
        %v2463 = vadd.f32 0.0, %v2462
        %v2464 = vpop.f32.mrf.mxu0
        %2465 = vdwg.mxu0
        %v2470 = vunpack.c.l.b16 %v2200
        %v2471 = vunpack.c.l.b16 %v2201
        %v2472 = vunpack.c.l.b16 %v2202
        %v2473 = vunpack.c.l.b16 %v2203
        %v2474 = vpack.c.b16 %v2471, %v2470
        %v2475 = vpack.c.b16 %v2473, %v2472
        %2478 = vmatpush.bf16.msra.mxu0 0
        %2479 = vmatpush.bf16.msra.mxu0 0
        %2480 = vmatpush.bf16.msra.mxu0 0
        %2481 = vmatpush.bf16.msra.mxu0 0
        %2482 = vmatpush.bf16.msra.mxu0 0
        %2483 = vmatpush.bf16.msra.mxu0 0
        %2484 = vmatpush.bf16.msra.mxu0 %v2475
        %2485 = vmatpush.bf16.msra.mxu0 %v2474
        %2486 = vmatmul.bf16.gmra.mxu0 %v2226
        %v2487 = vpop.f32.mrf.mxu0
        %v2488 = vadd.f32 0.0, %v2487
        %v2489 = vpop.f32.mrf.mxu0
        %2490 = vdwg.mxu0
        %v2495 = vunpack.c.l.b16 %v2204
        %v2496 = vunpack.c.l.b16 %v2205
        %v2497 = vunpack.c.l.b16 %v2206
        %v2498 = vunpack.c.l.b16 %v2207
        %v2499 = vpack.c.b16 %v2496, %v2495
        %v2500 = vpack.c.b16 %v2498, %v2497
        %2503 = vmatpush.bf16.msra.mxu0 0
        %2504 = vmatpush.bf16.msra.mxu0 0
        %2505 = vmatpush.bf16.msra.mxu0 0
        %2506 = vmatpush.bf16.msra.mxu0 0
        %2507 = vmatpush.bf16.msra.mxu0 0
        %2508 = vmatpush.bf16.msra.mxu0 0
        %2509 = vmatpush.bf16.msra.mxu0 %v2500
        %2510 = vmatpush.bf16.msra.mxu0 %v2499
        %2511 = vmatmul.bf16.gmra.mxu0 %v2226
        %v2512 = vpop.f32.mrf.mxu0
        %v2513 = vadd.f32 0.0, %v2512
        %v2514 = vpop.f32.mrf.mxu0
        %2515 = vdwg.mxu0
        %v2516 = vpack.c.bf16 %v2238, %v2238
        %v2517 = vpack.c.bf16 %v2263, %v2263
        %v2518 = vpack.c.bf16 %v2288, %v2288
        %v2519 = vpack.c.bf16 %v2313, %v2313
        %v2520 = vpack.c.bf16 %v2338, %v2338
        %v2521 = vpack.c.bf16 %v2363, %v2363
        %v2522 = vpack.c.bf16 %v2388, %v2388
        %v2523 = vpack.c.bf16 %v2413, %v2413
        %v2525 = vsel %vm961, %v2516, 0
        %v2528 = vsel %vm961, %v2520, 0
        %2530 = vmatpush.bf16.xpose.msra.mxu0 0
        %2531 = vmatpush.bf16.xpose.msra.mxu0 0
        %2532 = vmatpush.bf16.xpose.msra.mxu0 0
        %2533 = vmatpush.bf16.xpose.msra.mxu0 0
        %2534 = vmatpush.bf16.xpose.msra.mxu0 0
        %2535 = vmatpush.bf16.xpose.msra.mxu0 0
        %2536 = vmatpush.bf16.xpose.msra.mxu0 0
        %2537 = vmatpush.bf16.xpose.msra.mxu0 %v2528
        %2538 = vmatmul.bf16.gmra.mxu0 %v2525
        %v2539 = vpop.f32.mrf.mxu0
        %v2540 = vadd.f32 0.0, %v2539
        %v2541 = vpop.f32.mrf.mxu0
        %2542 = vdwg.mxu0
        %v2544 = vsel %vm961, %v2517, 0
        %v2547 = vsel %vm961, %v2521, 0
        %2549 = vmatpush.bf16.xpose.msra.mxu0 0
        %2550 = vmatpush.bf16.xpose.msra.mxu0 0
        %2551 = vmatpush.bf16.xpose.msra.mxu0 0
        %2552 = vmatpush.bf16.xpose.msra.mxu0 0
        %2553 = vmatpush.bf16.xpose.msra.mxu0 0
        %2554 = vmatpush.bf16.xpose.msra.mxu0 0
        %2555 = vmatpush.bf16.xpose.msra.mxu0 0
        %2556 = vmatpush.bf16.xpose.msra.mxu0 %v2547
        %2557 = vmatmul.bf16.gmra.mxu0 %v2544
        %v2558 = vpop.f32.mrf.mxu0
        %v2559 = vadd.f32 0.0, %v2558
        %v2560 = vpop.f32.mrf.mxu0
        %2561 = vdwg.mxu0
        %v2563 = vsel %vm961, %v2518, 0
        %v2566 = vsel %vm961, %v2522, 0
        %2568 = vmatpush.bf16.xpose.msra.mxu0 0
        %2569 = vmatpush.bf16.xpose.msra.mxu0 0
        %2570 = vmatpush.bf16.xpose.msra.mxu0 0
        %2571 = vmatpush.bf16.xpose.msra.mxu0 0
        %2572 = vmatpush.bf16.xpose.msra.mxu0 0
        %2573 = vmatpush.bf16.xpose.msra.mxu0 0
        %2574 = vmatpush.bf16.xpose.msra.mxu0 0
        %2575 = vmatpush.bf16.xpose.msra.mxu0 %v2566
        %2576 = vmatmul.bf16.gmra.mxu0 %v2563
        %v2577 = vpop.f32.mrf.mxu0
        %v2578 = vadd.f32 0.0, %v2577
        %v2579 = vpop.f32.mrf.mxu0
        %2580 = vdwg.mxu0
        %v2582 = vsel %vm961, %v2519, 0
        %v2585 = vsel %vm961, %v2523, 0
        %2587 = vmatpush.bf16.xpose.msra.mxu0 0
        %2588 = vmatpush.bf16.xpose.msra.mxu0 0
        %2589 = vmatpush.bf16.xpose.msra.mxu0 0
        %2590 = vmatpush.bf16.xpose.msra.mxu0 0
        %2591 = vmatpush.bf16.xpose.msra.mxu0 0
        %2592 = vmatpush.bf16.xpose.msra.mxu0 0
        %2593 = vmatpush.bf16.xpose.msra.mxu0 0
        %2594 = vmatpush.bf16.xpose.msra.mxu0 %v2585
        %2595 = vmatmul.bf16.gmra.mxu0 %v2582
        %v2596 = vpop.f32.mrf.mxu0
        %v2597 = vadd.f32 0.0, %v2596
        %v2598 = vpop.f32.mrf.mxu0
        %2599 = vdwg.mxu0
        %v2600 = vsel %vm1039, %v2540, -1e+20
        %v2601 = vsel %vm1039, %v2559, -1e+20
        %v2602 = vsel %vm1039, %v2578, -1e+20
        %v2603 = vsel %vm1039, %v2597, -1e+20
        %v2604 = vmul.f32 %v2600, 0.17677669
        %v2605 = vmul.f32 %v2601, 0.17677669
        %v2606 = vmul.f32 %v2602, 0.17677669
        %v2607 = vmul.f32 %v2603, 0.17677669
        %v2608 = vsel %vm961, %v2604, -inf
        %2609 = vmax.xlane.f32.xlu0 %v2608
        %v2610 = vpop.xlane.xlu0 %2609
        %v2611 = vsel %vm961, %v2605, -inf
        %2612 = vmax.xlane.f32.xlu0 %v2611
        %v2613 = vpop.xlane.xlu0 %2612
        %v2614 = vsel %vm961, %v2606, -inf
        %2615 = vmax.xlane.f32.xlu0 %v2614
        %v2616 = vpop.xlane.xlu0 %2615
        %v2617 = vsel %vm961, %v2607, -inf
        %2618 = vmax.xlane.f32.xlu0 %v2617
        %v2619 = vpop.xlane.xlu0 %2618
        %v2620 = vsub.f32 %v2604, %v2610
        %v2621 = vsub.f32 %v2605, %v2613
        %v2622 = vsub.f32 %v2606, %v2616
        %v2623 = vsub.f32 %v2607, %v2619
        %v2624 = vmul.f32 %v2620, 1.442695
        %v2625 = vpow.pop %v2624
        %v2626 = vmul.f32 %v2621, 1.442695
        %v2627 = vpow.pop %v2626
        %v2628 = vmul.f32 %v2622, 1.442695
        %v2629 = vpow.pop %v2628
        %v2630 = vmul.f32 %v2623, 1.442695
        %v2631 = vpow.pop %v2630
        %v2632 = vsel %vm961, %v2625, 0.0
        %2633 = vadd.xlane.f32.xlu0 %v2632
        %v2634 = vpop.xlane.xlu0 %2633
        %v2635 = vsel %vm961, %v2627, 0.0
        %2636 = vadd.xlane.f32.xlu0 %v2635
        %v2637 = vpop.xlane.xlu0 %2636
        %v2638 = vsel %vm961, %v2629, 0.0
        %2639 = vadd.xlane.f32.xlu0 %v2638
        %v2640 = vpop.xlane.xlu0 %2639
        %v2641 = vsel %vm961, %v2631, 0.0
        %2642 = vadd.xlane.f32.xlu0 %v2641
        %v2643 = vpop.xlane.xlu0 %2642
        %v2644 = vrcp.pop %v2634
        %v2645 = vrcp.pop %v2637
        %v2646 = vrcp.pop %v2640
        %v2647 = vrcp.pop %v2643
        %v2648 = vmul.f32 %v2625, %v2644
        %v2649 = vmul.f32 %v2627, %v2645
        %v2650 = vmul.f32 %v2629, %v2646
        %v2651 = vmul.f32 %v2631, %v2647
        %v2652 = vpack.c.bf16 %v2648, %v2648
        %v2653 = vpack.c.bf16 %v2649, %v2649
        %v2654 = vpack.c.bf16 %v2650, %v2650
        %v2655 = vpack.c.bf16 %v2651, %v2651
        %v2656 = vpack.c.bf16 %v2438, %v2438
        %v2657 = vpack.c.bf16 %v2463, %v2463
        %v2658 = vpack.c.bf16 %v2488, %v2488
        %v2659 = vpack.c.bf16 %v2513, %v2513
        %v2661 = vsel %vm961, %v2652, 0
        %v2664 = vsel %vm1103, %v2656, 0
        %2666 = vmatpush.bf16.msra.mxu0 0
        %2667 = vmatpush.bf16.msra.mxu0 0
        %2668 = vmatpush.bf16.msra.mxu0 0
        %2669 = vmatpush.bf16.msra.mxu0 0
        %2670 = vmatpush.bf16.msra.mxu0 0
        %2671 = vmatpush.bf16.msra.mxu0 0
        %2672 = vmatpush.bf16.msra.mxu0 0
        %2673 = vmatpush.bf16.msra.mxu0 %v2664
        %2674 = vmatmul.bf16.gmra.mxu0 %v2661
        %v2675 = vpop.f32.mrf.mxu0
        %v2676 = vadd.f32 0.0, %v2675
        %v2677 = vpop.f32.mrf.mxu0
        %2678 = vdwg.mxu0
        %v2680 = vsel %vm961, %v2653, 0
        %v2683 = vsel %vm1103, %v2657, 0
        %2685 = vmatpush.bf16.msra.mxu0 0
        %2686 = vmatpush.bf16.msra.mxu0 0
        %2687 = vmatpush.bf16.msra.mxu0 0
        %2688 = vmatpush.bf16.msra.mxu0 0
        %2689 = vmatpush.bf16.msra.mxu0 0
        %2690 = vmatpush.bf16.msra.mxu0 0
        %2691 = vmatpush.bf16.msra.mxu0 0
        %2692 = vmatpush.bf16.msra.mxu0 %v2683
        %2693 = vmatmul.bf16.gmra.mxu0 %v2680
        %v2694 = vpop.f32.mrf.mxu0
        %v2695 = vadd.f32 0.0, %v2694
        %v2696 = vpop.f32.mrf.mxu0
        %2697 = vdwg.mxu0
        %v2699 = vsel %vm961, %v2654, 0
        %v2702 = vsel %vm1103, %v2658, 0
        %2704 = vmatpush.bf16.msra.mxu0 0
        %2705 = vmatpush.bf16.msra.mxu0 0
        %2706 = vmatpush.bf16.msra.mxu0 0
        %2707 = vmatpush.bf16.msra.mxu0 0
        %2708 = vmatpush.bf16.msra.mxu0 0
        %2709 = vmatpush.bf16.msra.mxu0 0
        %2710 = vmatpush.bf16.msra.mxu0 0
        %2711 = vmatpush.bf16.msra.mxu0 %v2702
        %2712 = vmatmul.bf16.gmra.mxu0 %v2699
        %v2713 = vpop.f32.mrf.mxu0
        %v2714 = vadd.f32 0.0, %v2713
        %v2715 = vpop.f32.mrf.mxu0
        %2716 = vdwg.mxu0
        %v2718 = vsel %vm961, %v2655, 0
        %v2721 = vsel %vm1103, %v2659, 0
        %2723 = vmatpush.bf16.msra.mxu0 0
        %2724 = vmatpush.bf16.msra.mxu0 0
        %2725 = vmatpush.bf16.msra.mxu0 0
        %2726 = vmatpush.bf16.msra.mxu0 0
        %2727 = vmatpush.bf16.msra.mxu0 0
        %2728 = vmatpush.bf16.msra.mxu0 0
        %2729 = vmatpush.bf16.msra.mxu0 0
        %2730 = vmatpush.bf16.msra.mxu0 %v2721
        %2731 = vmatmul.bf16.gmra.mxu0 %v2718
        %v2732 = vpop.f32.mrf.mxu0
        %v2733 = vadd.f32 0.0, %v2732
        %v2734 = vpop.f32.mrf.mxu0
        %2735 = vdwg.mxu0
        %v2736 = vpack.c.bf16 %v2676, %v2676
        %v2737 = vpack.c.bf16 %v2695, %v2695
        %v2738 = vpack.c.bf16 %v2714, %v2714
        %v2739 = vpack.c.bf16 %v2733, %v2733
        %v2741 = vsel %vm961, %v2736, 0
        %v2744 = vsel %vm1103, %v2209, 0
        %2746 = vmatpush.bf16.msra.mxu0 0
        %2747 = vmatpush.bf16.msra.mxu0 0
        %2748 = vmatpush.bf16.msra.mxu0 0
        %2749 = vmatpush.bf16.msra.mxu0 0
        %2750 = vmatpush.bf16.msra.mxu0 0
        %2751 = vmatpush.bf16.msra.mxu0 0
        %2752 = vmatpush.bf16.msra.mxu0 0
        %2753 = vmatpush.bf16.msra.mxu0 %v2744
        %2754 = vmatmul.bf16.gmra.mxu0 %v2741
        %v2755 = vpop.f32.mrf.mxu0
        %v2756 = vadd.f32 0.0, %v2755
        %v2757 = vpop.f32.mrf.mxu0
        %2758 = vdwg.mxu0
        %v2760 = vsel %vm961, %v2737, 0
        %v2763 = vsel %vm1103, %v2210, 0
        %2765 = vmatpush.bf16.msra.mxu0 0
        %2766 = vmatpush.bf16.msra.mxu0 0
        %2767 = vmatpush.bf16.msra.mxu0 0
        %2768 = vmatpush.bf16.msra.mxu0 0
        %2769 = vmatpush.bf16.msra.mxu0 0
        %2770 = vmatpush.bf16.msra.mxu0 0
        %2771 = vmatpush.bf16.msra.mxu0 0
        %2772 = vmatpush.bf16.msra.mxu0 %v2763
        %2773 = vmatmul.bf16.gmra.mxu0 %v2760
        %v2774 = vpop.f32.mrf.mxu0
        %v2775 = vadd.f32 0.0, %v2774
        %v2776 = vpop.f32.mrf.mxu0
        %2777 = vdwg.mxu0
        %v2779 = vsel %vm961, %v2738, 0
        %v2782 = vsel %vm1103, %v2211, 0
        %2784 = vmatpush.bf16.msra.mxu0 0
        %2785 = vmatpush.bf16.msra.mxu0 0
        %2786 = vmatpush.bf16.msra.mxu0 0
        %2787 = vmatpush.bf16.msra.mxu0 0
        %2788 = vmatpush.bf16.msra.mxu0 0
        %2789 = vmatpush.bf16.msra.mxu0 0
        %2790 = vmatpush.bf16.msra.mxu0 0
        %2791 = vmatpush.bf16.msra.mxu0 %v2782
        %2792 = vmatmul.bf16.gmra.mxu0 %v2779
        %v2793 = vpop.f32.mrf.mxu0
        %v2794 = vadd.f32 0.0, %v2793
        %v2795 = vpop.f32.mrf.mxu0
        %2796 = vdwg.mxu0
        %v2798 = vsel %vm961, %v2739, 0
        %v2801 = vsel %vm1103, %v2212, 0
        %2803 = vmatpush.bf16.msra.mxu0 0
        %2804 = vmatpush.bf16.msra.mxu0 0
        %2805 = vmatpush.bf16.msra.mxu0 0
        %2806 = vmatpush.bf16.msra.mxu0 0
        %2807 = vmatpush.bf16.msra.mxu0 0
        %2808 = vmatpush.bf16.msra.mxu0 0
        %2809 = vmatpush.bf16.msra.mxu0 0
        %2810 = vmatpush.bf16.msra.mxu0 %v2801
        %2811 = vmatmul.bf16.gmra.mxu0 %v2798
        %v2812 = vpop.f32.mrf.mxu0
        %v2813 = vadd.f32 0.0, %v2812
        %v2814 = vpop.f32.mrf.mxu0
        %2815 = vdwg.mxu0
        %v2816 = vsel %vm661, %v2756, 0.0
        %v2817 = vsel %vm661, %v2775, 0.0
        %v2818 = vadd.f32 %v2816, %v2817
        %v2819 = vsel %vm661, %v2794, 0.0
        %v2820 = vadd.f32 %v2818, %v2819
        %v2821 = vsel %vm661, %v2813, 0.0
        %v2822 = vadd.f32 %v2820, %v2821
        %v2823 = vadd.f32 %v2822, %v2155
        %s2824 = scalar_lea.vmem %s14, 3
        %v2825 = vld [vmem:[%s2824] sm:$0x1]
        %s2826 = scalar_lea.vmem %s15, 3
        %v2827 = vld [vmem:[%s2826] sm:$0x1]
        %v2828 = vsel %vm661, %v2823, 0.0
        %2829 = vadd.xlane.f32.xlu0 %v2828
        %v2830 = vpop.xlane.xlu0 %2829
        %v2831 = vmul.f32 %v2830, %v1276
        %v2832 = vsub.f32 %v2823, %v2831
        %v2833 = vmul.f32 %v2832, %v2832
        %v2834 = vsel %vm661, %v2833, 0.0
        %2835 = vadd.xlane.f32.xlu0 %v2834
        %v2836 = vpop.xlane.xlu0 %2835
        %v2837 = vmul.f32 %v2836, %v1276
        %v2838 = vadd.f32 %v2837, 1e-05
        %v2839 = vrsqrt.pop %v2838
        %v2840 = vmul.f32 %v2839, %v2838
        %v2841 = vmul.f32 %v2840, %v2839
        %v2842 = vmul.f32 0.5, %v2841
        %v2843 = vsub.f32 1.5, %v2842
        %v2844 = vmul.f32 %v2839, %v2843
        %vm2845 = vweird.f32 %v2838
        %vm2846 = vweird.f32 %v2839
        %vm2847 = vmor %vm2845, %vm2846
        %v2848 = vsel %vm2847, %v2839, %v2844
        %v2849 = vmul.f32 %v2832, %v2848
        %v2851 = vperm.slane %v2825, 0
        %v2853 = vmul.f32 %v2849, %v2851
        %v2855 = vperm.slane %v2827, 0
        %v2857 = vadd.f32 %v2853, %v2855
        %v2858 = vpack.c.bf16 %v2857, %v2857
        %s2859 = scalar_lea.vmem %s6, 64
        %v2860 = vld [vmem:[%s2859] sm:$0xf]
        %v2861 = vld [vmem:[%s2859 + $0x4] sm:$0xf]
        %v2862 = vld [vmem:[%s2859 + $0x8] sm:$0xf]
        %v2863 = vld [vmem:[%s2859 + $0xc] sm:$0xf]
        %v2864 = vld [vmem:[%s2859 + $0x10] sm:$0xf]
        %v2865 = vld [vmem:[%s2859 + $0x14] sm:$0xf]
        %v2866 = vld [vmem:[%s2859 + $0x18] sm:$0xf]
        %v2867 = vld [vmem:[%s2859 + $0x1c] sm:$0xf]
        %v2868 = vld [vmem:[%s2859 + $0x20] sm:$0xf]
        %v2869 = vld [vmem:[%s2859 + $0x24] sm:$0xf]
        %v2870 = vld [vmem:[%s2859 + $0x28] sm:$0xf]
        %v2871 = vld [vmem:[%s2859 + $0x2c] sm:$0xf]
        %v2872 = vld [vmem:[%s2859 + $0x30] sm:$0xf]
        %v2873 = vld [vmem:[%s2859 + $0x34] sm:$0xf]
        %v2874 = vld [vmem:[%s2859 + $0x38] sm:$0xf]
        %v2875 = vld [vmem:[%s2859 + $0x3c] sm:$0xf]
        %s2876 = scalar_lea.vmem %s7, 64
        %v2877 = vld [vmem:[%s2876] sm:$0xf]
        %v2878 = vld [vmem:[%s2876 + $0x4] sm:$0xf]
        %v2879 = vld [vmem:[%s2876 + $0x8] sm:$0xf]
        %v2880 = vld [vmem:[%s2876 + $0xc] sm:$0xf]
        %v2881 = vld [vmem:[%s2876 + $0x10] sm:$0xf]
        %v2882 = vld [vmem:[%s2876 + $0x14] sm:$0xf]
        %v2883 = vld [vmem:[%s2876 + $0x18] sm:$0xf]
        %v2884 = vld [vmem:[%s2876 + $0x1c] sm:$0xf]
        %v2885 = vld [vmem:[%s2876 + $0x20] sm:$0xf]
        %v2886 = vld [vmem:[%s2876 + $0x24] sm:$0xf]
        %v2887 = vld [vmem:[%s2876 + $0x28] sm:$0xf]
        %v2888 = vld [vmem:[%s2876 + $0x2c] sm:$0xf]
        %v2889 = vld [vmem:[%s2876 + $0x30] sm:$0xf]
        %v2890 = vld [vmem:[%s2876 + $0x34] sm:$0xf]
        %v2891 = vld [vmem:[%s2876 + $0x38] sm:$0xf]
        %v2892 = vld [vmem:[%s2876 + $0x3c] sm:$0xf]
        %s2893 = scalar_lea.vmem %s8, 64
        %v2894 = vld [vmem:[%s2893] sm:$0xf]
        %v2895 = vld [vmem:[%s2893 + $0x4] sm:$0xf]
        %v2896 = vld [vmem:[%s2893 + $0x8] sm:$0xf]
        %v2897 = vld [vmem:[%s2893 + $0xc] sm:$0xf]
        %v2898 = vld [vmem:[%s2893 + $0x10] sm:$0xf]
        %v2899 = vld [vmem:[%s2893 + $0x14] sm:$0xf]
        %v2900 = vld [vmem:[%s2893 + $0x18] sm:$0xf]
        %v2901 = vld [vmem:[%s2893 + $0x1c] sm:$0xf]
        %v2902 = vld [vmem:[%s2893 + $0x20] sm:$0xf]
        %v2903 = vld [vmem:[%s2893 + $0x24] sm:$0xf]
        %v2904 = vld [vmem:[%s2893 + $0x28] sm:$0xf]
        %v2905 = vld [vmem:[%s2893 + $0x2c] sm:$0xf]
        %v2906 = vld [vmem:[%s2893 + $0x30] sm:$0xf]
        %v2907 = vld [vmem:[%s2893 + $0x34] sm:$0xf]
        %v2908 = vld [vmem:[%s2893 + $0x38] sm:$0xf]
        %v2909 = vld [vmem:[%s2893 + $0x3c] sm:$0xf]
        %s2910 = scalar_lea.vmem %s9, 16
        %v2911 = vld [vmem:[%s2910] sm:$0xf]
        %v2912 = vld [vmem:[%s2910 + $0x4] sm:$0xf]
        %v2913 = vld [vmem:[%s2910 + $0x8] sm:$0xf]
        %v2914 = vld [vmem:[%s2910 + $0xc] sm:$0xf]
        %v2919 = vunpack.c.l.b16 %v2860
        %v2920 = vunpack.c.l.b16 %v2861
        %v2921 = vunpack.c.l.b16 %v2862
        %v2922 = vunpack.c.l.b16 %v2863
        %v2923 = vpack.c.b16 %v2920, %v2919
        %v2924 = vpack.c.b16 %v2922, %v2921
        %v2928 = vsel %vm661, %v2858, 0
        %2930 = vmatpush.bf16.msra.mxu0 0
        %2931 = vmatpush.bf16.msra.mxu0 0
        %2932 = vmatpush.bf16.msra.mxu0 0
        %2933 = vmatpush.bf16.msra.mxu0 0
        %2934 = vmatpush.bf16.msra.mxu0 0
        %2935 = vmatpush.bf16.msra.mxu0 0
        %2936 = vmatpush.bf16.msra.mxu0 %v2924
        %2937 = vmatpush.bf16.msra.mxu0 %v2923
        %2938 = vmatmul.bf16.gmra.mxu0 %v2928
        %v2939 = vpop.f32.mrf.mxu0
        %v2940 = vadd.f32 0.0, %v2939
        %v2941 = vpop.f32.mrf.mxu0
        %2942 = vdwg.mxu0
        %v2947 = vunpack.c.l.b16 %v2864
        %v2948 = vunpack.c.l.b16 %v2865
        %v2949 = vunpack.c.l.b16 %v2866
        %v2950 = vunpack.c.l.b16 %v2867
        %v2951 = vpack.c.b16 %v2948, %v2947
        %v2952 = vpack.c.b16 %v2950, %v2949
        %2955 = vmatpush.bf16.msra.mxu0 0
        %2956 = vmatpush.bf16.msra.mxu0 0
        %2957 = vmatpush.bf16.msra.mxu0 0
        %2958 = vmatpush.bf16.msra.mxu0 0
        %2959 = vmatpush.bf16.msra.mxu0 0
        %2960 = vmatpush.bf16.msra.mxu0 0
        %2961 = vmatpush.bf16.msra.mxu0 %v2952
        %2962 = vmatpush.bf16.msra.mxu0 %v2951
        %2963 = vmatmul.bf16.gmra.mxu0 %v2928
        %v2964 = vpop.f32.mrf.mxu0
        %v2965 = vadd.f32 0.0, %v2964
        %v2966 = vpop.f32.mrf.mxu0
        %2967 = vdwg.mxu0
        %v2972 = vunpack.c.l.b16 %v2868
        %v2973 = vunpack.c.l.b16 %v2869
        %v2974 = vunpack.c.l.b16 %v2870
        %v2975 = vunpack.c.l.b16 %v2871
        %v2976 = vpack.c.b16 %v2973, %v2972
        %v2977 = vpack.c.b16 %v2975, %v2974
        %2980 = vmatpush.bf16.msra.mxu0 0
        %2981 = vmatpush.bf16.msra.mxu0 0
        %2982 = vmatpush.bf16.msra.mxu0 0
        %2983 = vmatpush.bf16.msra.mxu0 0
        %2984 = vmatpush.bf16.msra.mxu0 0
        %2985 = vmatpush.bf16.msra.mxu0 0
        %2986 = vmatpush.bf16.msra.mxu0 %v2977
        %2987 = vmatpush.bf16.msra.mxu0 %v2976
        %2988 = vmatmul.bf16.gmra.mxu0 %v2928
        %v2989 = vpop.f32.mrf.mxu0
        %v2990 = vadd.f32 0.0, %v2989
        %v2991 = vpop.f32.mrf.mxu0
        %2992 = vdwg.mxu0
        %v2997 = vunpack.c.l.b16 %v2872
        %v2998 = vunpack.c.l.b16 %v2873
        %v2999 = vunpack.c.l.b16 %v2874
        %v3000 = vunpack.c.l.b16 %v2875
        %v3001 = vpack.c.b16 %v2998, %v2997
        %v3002 = vpack.c.b16 %v3000, %v2999
        %3005 = vmatpush.bf16.msra.mxu0 0
        %3006 = vmatpush.bf16.msra.mxu0 0
        %3007 = vmatpush.bf16.msra.mxu0 0
        %3008 = vmatpush.bf16.msra.mxu0 0
        %3009 = vmatpush.bf16.msra.mxu0 0
        %3010 = vmatpush.bf16.msra.mxu0 0
        %3011 = vmatpush.bf16.msra.mxu0 %v3002
        %3012 = vmatpush.bf16.msra.mxu0 %v3001
        %3013 = vmatmul.bf16.gmra.mxu0 %v2928
        %v3014 = vpop.f32.mrf.mxu0
        %v3015 = vadd.f32 0.0, %v3014
        %v3016 = vpop.f32.mrf.mxu0
        %3017 = vdwg.mxu0
        %v3022 = vunpack.c.l.b16 %v2877
        %v3023 = vunpack.c.l.b16 %v2878
        %v3024 = vunpack.c.l.b16 %v2879
        %v3025 = vunpack.c.l.b16 %v2880
        %v3026 = vpack.c.b16 %v3023, %v3022
        %v3027 = vpack.c.b16 %v3025, %v3024
        %3030 = vmatpush.bf16.msra.mxu0 0
        %3031 = vmatpush.bf16.msra.mxu0 0
        %3032 = vmatpush.bf16.msra.mxu0 0
        %3033 = vmatpush.bf16.msra.mxu0 0
        %3034 = vmatpush.bf16.msra.mxu0 0
        %3035 = vmatpush.bf16.msra.mxu0 0
        %3036 = vmatpush.bf16.msra.mxu0 %v3027
        %3037 = vmatpush.bf16.msra.mxu0 %v3026
        %3038 = vmatmul.bf16.gmra.mxu0 %v1473
        %v3039 = vpop.f32.mrf.mxu0
        %v3040 = vadd.f32 0.0, %v3039
        %v3041 = vpop.f32.mrf.mxu0
        %3042 = vdwg.mxu0
        %v3047 = vunpack.c.l.b16 %v2881
        %v3048 = vunpack.c.l.b16 %v2882
        %v3049 = vunpack.c.l.b16 %v2883
        %v3050 = vunpack.c.l.b16 %v2884
        %v3051 = vpack.c.b16 %v3048, %v3047
        %v3052 = vpack.c.b16 %v3050, %v3049
        %3055 = vmatpush.bf16.msra.mxu0 0
        %3056 = vmatpush.bf16.msra.mxu0 0
        %3057 = vmatpush.bf16.msra.mxu0 0
        %3058 = vmatpush.bf16.msra.mxu0 0
        %3059 = vmatpush.bf16.msra.mxu0 0
        %3060 = vmatpush.bf16.msra.mxu0 0
        %3061 = vmatpush.bf16.msra.mxu0 %v3052
        %3062 = vmatpush.bf16.msra.mxu0 %v3051
        %3063 = vmatmul.bf16.gmra.mxu0 %v1473
        %v3064 = vpop.f32.mrf.mxu0
        %v3065 = vadd.f32 0.0, %v3064
        %v3066 = vpop.f32.mrf.mxu0
        %3067 = vdwg.mxu0
        %v3072 = vunpack.c.l.b16 %v2885
        %v3073 = vunpack.c.l.b16 %v2886
        %v3074 = vunpack.c.l.b16 %v2887
        %v3075 = vunpack.c.l.b16 %v2888
        %v3076 = vpack.c.b16 %v3073, %v3072
        %v3077 = vpack.c.b16 %v3075, %v3074
        %3080 = vmatpush.bf16.msra.mxu0 0
        %3081 = vmatpush.bf16.msra.mxu0 0
        %3082 = vmatpush.bf16.msra.mxu0 0
        %3083 = vmatpush.bf16.msra.mxu0 0
        %3084 = vmatpush.bf16.msra.mxu0 0
        %3085 = vmatpush.bf16.msra.mxu0 0
        %3086 = vmatpush.bf16.msra.mxu0 %v3077
        %3087 = vmatpush.bf16.msra.mxu0 %v3076
        %3088 = vmatmul.bf16.gmra.mxu0 %v1473
        %v3089 = vpop.f32.mrf.mxu0
        %v3090 = vadd.f32 0.0, %v3089
        %v3091 = vpop.f32.mrf.mxu0
        %3092 = vdwg.mxu0
        %v3097 = vunpack.c.l.b16 %v2889
        %v3098 = vunpack.c.l.b16 %v2890
        %v3099 = vunpack.c.l.b16 %v2891
        %v3100 = vunpack.c.l.b16 %v2892
        %v3101 = vpack.c.b16 %v3098, %v3097
        %v3102 = vpack.c.b16 %v3100, %v3099
        %3105 = vmatpush.bf16.msra.mxu0 0
        %3106 = vmatpush.bf16.msra.mxu0 0
        %3107 = vmatpush.bf16.msra.mxu0 0
        %3108 = vmatpush.bf16.msra.mxu0 0
        %3109 = vmatpush.bf16.msra.mxu0 0
        %3110 = vmatpush.bf16.msra.mxu0 0
        %3111 = vmatpush.bf16.msra.mxu0 %v3102
        %3112 = vmatpush.bf16.msra.mxu0 %v3101
        %3113 = vmatmul.bf16.gmra.mxu0 %v1473
        %v3114 = vpop.f32.mrf.mxu0
        %v3115 = vadd.f32 0.0, %v3114
        %v3116 = vpop.f32.mrf.mxu0
        %3117 = vdwg.mxu0
        %v3122 = vunpack.c.l.b16 %v2894
        %v3123 = vunpack.c.l.b16 %v2895
        %v3124 = vunpack.c.l.b16 %v2896
        %v3125 = vunpack.c.l.b16 %v2897
        %v3126 = vpack.c.b16 %v3123, %v3122
        %v3127 = vpack.c.b16 %v3125, %v3124
        %3130 = vmatpush.bf16.msra.mxu0 0
        %3131 = vmatpush.bf16.msra.mxu0 0
        %3132 = vmatpush.bf16.msra.mxu0 0
        %3133 = vmatpush.bf16.msra.mxu0 0
        %3134 = vmatpush.bf16.msra.mxu0 0
        %3135 = vmatpush.bf16.msra.mxu0 0
        %3136 = vmatpush.bf16.msra.mxu0 %v3127
        %3137 = vmatpush.bf16.msra.mxu0 %v3126
        %3138 = vmatmul.bf16.gmra.mxu0 %v1473
        %v3139 = vpop.f32.mrf.mxu0
        %v3140 = vadd.f32 0.0, %v3139
        %v3141 = vpop.f32.mrf.mxu0
        %3142 = vdwg.mxu0
        %v3147 = vunpack.c.l.b16 %v2898
        %v3148 = vunpack.c.l.b16 %v2899
        %v3149 = vunpack.c.l.b16 %v2900
        %v3150 = vunpack.c.l.b16 %v2901
        %v3151 = vpack.c.b16 %v3148, %v3147
        %v3152 = vpack.c.b16 %v3150, %v3149
        %3155 = vmatpush.bf16.msra.mxu0 0
        %3156 = vmatpush.bf16.msra.mxu0 0
        %3157 = vmatpush.bf16.msra.mxu0 0
        %3158 = vmatpush.bf16.msra.mxu0 0
        %3159 = vmatpush.bf16.msra.mxu0 0
        %3160 = vmatpush.bf16.msra.mxu0 0
        %3161 = vmatpush.bf16.msra.mxu0 %v3152
        %3162 = vmatpush.bf16.msra.mxu0 %v3151
        %3163 = vmatmul.bf16.gmra.mxu0 %v1473
        %v3164 = vpop.f32.mrf.mxu0
        %v3165 = vadd.f32 0.0, %v3164
        %v3166 = vpop.f32.mrf.mxu0
        %3167 = vdwg.mxu0
        %v3172 = vunpack.c.l.b16 %v2902
        %v3173 = vunpack.c.l.b16 %v2903
        %v3174 = vunpack.c.l.b16 %v2904
        %v3175 = vunpack.c.l.b16 %v2905
        %v3176 = vpack.c.b16 %v3173, %v3172
        %v3177 = vpack.c.b16 %v3175, %v3174
        %3180 = vmatpush.bf16.msra.mxu0 0
        %3181 = vmatpush.bf16.msra.mxu0 0
        %3182 = vmatpush.bf16.msra.mxu0 0
        %3183 = vmatpush.bf16.msra.mxu0 0
        %3184 = vmatpush.bf16.msra.mxu0 0
        %3185 = vmatpush.bf16.msra.mxu0 0
        %3186 = vmatpush.bf16.msra.mxu0 %v3177
        %3187 = vmatpush.bf16.msra.mxu0 %v3176
        %3188 = vmatmul.bf16.gmra.mxu0 %v1473
        %v3189 = vpop.f32.mrf.mxu0
        %v3190 = vadd.f32 0.0, %v3189
        %v3191 = vpop.f32.mrf.mxu0
        %3192 = vdwg.mxu0
        %v3197 = vunpack.c.l.b16 %v2906
        %v3198 = vunpack.c.l.b16 %v2907
        %v3199 = vunpack.c.l.b16 %v2908
        %v3200 = vunpack.c.l.b16 %v2909
        %v3201 = vpack.c.b16 %v3198, %v3197
        %v3202 = vpack.c.b16 %v3200, %v3199
        %3205 = vmatpush.bf16.msra.mxu0 0
        %3206 = vmatpush.bf16.msra.mxu0 0
        %3207 = vmatpush.bf16.msra.mxu0 0
        %3208 = vmatpush.bf16.msra.mxu0 0
        %3209 = vmatpush.bf16.msra.mxu0 0
        %3210 = vmatpush.bf16.msra.mxu0 0
        %3211 = vmatpush.bf16.msra.mxu0 %v3202
        %3212 = vmatpush.bf16.msra.mxu0 %v3201
        %3213 = vmatmul.bf16.gmra.mxu0 %v1473
        %v3214 = vpop.f32.mrf.mxu0
        %v3215 = vadd.f32 0.0, %v3214
        %v3216 = vpop.f32.mrf.mxu0
        %3217 = vdwg.mxu0
        %v3218 = vpack.c.bf16 %v2940, %v2940
        %v3219 = vpack.c.bf16 %v2965, %v2965
        %v3220 = vpack.c.bf16 %v2990, %v2990
        %v3221 = vpack.c.bf16 %v3015, %v3015
        %v3222 = vpack.c.bf16 %v3040, %v3040
        %v3223 = vpack.c.bf16 %v3065, %v3065
        %v3224 = vpack.c.bf16 %v3090, %v3090
        %v3225 = vpack.c.bf16 %v3115, %v3115
        %v3227 = vsel %vm961, %v3218, 0
        %v3230 = vsel %vm961, %v3222, 0
        %3232 = vmatpush.bf16.xpose.msra.mxu0 0
        %3233 = vmatpush.bf16.xpose.msra.mxu0 0
        %3234 = vmatpush.bf16.xpose.msra.mxu0 0
        %3235 = vmatpush.bf16.xpose.msra.mxu0 0
        %3236 = vmatpush.bf16.xpose.msra.mxu0 0
        %3237 = vmatpush.bf16.xpose.msra.mxu0 0
        %3238 = vmatpush.bf16.xpose.msra.mxu0 0
        %3239 = vmatpush.bf16.xpose.msra.mxu0 %v3230
        %3240 = vmatmul.bf16.gmra.mxu0 %v3227
        %v3241 = vpop.f32.mrf.mxu0
        %v3242 = vadd.f32 0.0, %v3241
        %v3243 = vpop.f32.mrf.mxu0
        %3244 = vdwg.mxu0
        %v3246 = vsel %vm961, %v3219, 0
        %v3249 = vsel %vm961, %v3223, 0
        %3251 = vmatpush.bf16.xpose.msra.mxu0 0
        %3252 = vmatpush.bf16.xpose.msra.mxu0 0
        %3253 = vmatpush.bf16.xpose.msra.mxu0 0
        %3254 = vmatpush.bf16.xpose.msra.mxu0 0
        %3255 = vmatpush.bf16.xpose.msra.mxu0 0
        %3256 = vmatpush.bf16.xpose.msra.mxu0 0
        %3257 = vmatpush.bf16.xpose.msra.mxu0 0
        %3258 = vmatpush.bf16.xpose.msra.mxu0 %v3249
        %3259 = vmatmul.bf16.gmra.mxu0 %v3246
        %v3260 = vpop.f32.mrf.mxu0
        %v3261 = vadd.f32 0.0, %v3260
        %v3262 = vpop.f32.mrf.mxu0
        %3263 = vdwg.mxu0
        %v3265 = vsel %vm961, %v3220, 0
        %v3268 = vsel %vm961, %v3224, 0
        %3270 = vmatpush.bf16.xpose.msra.mxu0 0
        %3271 = vmatpush.bf16.xpose.msra.mxu0 0
        %3272 = vmatpush.bf16.xpose.msra.mxu0 0
        %3273 = vmatpush.bf16.xpose.msra.mxu0 0
        %3274 = vmatpush.bf16.xpose.msra.mxu0 0
        %3275 = vmatpush.bf16.xpose.msra.mxu0 0
        %3276 = vmatpush.bf16.xpose.msra.mxu0 0
        %3277 = vmatpush.bf16.xpose.msra.mxu0 %v3268
        %3278 = vmatmul.bf16.gmra.mxu0 %v3265
        %v3279 = vpop.f32.mrf.mxu0
        %v3280 = vadd.f32 0.0, %v3279
        %v3281 = vpop.f32.mrf.mxu0
        %3282 = vdwg.mxu0
        %v3284 = vsel %vm961, %v3221, 0
        %v3287 = vsel %vm961, %v3225, 0
        %3289 = vmatpush.bf16.xpose.msra.mxu0 0
        %3290 = vmatpush.bf16.xpose.msra.mxu0 0
        %3291 = vmatpush.bf16.xpose.msra.mxu0 0
        %3292 = vmatpush.bf16.xpose.msra.mxu0 0
        %3293 = vmatpush.bf16.xpose.msra.mxu0 0
        %3294 = vmatpush.bf16.xpose.msra.mxu0 0
        %3295 = vmatpush.bf16.xpose.msra.mxu0 0
        %3296 = vmatpush.bf16.xpose.msra.mxu0 %v3287
        %3297 = vmatmul.bf16.gmra.mxu0 %v3284
        %v3298 = vpop.f32.mrf.mxu0
        %v3299 = vadd.f32 0.0, %v3298
        %v3300 = vpop.f32.mrf.mxu0
        %3301 = vdwg.mxu0
        %v3302 = vmul.f32 %v3242, 0.17677669
        %v3303 = vmul.f32 %v3261, 0.17677669
        %v3304 = vmul.f32 %v3280, 0.17677669
        %v3305 = vmul.f32 %v3299, 0.17677669
        %v3306 = vsel %vm961, %v3302, -inf
        %3307 = vmax.xlane.f32.xlu0 %v3306
        %v3308 = vpop.xlane.xlu0 %3307
        %v3309 = vsel %vm961, %v3303, -inf
        %3310 = vmax.xlane.f32.xlu0 %v3309
        %v3311 = vpop.xlane.xlu0 %3310
        %v3312 = vsel %vm961, %v3304, -inf
        %3313 = vmax.xlane.f32.xlu0 %v3312
        %v3314 = vpop.xlane.xlu0 %3313
        %v3315 = vsel %vm961, %v3305, -inf
        %3316 = vmax.xlane.f32.xlu0 %v3315
        %v3317 = vpop.xlane.xlu0 %3316
        %v3318 = vsub.f32 %v3302, %v3308
        %v3319 = vsub.f32 %v3303, %v3311
        %v3320 = vsub.f32 %v3304, %v3314
        %v3321 = vsub.f32 %v3305, %v3317
        %v3322 = vmul.f32 %v3318, 1.442695
        %v3323 = vpow.pop %v3322
        %v3324 = vmul.f32 %v3319, 1.442695
        %v3325 = vpow.pop %v3324
        %v3326 = vmul.f32 %v3320, 1.442695
        %v3327 = vpow.pop %v3326
        %v3328 = vmul.f32 %v3321, 1.442695
        %v3329 = vpow.pop %v3328
        %v3330 = vsel %vm961, %v3323, 0.0
        %3331 = vadd.xlane.f32.xlu0 %v3330
        %v3332 = vpop.xlane.xlu0 %3331
        %v3333 = vsel %vm961, %v3325, 0.0
        %3334 = vadd.xlane.f32.xlu0 %v3333
        %v3335 = vpop.xlane.xlu0 %3334
        %v3336 = vsel %vm961, %v3327, 0.0
        %3337 = vadd.xlane.f32.xlu0 %v3336
        %v3338 = vpop.xlane.xlu0 %3337
        %v3339 = vsel %vm961, %v3329, 0.0
        %3340 = vadd.xlane.f32.xlu0 %v3339
        %v3341 = vpop.xlane.xlu0 %3340
        %v3342 = vrcp.pop %v3332
        %v3343 = vrcp.pop %v3335
        %v3344 = vrcp.pop %v3338
        %v3345 = vrcp.pop %v3341
        %v3346 = vmul.f32 %v3323, %v3342
        %v3347 = vmul.f32 %v3325, %v3343
        %v3348 = vmul.f32 %v3327, %v3344
        %v3349 = vmul.f32 %v3329, %v3345
        %v3350 = vpack.c.bf16 %v3346, %v3346
        %v3351 = vpack.c.bf16 %v3347, %v3347
        %v3352 = vpack.c.bf16 %v3348, %v3348
        %v3353 = vpack.c.bf16 %v3349, %v3349
        %v3354 = vpack.c.bf16 %v3140, %v3140
        %v3355 = vpack.c.bf16 %v3165, %v3165
        %v3356 = vpack.c.bf16 %v3190, %v3190
        %v3357 = vpack.c.bf16 %v3215, %v3215
        %v3359 = vsel %vm961, %v3350, 0
        %v3362 = vsel %vm1103, %v3354, 0
        %3364 = vmatpush.bf16.msra.mxu0 0
        %3365 = vmatpush.bf16.msra.mxu0 0
        %3366 = vmatpush.bf16.msra.mxu0 0
        %3367 = vmatpush.bf16.msra.mxu0 0
        %3368 = vmatpush.bf16.msra.mxu0 0
        %3369 = vmatpush.bf16.msra.mxu0 0
        %3370 = vmatpush.bf16.msra.mxu0 0
        %3371 = vmatpush.bf16.msra.mxu0 %v3362
        %3372 = vmatmul.bf16.gmra.mxu0 %v3359
        %v3373 = vpop.f32.mrf.mxu0
        %v3374 = vadd.f32 0.0, %v3373
        %v3375 = vpop.f32.mrf.mxu0
        %3376 = vdwg.mxu0
        %v3378 = vsel %vm961, %v3351, 0
        %v3381 = vsel %vm1103, %v3355, 0
        %3383 = vmatpush.bf16.msra.mxu0 0
        %3384 = vmatpush.bf16.msra.mxu0 0
        %3385 = vmatpush.bf16.msra.mxu0 0
        %3386 = vmatpush.bf16.msra.mxu0 0
        %3387 = vmatpush.bf16.msra.mxu0 0
        %3388 = vmatpush.bf16.msra.mxu0 0
        %3389 = vmatpush.bf16.msra.mxu0 0
        %3390 = vmatpush.bf16.msra.mxu0 %v3381
        %3391 = vmatmul.bf16.gmra.mxu0 %v3378
        %v3392 = vpop.f32.mrf.mxu0
        %v3393 = vadd.f32 0.0, %v3392
        %v3394 = vpop.f32.mrf.mxu0
        %3395 = vdwg.mxu0
        %v3397 = vsel %vm961, %v3352, 0
        %v3400 = vsel %vm1103, %v3356, 0
        %3402 = vmatpush.bf16.msra.mxu0 0
        %3403 = vmatpush.bf16.msra.mxu0 0
        %3404 = vmatpush.bf16.msra.mxu0 0
        %3405 = vmatpush.bf16.msra.mxu0 0
        %3406 = vmatpush.bf16.msra.mxu0 0
        %3407 = vmatpush.bf16.msra.mxu0 0
        %3408 = vmatpush.bf16.msra.mxu0 0
        %3409 = vmatpush.bf16.msra.mxu0 %v3400
        %3410 = vmatmul.bf16.gmra.mxu0 %v3397
        %v3411 = vpop.f32.mrf.mxu0
        %v3412 = vadd.f32 0.0, %v3411
        %v3413 = vpop.f32.mrf.mxu0
        %3414 = vdwg.mxu0
        %v3416 = vsel %vm961, %v3353, 0
        %v3419 = vsel %vm1103, %v3357, 0
        %3421 = vmatpush.bf16.msra.mxu0 0
        %3422 = vmatpush.bf16.msra.mxu0 0
        %3423 = vmatpush.bf16.msra.mxu0 0
        %3424 = vmatpush.bf16.msra.mxu0 0
        %3425 = vmatpush.bf16.msra.mxu0 0
        %3426 = vmatpush.bf16.msra.mxu0 0
        %3427 = vmatpush.bf16.msra.mxu0 0
        %3428 = vmatpush.bf16.msra.mxu0 %v3419
        %3429 = vmatmul.bf16.gmra.mxu0 %v3416
        %v3430 = vpop.f32.mrf.mxu0
        %v3431 = vadd.f32 0.0, %v3430
        %v3432 = vpop.f32.mrf.mxu0
        %3433 = vdwg.mxu0
        %v3434 = vpack.c.bf16 %v3374, %v3374
        %v3435 = vpack.c.bf16 %v3393, %v3393
        %v3436 = vpack.c.bf16 %v3412, %v3412
        %v3437 = vpack.c.bf16 %v3431, %v3431
        %v3439 = vsel %vm961, %v3434, 0
        %v3442 = vsel %vm1103, %v2911, 0
        %3444 = vmatpush.bf16.msra.mxu0 0
        %3445 = vmatpush.bf16.msra.mxu0 0
        %3446 = vmatpush.bf16.msra.mxu0 0
        %3447 = vmatpush.bf16.msra.mxu0 0
        %3448 = vmatpush.bf16.msra.mxu0 0
        %3449 = vmatpush.bf16.msra.mxu0 0
        %3450 = vmatpush.bf16.msra.mxu0 0
        %3451 = vmatpush.bf16.msra.mxu0 %v3442
        %3452 = vmatmul.bf16.gmra.mxu0 %v3439
        %v3453 = vpop.f32.mrf.mxu0
        %v3454 = vadd.f32 0.0, %v3453
        %v3455 = vpop.f32.mrf.mxu0
        %3456 = vdwg.mxu0
        %v3458 = vsel %vm961, %v3435, 0
        %v3461 = vsel %vm1103, %v2912, 0
        %3463 = vmatpush.bf16.msra.mxu0 0
        %3464 = vmatpush.bf16.msra.mxu0 0
        %3465 = vmatpush.bf16.msra.mxu0 0
        %3466 = vmatpush.bf16.msra.mxu0 0
        %3467 = vmatpush.bf16.msra.mxu0 0
        %3468 = vmatpush.bf16.msra.mxu0 0
        %3469 = vmatpush.bf16.msra.mxu0 0
        %3470 = vmatpush.bf16.msra.mxu0 %v3461
        %3471 = vmatmul.bf16.gmra.mxu0 %v3458
        %v3472 = vpop.f32.mrf.mxu0
        %v3473 = vadd.f32 0.0, %v3472
        %v3474 = vpop.f32.mrf.mxu0
        %3475 = vdwg.mxu0
        %v3477 = vsel %vm961, %v3436, 0
        %v3480 = vsel %vm1103, %v2913, 0
        %3482 = vmatpush.bf16.msra.mxu0 0
        %3483 = vmatpush.bf16.msra.mxu0 0
        %3484 = vmatpush.bf16.msra.mxu0 0
        %3485 = vmatpush.bf16.msra.mxu0 0
        %3486 = vmatpush.bf16.msra.mxu0 0
        %3487 = vmatpush.bf16.msra.mxu0 0
        %3488 = vmatpush.bf16.msra.mxu0 0
        %3489 = vmatpush.bf16.msra.mxu0 %v3480
        %3490 = vmatmul.bf16.gmra.mxu0 %v3477
        %v3491 = vpop.f32.mrf.mxu0
        %v3492 = vadd.f32 0.0, %v3491
        %v3493 = vpop.f32.mrf.mxu0
        %3494 = vdwg.mxu0
        %v3496 = vsel %vm961, %v3437, 0
        %v3499 = vsel %vm1103, %v2914, 0
        %3501 = vmatpush.bf16.msra.mxu0 0
        %3502 = vmatpush.bf16.msra.mxu0 0
        %3503 = vmatpush.bf16.msra.mxu0 0
        %3504 = vmatpush.bf16.msra.mxu0 0
        %3505 = vmatpush.bf16.msra.mxu0 0
        %3506 = vmatpush.bf16.msra.mxu0 0
        %3507 = vmatpush.bf16.msra.mxu0 0
        %3508 = vmatpush.bf16.msra.mxu0 %v3499
        %3509 = vmatmul.bf16.gmra.mxu0 %v3496
        %v3510 = vpop.f32.mrf.mxu0
        %v3511 = vadd.f32 0.0, %v3510
        %v3512 = vpop.f32.mrf.mxu0
        %3513 = vdwg.mxu0
        %v3514 = vsel %vm661, %v3454, 0.0
        %v3515 = vsel %vm661, %v3473, 0.0
        %v3516 = vadd.f32 %v3514, %v3515
        %v3517 = vsel %vm661, %v3492, 0.0
        %v3518 = vadd.f32 %v3516, %v3517
        %v3519 = vsel %vm661, %v3511, 0.0
        %v3520 = vadd.f32 %v3518, %v3519
        %v3521 = vadd.f32 %v3520, %v2857
        %s3522 = scalar_lea.vmem %s14, 4
        %v3523 = vld [vmem:[%s3522] sm:$0x1]
        %s3524 = scalar_lea.vmem %s15, 4
        %v3525 = vld [vmem:[%s3524] sm:$0x1]
        %v3526 = vsel %vm661, %v3521, 0.0
        %3527 = vadd.xlane.f32.xlu0 %v3526
        %v3528 = vpop.xlane.xlu0 %3527
        %v3529 = vmul.f32 %v3528, %v1276
        %v3530 = vsub.f32 %v3521, %v3529
        %v3531 = vmul.f32 %v3530, %v3530
        %v3532 = vsel %vm661, %v3531, 0.0
        %3533 = vadd.xlane.f32.xlu0 %v3532
        %v3534 = vpop.xlane.xlu0 %3533
        %v3535 = vmul.f32 %v3534, %v1276
        %v3536 = vadd.f32 %v3535, 1e-05
        %v3537 = vrsqrt.pop %v3536
        %v3538 = vmul.f32 %v3537, %v3536
        %v3539 = vmul.f32 %v3538, %v3537
        %v3540 = vmul.f32 0.5, %v3539
        %v3541 = vsub.f32 1.5, %v3540
        %v3542 = vmul.f32 %v3537, %v3541
        %vm3543 = vweird.f32 %v3536
        %vm3544 = vweird.f32 %v3537
        %vm3545 = vmor %vm3543, %vm3544
        %v3546 = vsel %vm3545, %v3537, %v3542
        %v3547 = vmul.f32 %v3530, %v3546
        %v3549 = vperm.slane %v3523, 0
        %v3551 = vmul.f32 %v3547, %v3549
        %v3553 = vperm.slane %v3525, 0
        %v3555 = vadd.f32 %v3551, %v3553
        %v3556 = vpack.c.bf16 %v3555, %v3555
        %s3557 = scalar_lea.vmem %s10, 16
        %v3558 = vld [vmem:[%s3557] sm:$0xf]
        %v3559 = vld [vmem:[%s3557 + $0x4] sm:$0xf]
        %v3560 = vld [vmem:[%s3557 + $0x8] sm:$0xf]
        %v3561 = vld [vmem:[%s3557 + $0xc] sm:$0xf]
        %s3562 = scalar_lea.vmem %s11, 1
        %v3563 = vld [vmem:[%s3562] sm:$0x1]
        %v3565 = vperm.slane %v3563, 0
        %v3571 = vunpack.c.l.b16 %v3558
        %v3572 = vunpack.c.l.b16 %v3559
        %v3573 = vunpack.c.l.b16 %v3560
        %v3574 = vunpack.c.l.b16 %v3561
        %v3575 = vpack.c.b16 %v3572, %v3571
        %v3576 = vpack.c.b16 %v3574, %v3573
        %v3580 = vsel %vm661, %v3556, 0
        %3582 = vmatpush.bf16.msra.mxu0 0
        %3583 = vmatpush.bf16.msra.mxu0 0
        %3584 = vmatpush.bf16.msra.mxu0 0
        %3585 = vmatpush.bf16.msra.mxu0 0
        %3586 = vmatpush.bf16.msra.mxu0 0
        %3587 = vmatpush.bf16.msra.mxu0 0
        %3588 = vmatpush.bf16.msra.mxu0 %v3576
        %3589 = vmatpush.bf16.msra.mxu0 %v3575
        %3590 = vmatmul.bf16.gmra.mxu0 %v3580
        %v3591 = vpop.f32.mrf.mxu0
        %v3592 = vadd.f32 %v3565, %v3591
        %v3593 = vpop.f32.mrf.mxu0
        %3594 = vdwg.mxu0
        %v3595 = vmax.f32 %v3592, 0.0
        %v3596 = vpack.c.bf16 %v3595, %v3595
        %s3597 = scalar_lea.vmem %s12, 64
        %v3598 = vld [vmem:[%s3597] sm:$0xf]
        %v3599 = vld [vmem:[%s3597 + $0x4] sm:$0xf]
        %v3600 = vld [vmem:[%s3597 + $0x8] sm:$0xf]
        %v3601 = vld [vmem:[%s3597 + $0xc] sm:$0xf]
        %v3602 = vld [vmem:[%s3597 + $0x10] sm:$0xf]
        %v3603 = vld [vmem:[%s3597 + $0x14] sm:$0xf]
        %v3604 = vld [vmem:[%s3597 + $0x18] sm:$0xf]
        %v3605 = vld [vmem:[%s3597 + $0x1c] sm:$0xf]
        %v3606 = vld [vmem:[%s3597 + $0x20] sm:$0xf]
        %v3607 = vld [vmem:[%s3597 + $0x24] sm:$0xf]
        %v3608 = vld [vmem:[%s3597 + $0x28] sm:$0xf]
        %v3609 = vld [vmem:[%s3597 + $0x2c] sm:$0xf]
        %v3610 = vld [vmem:[%s3597 + $0x30] sm:$0xf]
        %v3611 = vld [vmem:[%s3597 + $0x34] sm:$0xf]
        %v3612 = vld [vmem:[%s3597 + $0x38] sm:$0xf]
        %v3613 = vld [vmem:[%s3597 + $0x3c] sm:$0xf]
        %s3614 = scalar_lea.vmem %s13, 1
        %v3615 = vld [vmem:[%s3614] sm:$0x1]
        %v3617 = vperm.slane %v3615, 0
        %v3635 = vunpack.c.l.b16 %v3598
        %v3636 = vunpack.c.l.b16 %v3599
        %v3637 = vunpack.c.l.b16 %v3600
        %v3638 = vunpack.c.l.b16 %v3601
        %v3639 = vunpack.c.l.b16 %v3602
        %v3640 = vunpack.c.l.b16 %v3603
        %v3641 = vunpack.c.l.b16 %v3604
        %v3642 = vunpack.c.l.b16 %v3605
        %v3643 = vunpack.c.l.b16 %v3606
        %v3644 = vunpack.c.l.b16 %v3607
        %v3645 = vunpack.c.l.b16 %v3608
        %v3646 = vunpack.c.l.b16 %v3609
        %v3647 = vunpack.c.l.b16 %v3610
        %v3648 = vunpack.c.l.b16 %v3611
        %v3649 = vunpack.c.l.b16 %v3612
        %v3650 = vunpack.c.l.b16 %v3613
        %v3651 = vpack.c.b16 %v3636, %v3635
        %v3652 = vpack.c.b16 %v3638, %v3637
        %v3653 = vpack.c.b16 %v3640, %v3639
        %v3654 = vpack.c.b16 %v3642, %v3641
        %v3655 = vpack.c.b16 %v3644, %v3643
        %v3656 = vpack.c.b16 %v3646, %v3645
        %v3657 = vpack.c.b16 %v3648, %v3647
        %v3658 = vpack.c.b16 %v3650, %v3649
        %3667 = vmatpush.bf16.msra.mxu0 %v3658
        %3668 = vmatpush.bf16.msra.mxu0 %v3657
        %3669 = vmatpush.bf16.msra.mxu0 %v3656
        %3670 = vmatpush.bf16.msra.mxu0 %v3655
        %3671 = vmatpush.bf16.msra.mxu0 %v3654
        %3672 = vmatpush.bf16.msra.mxu0 %v3653
        %3673 = vmatpush.bf16.msra.mxu0 %v3652
        %3674 = vmatpush.bf16.msra.mxu0 %v3651
        %3675 = vmatmul.bf16.gmra.mxu0 %v3596
        %v3676 = vpop.f32.mrf.mxu0
        %v3677 = vadd.f32 %v3617, %v3676
        %v3678 = vpop.f32.mrf.mxu0
        %3679 = vdwg.mxu0
        %v3680 = vadd.f32 %v3677, %v3555
        %s3681 = scalar_lea.vmem %s14, 5
        %v3682 = vld [vmem:[%s3681] sm:$0x1]
        %s3683 = scalar_lea.vmem %s15, 5
        %v3684 = vld [vmem:[%s3683] sm:$0x1]
        %v3685 = vsel %vm661, %v3680, 0.0
        %3686 = vadd.xlane.f32.xlu0 %v3685
        %v3687 = vpop.xlane.xlu0 %3686
        %v3688 = vmul.f32 %v3687, %v1276
        %v3689 = vsub.f32 %v3680, %v3688
        %v3690 = vmul.f32 %v3689, %v3689
        %v3691 = vsel %vm661, %v3690, 0.0
        %3692 = vadd.xlane.f32.xlu0 %v3691
        %v3693 = vpop.xlane.xlu0 %3692
        %v3694 = vmul.f32 %v3693, %v1276
        %v3695 = vadd.f32 %v3694, 1e-05
        %v3696 = vrsqrt.pop %v3695
        %v3697 = vmul.f32 %v3696, %v3695
        %v3698 = vmul.f32 %v3697, %v3696
        %v3699 = vmul.f32 0.5, %v3698
        %v3700 = vsub.f32 1.5, %v3699
        %v3701 = vmul.f32 %v3696, %v3700
        %vm3702 = vweird.f32 %v3695
        %vm3703 = vweird.f32 %v3696
        %vm3704 = vmor %vm3702, %vm3703
        %v3705 = vsel %vm3704, %v3696, %v3701
        %v3706 = vmul.f32 %v3689, %v3705
        %v3708 = vperm.slane %v3682, 0
        %v3710 = vmul.f32 %v3706, %v3708
        %v3712 = vperm.slane %v3684, 0
        %v3714 = vadd.f32 %v3710, %v3712
        %v3715 = vpack.c.bf16 %v3714, %v3714
        %v3716 = vld [vmem:[%s16] sm:$0xf]
        %v3717 = vld [vmem:[%s16 + $0x4] sm:$0xf]
        %v3718 = vld [vmem:[%s16 + $0x8] sm:$0xf]
        %v3719 = vld [vmem:[%s16 + $0xc] sm:$0xf]
        %v3720 = vld [vmem:[%s17] sm:$0x1]
        %v3722 = vperm.slane %v3720, 0
        %v3728 = vunpack.c.l.b16 %v3716
        %v3729 = vunpack.c.l.b16 %v3717
        %v3730 = vunpack.c.l.b16 %v3718
        %v3731 = vunpack.c.l.b16 %v3719
        %v3732 = vpack.c.b16 %v3729, %v3728
        %v3733 = vpack.c.b16 %v3731, %v3730
        %v3737 = vsel %vm661, %v3715, 0
        %3739 = vmatpush.bf16.msra.mxu0 0
        %3740 = vmatpush.bf16.msra.mxu0 0
        %3741 = vmatpush.bf16.msra.mxu0 0
        %3742 = vmatpush.bf16.msra.mxu0 0
        %3743 = vmatpush.bf16.msra.mxu0 0
        %3744 = vmatpush.bf16.msra.mxu0 0
        %3745 = vmatpush.bf16.msra.mxu0 %v3733
        %3746 = vmatpush.bf16.msra.mxu0 %v3732
        %3747 = vmatmul.bf16.gmra.mxu0 %v3737
        %v3748 = vpop.f32.mrf.mxu0
        %v3749 = vadd.f32 %v3722, %v3748
        %v3750 = vpop.f32.mrf.mxu0
        %3751 = vdwg.mxu0
        %3752 = vst [vmem:[%s579] sm:$0xff] %v3749
        %s3753 = sand.u32 %s428, 1
        %s3754 = scalar_lea.sflag [#allocation3], %s3753
        %s3755 = sand.u32 %s428, 1
        %s3756 = smul.addr %s3755, 8
        %s3757 = scalar_lea.vmem [#allocation2], %s3756
        // Predicated region
        $region93: #{decoder_forward.1} parent=91 // pred_check
          %p3758 = pneg %p438
        $region94: #{decoder_forward.1} parent=91 // pred_check_branch
          %3760 = sbr.rel (%p3758) target = $region96
        $region95: #{decoder_forward.1} parent=91 // pred_region
          %3762 = vsyncadd %s3754, 0
          %s3763 = smul.addr %s32, 8
          %s3764 = scalar_lea.hbm %s18, %s3763
          %s3766 = sshll.u32 %s3757, 4
          %s3767 = int_to_ptr.vmem [resolvable:$true] %s3766
          %s3768 = sshll.u32 %s3764, 4
          %s3769 = int_to_ptr.hbm [resolvable:$true] %s3768
          %3771 = dma.vmem_to_hbm [thread:$0]  %s3767, 128, %s3769, %s3754
        $region96: #{decoder_forward.1} parent=91 // pred_fallthru
          _
      $region92: #{decoder_forward.1} parent=5 // pred_fallthru
        _
      %p3772 = scmp.le.s32.totalorder 2, %s27
      // Predicated region
      $region97: #{decoder_forward.1} parent=5 // pred_check
        %p3773 = pneg %p3772
      $region98: #{decoder_forward.1} parent=5 // pred_check_branch
        %3775 = sbr.rel (%p3773) target = $region100
      $region99: #{decoder_forward.1} parent=5 // pred_region
        %s3776 = ssub.s32 %s27, 2
        // Predicated region
        $region101: #{decoder_forward.1} parent=99 // pred_check
          %p3777 = pneg %p444
        $region102: #{decoder_forward.1} parent=99 // pred_check_branch
          %3779 = sbr.rel (%p3777) target = $region104
        $region103: #{decoder_forward.1} parent=99 // pred_region
          %s3780 = sand.u32 %s429, 1
          %s3781 = scalar_lea.sflag [#allocation3], %s3780
          %s3782 = sand.u32 %s429, 1
          %s3783 = smul.addr %s3782, 8
          %s3784 = scalar_lea.vmem [#allocation2], %s3783
          %3786 = dma.done %s3781, 128
        $region104: #{decoder_forward.1} parent=99 // pred_fallthru
          _
      $region100: #{decoder_forward.1} parent=5 // pred_fallthru
        _
    $region6: #{decoder_forward.1} parent=1 // loop_footer
      %s31 = sadd.s32 1, %s27
    $region7: #{decoder_forward.1} parent=1 // loop_footer_branch
      %26 = sbr.rel target = $region3
    $region8: #{decoder_forward.1} parent=1 // loop_exit
      _
    %3787 = vsyncpa [#allocation3], 1
    %s3788 = scalar_lea.sflag [#allocation3], 1
    %3789 = vsyncpa %s3788, 1

</llo_original>
